<compile_context>
chip_gen: v7x
topology: tpu7x:2x2x1
jax: 0.10.0
libtpu: 0.0.40
codegen_flags: <defaults>
</compile_context>

<pallas_src>
import math

import jax
import jax.numpy as jnp
from jax.experimental import pallas as pl
from jax.experimental.pallas import tpu as pltpu


_VMEM_LIMIT = 48 * 1024 * 1024


# ----------------------------------------------------------------------------
# Pallas kernels
# ----------------------------------------------------------------------------
def _make_conv_kernel(use_act: bool, has_residual: bool):
    """3 depth-tap GEMM accumulate + BN(scale,shift) [+LeakyReLU] [+residual]."""

    def _body(a0_ref, a1_ref, a2_ref, w_ref, sc_ref, sh_ref, res, o_ref):
        acc = jnp.dot(a0_ref[0], w_ref[0], preferred_element_type=jnp.float32)
        acc += jnp.dot(a1_ref[0], w_ref[1], preferred_element_type=jnp.float32)
        acc += jnp.dot(a2_ref[0], w_ref[2], preferred_element_type=jnp.float32)
        acc = acc * sc_ref[...] + sh_ref[...]
        if use_act:
            acc = jnp.where(acc > 0, acc, 0.1 * acc)
        if res is not None:
            acc = acc + res
        o_ref[0] = acc.astype(o_ref.dtype)

    if has_residual:
        def kernel(a0, a1, a2, w, sc, sh, r, o):
            _body(a0, a1, a2, w, sc, sh, r[0].astype(jnp.float32), o)
    else:
        def kernel(a0, a1, a2, w, sc, sh, o):
            _body(a0, a1, a2, w, sc, sh, None, o)
    return kernel


def _matvec_kernel(a0_ref, a1_ref, a2_ref, w_ref, o_ref):
    """Cout=1 conv as a VPU mat-vec; lane-dense (1, 1, tile) output."""
    acc = jnp.sum(a0_ref[0].astype(jnp.float32) * w_ref[0], axis=1)
    acc = acc + jnp.sum(a1_ref[0].astype(jnp.float32) * w_ref[1], axis=1)
    acc = acc + jnp.sum(a2_ref[0].astype(jnp.float32) * w_ref[2], axis=1)
    o_ref[...] = acc.reshape(1, 1, -1)


def _softmax_wsum_kernel(f_ref, d_ref, o_ref):
    # f_ref/d_ref: (1, D, tn) f32; softmax over D, disparity-weighted sum.
    f = f_ref[0]                                       # (D, tn)
    m = jnp.max(f, axis=0, keepdims=True)
    e = jnp.exp(f - m)
    s = jnp.sum(e, axis=0, keepdims=True)
    conf = e * pl.reciprocal(s, approx=True)
    o_ref[0] = jnp.sum(conf * d_ref[0], axis=0, keepdims=True)


# ----------------------------------------------------------------------------
# Fused conv GEMM wrapper (depth taps folded via index_map offsets)
# ----------------------------------------------------------------------------
def _conv_gemm(a2col, wstack, scale, shift, batch, depth, *, residual=None,
               use_act=True, out_dtype=jnp.bfloat16, tm=512):
    """a2col: (batch*(depth+2), M2, K2) bf16 im2col over the in-plane taps only.
    wstack: (3, K2, Cout) bf16, slab j paired with padded-depth offset j.
    Output: (batch*depth, M2, Cout)."""
    bdp, M2, K2 = a2col.shape
    dp = bdp // batch
    cout = wstack.shape[-1]
    tm_eff = tm if M2 >= tm else M2
    grid = (batch, depth, pl.cdiv(M2, tm_eff))

    def a_spec(off):
        return pl.BlockSpec((1, tm_eff, K2),
                            lambda b, d, m, _o=off: (b * dp + d + _o, m, 0))

    in_specs = [a_spec(0), a_spec(1), a_spec(2),
                pl.BlockSpec((3, K2, cout), lambda b, d, m: (0, 0, 0)),
                pl.BlockSpec((1, cout), lambda b, d, m: (0, 0)),
                pl.BlockSpec((1, cout), lambda b, d, m: (0, 0))]
    args = [a2col, a2col, a2col, wstack,
            scale.reshape(1, cout).astype(jnp.float32),
            shift.reshape(1, cout).astype(jnp.float32)]
    if residual is not None:
        in_specs.append(
            pl.BlockSpec((1, tm_eff, cout),
                         lambda b, d, m: (b * depth + d, m, 0)))
        args.append(residual.astype(jnp.bfloat16))

    return pl.pallas_call(
        _make_conv_kernel(use_act, residual is not None),
        out_shape=jax.ShapeDtypeStruct((batch * depth, M2, cout), out_dtype),
        grid=grid,
        in_specs=in_specs,
        out_specs=pl.BlockSpec((1, tm_eff, cout),
                               lambda b, d, m: (b * depth + d, m, 0)),
        compiler_params=pltpu.CompilerParams(
            dimension_semantics=("parallel", "parallel", "parallel"),
            vmem_limit_bytes=_VMEM_LIMIT),
    )(*args)


# ----------------------------------------------------------------------------
# im2col over the in-plane taps only (depth axis kept whole)
# ----------------------------------------------------------------------------
def _im2col_hw(xp, taps_h, taps_w, stride_hw, out_hw):
    """xp: padded (B, Dp, Hp, Wp, Cin) bf16. Returns (B*Dp, Ho*Wo, T*Cin)."""
    B, Dp, _, _, Cin = xp.shape
    sh, sw = stride_hw
    Ho, Wo = out_hw
    cols = []
    for dh in taps_h:
        for dw in taps_w:
            cols.append(xp[:, :, dh:dh + (Ho - 1) * sh + 1:sh,
                               dw:dw + (Wo - 1) * sw + 1:sw, :])
    a = jnp.concatenate(cols, axis=-1)             # (B, Dp, Ho, Wo, T*Cin)
    return a.reshape(B * Dp, Ho * Wo, len(cols) * Cin)


# ----------------------------------------------------------------------------
# Layer builders
# ----------------------------------------------------------------------------
def conv3d_layer(x5, w, scale, shift, *, stride_hw=1, residual=None,
                 use_act=True, out_dtype=jnp.bfloat16, tm=512):
    """Conv3d(k=3, pad=1, stride=(1,s,s)) + BN + (LeakyReLU 0.1) + (residual).
    x5: (B,D,H,W,Cin) bf16; w: (3,3,3,Cin,Cout)."""
    B, D, H, W, Cin = x5.shape
    Cout = w.shape[-1]
    s = stride_hw
    Ho = (H + 2 - 3) // s + 1
    Wo = (W + 2 - 3) // s + 1
    xp = jnp.pad(x5, ((0, 0), (1, 1), (1, 1), (1, 1), (0, 0)))
    a2 = _im2col_hw(xp, (0, 1, 2), (0, 1, 2), (s, s), (Ho, Wo))
    # slab j <-> depth tap kd = j (padded depth index = do + j)
    slabs = []
    for kd in range(3):
        rows = [w[kd, kh, kw] for kh in range(3) for kw in range(3)]
        slabs.append(jnp.concatenate(rows, axis=0))
    wstack = jnp.stack(slabs, axis=0).astype(jnp.bfloat16)      # (3, 9Cin, Cout)
    res_flat = None
    if residual is not None:
        res_flat = residual.reshape(B * D, Ho * Wo, Cout)
    out = _conv_gemm(a2, wstack, scale, shift, B, D, residual=res_flat,
                     use_act=use_act, out_dtype=out_dtype, tm=tm)
    return out.reshape(B, D, Ho, Wo, Cout)


# For output parity p along H (or W): tuple of (kernel index k, padded offset).
_PHASE_TAPS = {0: ((1, 1),), 1: ((0, 2), (2, 1))}


def conv_transpose3d_layer(x5, w, scale, shift, *, residual=None,
                           out_dtype=jnp.bfloat16, tm=512):
    """ConvTranspose3d(k=3, pad=1, out_pad=(0,1,1), stride=(1,2,2)) + BN
    [+ residual], polyphase-decomposed into 4 stride-1 GEMM branches.
    w: (3,3,3,Cin,Cout) == torch weight (Cin,Cout,kd,kh,kw) transposed.
    Output: (B, D, 2H, 2W, Cout)."""
    B, D, H, W, Cin = x5.shape
    Cout = w.shape[-1]
    xp = jnp.pad(x5, ((0, 0), (1, 1), (1, 1), (1, 1), (0, 0)))
    phase = {}
    for ph in (0, 1):
        for pw in (0, 1):
            h_taps, w_taps = _PHASE_TAPS[ph], _PHASE_TAPS[pw]
            a2 = _im2col_hw(xp, [dh for _, dh in h_taps],
                            [dw for _, dw in w_taps], (1, 1), (H, W))
            # padded-depth offset j <-> kd = 2 - j  (transpose-conv indexing)
            slabs = []
            for j in range(3):
                rows = [w[2 - j, kh, kw]
                        for kh, _ in h_taps for kw, _ in w_taps]
                slabs.append(jnp.concatenate(rows, axis=0))
            wstack = jnp.stack(slabs, axis=0).astype(jnp.bfloat16)
            res_flat = None
            if residual is not None:
                res_flat = residual[:, :, ph::2, pw::2, :].reshape(
                    B * D, H * W, Cout)
            y = _conv_gemm(a2, wstack, scale, shift, B, D, residual=res_flat,
                           use_act=False, out_dtype=out_dtype, tm=tm)
            phase[(ph, pw)] = y.reshape(B, D, H, W, Cout)
    even = jnp.stack([phase[(0, 0)], phase[(0, 1)]], axis=4)   # (B,D,H,W,2,C)
    odd = jnp.stack([phase[(1, 0)], phase[(1, 1)]], axis=4)
    y6 = jnp.stack([even, odd], axis=3)                        # (B,D,H,2,W,2,C)
    return y6.reshape(B, D, 2 * H, 2 * W, Cout)


def conv3d_cout1_layer(x5, w, *, tm=512):
    """Final Conv3d(k=3, pad=1, Cout=1, no BN/act) as a lane-dense mat-vec.
    Returns (B*D, 1, H*W) float32."""
    B, D, H, W, Cin = x5.shape
    dp = D + 2
    xp = jnp.pad(x5, ((0, 0), (1, 1), (1, 1), (1, 1), (0, 0)))
    a2 = _im2col_hw(xp, (0, 1, 2), (0, 1, 2), (1, 1), (H, W))
    slabs = []
    for kd in range(3):
        rows = [w[kd, kh, kw, :, 0] for kh in range(3) for kw in range(3)]
        slabs.append(jnp.concatenate(rows, axis=0))
    wstack = jnp.stack(slabs, axis=0)[:, None, :].astype(jnp.float32)  # (3,1,K2)
    M2, K2 = H * W, 9 * Cin
    tm_eff = tm if M2 >= tm else M2
    grid = (B, D, pl.cdiv(M2, tm_eff))

    def a_spec(off):
        return pl.BlockSpec((1, tm_eff, K2),
                            lambda b, d, m, _o=off: (b * dp + d + _o, m, 0))

    return pl.pallas_call(
        _matvec_kernel,
        out_shape=jax.ShapeDtypeStruct((B * D, 1, M2), jnp.float32),
        grid=grid,
        in_specs=[a_spec(0), a_spec(1), a_spec(2),
                  pl.BlockSpec((3, 1, K2), lambda b, d, m: (0, 0, 0))],
        out_specs=pl.BlockSpec((1, 1, tm_eff),
                               lambda b, d, m: (b * D + d, 0, m)),
        compiler_params=pltpu.CompilerParams(
            dimension_semantics=("parallel", "parallel", "parallel"),
            vmem_limit_bytes=_VMEM_LIMIT),
    )(a2, a2, a2, wstack)


def softmax_weighted_sum(features, disp, *, tn=512):
    """features, disp: (B, D, HW) -> (B, HW); softmax over D then weighted sum."""
    B, D, HW = features.shape
    tn_eff = tn if HW >= tn else HW
    grid = (B, pl.cdiv(HW, tn_eff))
    out = pl.pallas_call(
        _softmax_wsum_kernel,
        out_shape=jax.ShapeDtypeStruct((B, 1, HW), jnp.float32),
        grid=grid,
        in_specs=[pl.BlockSpec((1, D, tn_eff), lambda b, t: (b, 0, t)),
                  pl.BlockSpec((1, D, tn_eff), lambda b, t: (b, 0, t))],
        out_specs=pl.BlockSpec((1, 1, tn_eff), lambda b, t: (b, 0, t)),
        compiler_params=pltpu.CompilerParams(
            dimension_semantics=("parallel", "parallel"),
            vmem_limit_bytes=_VMEM_LIMIT),
    )(features.astype(jnp.float32), disp.astype(jnp.float32))
    return out.reshape(B, HW)


# ----------------------------------------------------------------------------
# Full MinDisparityPredictor forward
# ----------------------------------------------------------------------------
def min_disparity_predictor(params, x_ncdhw, in_disp):
    """x_ncdhw: (B, C, D, H, W); in_disp: (B, 1, D, H, W).
    Returns (disp_pred (B,1,H,W) f32, features (B,D,H,W) f32)."""
    p = params
    x = jnp.transpose(x_ncdhw, (0, 2, 3, 4, 1)).astype(jnp.bfloat16)   # NDHWC

    out0 = conv3d_layer(x,    p['w1'], p['s1'], p['b1'], stride_hw=2)
    out1 = conv3d_layer(out0, p['w2'], p['s2'], p['b2'], residual=out0)
    outa = conv3d_layer(out1, p['w3'], p['s3'], p['b3'], stride_hw=2)
    out2 = conv3d_layer(outa, p['w4'], p['s4'], p['b4'], residual=outa)
    outb = conv3d_layer(out2, p['w5'], p['s5'], p['b5'], stride_hw=2)
    out3 = conv3d_layer(outb, p['w6'], p['s6'], p['b6'], residual=outb)

    out4 = conv_transpose3d_layer(out3, p['w7'], p['s7'], p['b7'],
                                  residual=out2)
    out5 = conv_transpose3d_layer(out4, p['w8'], p['s8'], p['b8'],
                                  residual=out1)
    out6 = conv_transpose3d_layer(out5, p['w9'], p['s9'], p['b9'])

    h = conv3d_layer(out6, p['w10'], p['s10'], p['b10'])
    B, D, H, W, _ = h.shape
    feat_flat = conv3d_cout1_layer(h, p['w11'])          # (B*D, 1, H*W) f32
    features = feat_flat.reshape(B, D, H, W)             # == out7.squeeze(1)

    disp = in_disp[:, 0].reshape(B, D, H * W)            # == in_disp.squeeze(1)
    disp_pred = softmax_weighted_sum(feat_flat.reshape(B, D, H * W), disp)
    return disp_pred.reshape(B, 1, H, W), features


# ----------------------------------------------------------------------------
# Deterministic parameter initialization (synthetic, matches module shapes)
# ----------------------------------------------------------------------------
def init_params(key, inplanes=16):
    C = inplanes
    chans = [
        (C, 2 * C), (2 * C, 2 * C),                 # layer1, layer2
        (2 * C, 4 * C), (4 * C, 4 * C),             # layer3, layer4
        (4 * C, 8 * C), (8 * C, 8 * C),             # layer5, layer6
        (8 * C, 4 * C), (4 * C, 2 * C), (2 * C, C),  # layer7..9 (transpose)
        (C, 2 * C),                                  # last_conv3d_layer[0]
        (2 * C, 1),                                  # last_conv3d_layer[1]
    ]
    eps = 1e-5
    bn_scale = 1.0 / math.sqrt(1.0 + eps)   # gamma=1, mean=0, var=1, beta=0
    params = {}
    for i, (cin, cout) in enumerate(chans, start=1):
        key, k = jax.random.split(key)
        std = math.sqrt(2.0 / (27.0 * cout))  # matches weight_init for Conv3d
        params[f'w{i}'] = (std * jax.random.normal(
            k, (3, 3, 3, cin, cout))).astype(jnp.float32)
        if i == 11:   # final Conv3d has no BatchNorm
            params[f's{i}'] = jnp.ones((cout,), jnp.float32)
            params[f'b{i}'] = jnp.zeros((cout,), jnp.float32)
        else:
            params[f's{i}'] = jnp.full((cout,), bn_scale, jnp.float32)
            params[f'b{i}'] = jnp.zeros((cout,), jnp.float32)
    return params


# ----------------------------------------------------------------------------
if __name__ == "__main__":
    key = jax.random.PRNGKey(0)
    kx, kd, kp = jax.random.split(key, 3)

    B, C, D, H, W = 1, 16, 8, 16, 16         # small but stride/upsample-safe
    x = jax.random.normal(kx, (B, C, D, H, W), jnp.float32)
    in_disp = jax.random.uniform(kd, (B, 1, D, H, W), jnp.float32,
                                 minval=0.0, maxval=192.0)
    params = init_params(kp, inplanes=C)

    fwd = jax.jit(min_disparity_predictor)
    disp_pred, features = fwd(params, x, in_disp)
    jax.block_until_ready((disp_pred, features))

    assert disp_pred.shape == (B, 1, H, W), disp_pred.shape
    assert features.shape == (B, D, H, W), features.shape
    assert bool(jnp.all(jnp.isfinite(disp_pred)))
    assert bool(jnp.all(jnp.isfinite(features)))
    print("KERNEL_OK")
</pallas_src>

<mosaic_0001>
module attributes {stable_mosaic.version = 11 : i64} {
  func.func @kernel(%arg0: i32, %arg1: i32, %arg2: i32, %arg3: memref<1x64x144xbf16, #tpu.memory_space<vmem>>, %arg4: memref<1x64x144xbf16, #tpu.memory_space<vmem>>, %arg5: memref<1x64x144xbf16, #tpu.memory_space<vmem>>, %arg6: memref<3x144x32xbf16, #tpu.memory_space<vmem>>, %arg7: memref<1x32xf32, #tpu.memory_space<vmem>>, %arg8: memref<1x32xf32, #tpu.memory_space<vmem>>, %arg9: memref<1x64x32xbf16, #tpu.memory_space<vmem>>) attributes {dimension_semantics = [#tpu.dimension_semantics<parallel>, #tpu.dimension_semantics<parallel>, #tpu.dimension_semantics<parallel>], iteration_bounds = array<i64: 1, 8, 1>, scalar_prefetch = 0 : i64, scratch_operands = 0 : i64, tpu.core_type = #tpu.core_type<tc>, window_params = [{transform_indices = @transform_0, window_bounds = array<i64: 1, 64, 144>}, {transform_indices = @transform_1, window_bounds = array<i64: 1, 64, 144>}, {transform_indices = @transform_2, window_bounds = array<i64: 1, 64, 144>}, {pipeline_mode = #tpu.pipeline_mode<synchronous>, transform_indices = @transform_3, window_bounds = array<i64: 3, 144, 32>}, {pipeline_mode = #tpu.pipeline_mode<synchronous>, transform_indices = @transform_4, window_bounds = array<i64: 1, 32>}, {pipeline_mode = #tpu.pipeline_mode<synchronous>, transform_indices = @transform_5, window_bounds = array<i64: 1, 32>}, {transform_indices = @transform_6, window_bounds = array<i64: 1, 64, 32>}]} {
    %c0 = arith.constant 0 : index
    %c0_0 = arith.constant 0 : index
    %c0_1 = arith.constant 0 : index
    %0 = vector.load %arg3[%c0, %c0_0, %c0_1] : memref<1x64x144xbf16, #tpu.memory_space<vmem>>, vector<1x64x144xbf16>
    %1 = vector.shape_cast %0 : vector<1x64x144xbf16> to vector<64x144xbf16>
    %c0_2 = arith.constant 0 : index
    %c0_3 = arith.constant 0 : index
    %c0_4 = arith.constant 0 : index
    %2 = vector.load %arg6[%c0_2, %c0_3, %c0_4] : memref<3x144x32xbf16, #tpu.memory_space<vmem>>, vector<1x144x32xbf16>
    %3 = vector.shape_cast %2 : vector<1x144x32xbf16> to vector<144x32xbf16>
    %cst = arith.constant dense<0.000000e+00> : vector<64x32xf32>
    %4 = tpu.matmul %1, %3, %cst {dimension_numbers = #tpu.dot_dimension_numbers<[1], [0], [0], [1], [0, 0, 1, 1], [], []>} : vector<64x144xbf16>, vector<144x32xbf16>, vector<64x32xf32> -> vector<64x32xf32>
    %c0_5 = arith.constant 0 : index
    %c0_6 = arith.constant 0 : index
    %c0_7 = arith.constant 0 : index
    %5 = vector.load %arg4[%c0_5, %c0_6, %c0_7] : memref<1x64x144xbf16, #tpu.memory_space<vmem>>, vector<1x64x144xbf16>
    %6 = vector.shape_cast %5 : vector<1x64x144xbf16> to vector<64x144xbf16>
    %c1 = arith.constant 1 : index
    %c0_8 = arith.constant 0 : index
    %c0_9 = arith.constant 0 : index
    %7 = vector.load %arg6[%c1, %c0_8, %c0_9] : memref<3x144x32xbf16, #tpu.memory_space<vmem>>, vector<1x144x32xbf16>
    %8 = vector.shape_cast %7 : vector<1x144x32xbf16> to vector<144x32xbf16>
    %cst_10 = arith.constant dense<0.000000e+00> : vector<64x32xf32>
    %9 = tpu.matmul %6, %8, %cst_10 {dimension_numbers = #tpu.dot_dimension_numbers<[1], [0], [0], [1], [0, 0, 1, 1], [], []>} : vector<64x144xbf16>, vector<144x32xbf16>, vector<64x32xf32> -> vector<64x32xf32>
    %10 = arith.addf %4, %9 : vector<64x32xf32>
    %c0_11 = arith.constant 0 : index
    %c0_12 = arith.constant 0 : index
    %c0_13 = arith.constant 0 : index
    %11 = vector.load %arg5[%c0_11, %c0_12, %c0_13] : memref<1x64x144xbf16, #tpu.memory_space<vmem>>, vector<1x64x144xbf16>
    %12 = vector.shape_cast %11 : vector<1x64x144xbf16> to vector<64x144xbf16>
    %c2 = arith.constant 2 : index
    %c0_14 = arith.constant 0 : index
    %c0_15 = arith.constant 0 : index
    %13 = vector.load %arg6[%c2, %c0_14, %c0_15] : memref<3x144x32xbf16, #tpu.memory_space<vmem>>, vector<1x144x32xbf16>
    %14 = vector.shape_cast %13 : vector<1x144x32xbf16> to vector<144x32xbf16>
    %cst_16 = arith.constant dense<0.000000e+00> : vector<64x32xf32>
    %15 = tpu.matmul %12, %14, %cst_16 {dimension_numbers = #tpu.dot_dimension_numbers<[1], [0], [0], [1], [0, 0, 1, 1], [], []>} : vector<64x144xbf16>, vector<144x32xbf16>, vector<64x32xf32> -> vector<64x32xf32>
    %16 = arith.addf %10, %15 : vector<64x32xf32>
    %c0_17 = arith.constant 0 : index
    %c0_18 = arith.constant 0 : index
    %17 = vector.load %arg7[%c0_17, %c0_18] : memref<1x32xf32, #tpu.memory_space<vmem>>, vector<1x32xf32>
    %18 = vector.broadcast %17 : vector<1x32xf32> to vector<64x32xf32>
    %19 = arith.mulf %16, %18 : vector<64x32xf32>
    %c0_19 = arith.constant 0 : index
    %c0_20 = arith.constant 0 : index
    %20 = vector.load %arg8[%c0_19, %c0_20] : memref<1x32xf32, #tpu.memory_space<vmem>>, vector<1x32xf32>
    %21 = vector.broadcast %20 : vector<1x32xf32> to vector<64x32xf32>
    %22 = arith.addf %19, %21 : vector<64x32xf32>
    %cst_21 = arith.constant 0.000000e+00 : f32
    %23 = vector.broadcast %cst_21 : f32 to vector<64x32xf32>
    %24 = arith.cmpf ogt, %22, %23 : vector<64x32xf32>
    %cst_22 = arith.constant 1.000000e-01 : f32
    %25 = vector.broadcast %cst_22 : f32 to vector<64x32xf32>
    %26 = arith.mulf %25, %22 : vector<64x32xf32>
    %27 = arith.select %24, %22, %26 : vector<64x32xi1>, vector<64x32xf32>
    %28 = arith.truncf %27 : vector<64x32xf32> to vector<64x32xbf16>
    %c0_23 = arith.constant 0 : index
    %c0_24 = arith.constant 0 : index
    %c0_25 = arith.constant 0 : index
    %29 = vector.load %arg9[%c0_23, %c0_24, %c0_25] : memref<1x64x32xbf16, #tpu.memory_space<vmem>>, vector<1x64x32xbf16>
    %30 = vector.shape_cast %29 : vector<1x64x32xbf16> to vector<64x32xbf16>
    %31 = vector.shape_cast %28 : vector<64x32xbf16> to vector<1x64x32xbf16>
    tpu.vector_store %arg9[%c0_23, %c0_24, %c0_25], %31 {strides = array<i32>} : memref<1x64x32xbf16, #tpu.memory_space<vmem>>, vector<1x64x32xbf16>,
    return
  }
  func.func @transform_0(%arg0: i32, %arg1: i32, %arg2: i32) -> (i32, i32, i32) {
    %c10_i32 = arith.constant 10 : i32
    %0 = arith.muli %arg0, %c10_i32 : i32
    %1 = arith.addi %0, %arg1 : i32
    %c0_i32 = arith.constant 0 : i32
    %2 = arith.addi %1, %c0_i32 : i32
    %c0_i32_0 = arith.constant 0 : i32
    %c0_i32_1 = arith.constant 0 : i32
    return %2, %arg2, %c0_i32_0 : i32, i32, i32
  }
  func.func @transform_1(%arg0: i32, %arg1: i32, %arg2: i32) -> (i32, i32, i32) {
    %c10_i32 = arith.constant 10 : i32
    %0 = arith.muli %arg0, %c10_i32 : i32
    %1 = arith.addi %0, %arg1 : i32
    %c1_i32 = arith.constant 1 : i32
    %2 = arith.addi %1, %c1_i32 : i32
    %c0_i32 = arith.constant 0 : i32
    %c0_i32_0 = arith.constant 0 : i32
    return %2, %arg2, %c0_i32 : i32, i32, i32
  }
  func.func @transform_2(%arg0: i32, %arg1: i32, %arg2: i32) -> (i32, i32, i32) {
    %c10_i32 = arith.constant 10 : i32
    %0 = arith.muli %arg0, %c10_i32 : i32
    %1 = arith.addi %0, %arg1 : i32
    %c2_i32 = arith.constant 2 : i32
    %2 = arith.addi %1, %c2_i32 : i32
    %c0_i32 = arith.constant 0 : i32
    %c0_i32_0 = arith.constant 0 : i32
    return %2, %arg2, %c0_i32 : i32, i32, i32
  }
  func.func @transform_3(%arg0: i32, %arg1: i32, %arg2: i32) -> (i32, i32, i32) {
    %c0_i32 = arith.constant 0 : i32
    %c0_i32_0 = arith.constant 0 : i32
    %c0_i32_1 = arith.constant 0 : i32
    %c0_i32_2 = arith.constant 0 : i32
    return %c0_i32, %c0_i32_0, %c0_i32_1 : i32, i32, i32
  }
  func.func @transform_4(%arg0: i32, %arg1: i32, %arg2: i32) -> (i32, i32) {
    %c0_i32 = arith.constant 0 : i32
    %c0_i32_0 = arith.constant 0 : i32
    %c0_i32_1 = arith.constant 0 : i32
    return %c0_i32, %c0_i32_0 : i32, i32
  }
  func.func @transform_5(%arg0: i32, %arg1: i32, %arg2: i32) -> (i32, i32) {
    %c0_i32 = arith.constant 0 : i32
    %c0_i32_0 = arith.constant 0 : i32
    %c0_i32_1 = arith.constant 0 : i32
    return %c0_i32, %c0_i32_0 : i32, i32
  }
  func.func @transform_6(%arg0: i32, %arg1: i32, %arg2: i32) -> (i32, i32, i32) {
    %c8_i32 = arith.constant 8 : i32
    %0 = arith.muli %arg0, %c8_i32 : i32
    %1 = arith.addi %0, %arg1 : i32
    %c0_i32 = arith.constant 0 : i32
    %c0_i32_0 = arith.constant 0 : i32
    return %1, %arg2, %c0_i32 : i32, i32, i32
  }
}

module attributes {stable_mosaic.version = 11 : i64} {
  func.func @kernel(%arg0: i32, %arg1: i32, %arg2: i32, %arg3: memref<1x64x288xbf16, #tpu.memory_space<vmem>>, %arg4: memref<1x64x288xbf16, #tpu.memory_space<vmem>>, %arg5: memref<1x64x288xbf16, #tpu.memory_space<vmem>>, %arg6: memref<3x288x32xbf16, #tpu.memory_space<vmem>>, %arg7: memref<1x32xf32, #tpu.memory_space<vmem>>, %arg8: memref<1x32xf32, #tpu.memory_space<vmem>>, %arg9: memref<1x64x32xbf16, #tpu.memory_space<vmem>>, %arg10: memref<1x64x32xbf16, #tpu.memory_space<vmem>>) attributes {dimension_semantics = [#tpu.dimension_semantics<parallel>, #tpu.dimension_semantics<parallel>, #tpu.dimension_semantics<parallel>], iteration_bounds = array<i64: 1, 8, 1>, scalar_prefetch = 0 : i64, scratch_operands = 0 : i64, tpu.core_type = #tpu.core_type<tc>, window_params = [{transform_indices = @transform_0, window_bounds = array<i64: 1, 64, 288>}, {transform_indices = @transform_1, window_bounds = array<i64: 1, 64, 288>}, {transform_indices = @transform_2, window_bounds = array<i64: 1, 64, 288>}, {pipeline_mode = #tpu.pipeline_mode<synchronous>, transform_indices = @transform_3, window_bounds = array<i64: 3, 288, 32>}, {pipeline_mode = #tpu.pipeline_mode<synchronous>, transform_indices = @transform_4, window_bounds = array<i64: 1, 32>}, {pipeline_mode = #tpu.pipeline_mode<synchronous>, transform_indices = @transform_5, window_bounds = array<i64: 1, 32>}, {transform_indices = @transform_6, window_bounds = array<i64: 1, 64, 32>}, {transform_indices = @transform_7, window_bounds = array<i64: 1, 64, 32>}]} {
    %c0 = arith.constant 0 : index
    %c0_0 = arith.constant 0 : index
    %c0_1 = arith.constant 0 : index
    %0 = vector.load %arg9[%c0, %c0_0, %c0_1] : memref<1x64x32xbf16, #tpu.memory_space<vmem>>, vector<1x64x32xbf16>
    %1 = vector.shape_cast %0 : vector<1x64x32xbf16> to vector<64x32xbf16>
    %2 = arith.extf %1 : vector<64x32xbf16> to vector<64x32xf32>
    %c0_2 = arith.constant 0 : index
    %c0_3 = arith.constant 0 : index
    %c0_4 = arith.constant 0 : index
    %3 = vector.load %arg3[%c0_2, %c0_3, %c0_4] : memref<1x64x288xbf16, #tpu.memory_space<vmem>>, vector<1x64x288xbf16>
    %4 = vector.shape_cast %3 : vector<1x64x288xbf16> to vector<64x288xbf16>
    %c0_5 = arith.constant 0 : index
    %c0_6 = arith.constant 0 : index
    %c0_7 = arith.constant 0 : index
    %5 = vector.load %arg6[%c0_5, %c0_6, %c0_7] : memref<3x288x32xbf16, #tpu.memory_space<vmem>>, vector<1x288x32xbf16>
    %6 = vector.shape_cast %5 : vector<1x288x32xbf16> to vector<288x32xbf16>
    %cst = arith.constant dense<0.000000e+00> : vector<64x32xf32>
    %7 = tpu.matmul %4, %6, %cst {dimension_numbers = #tpu.dot_dimension_numbers<[1], [0], [0], [1], [0, 0, 1, 1], [], []>} : vector<64x288xbf16>, vector<288x32xbf16>, vector<64x32xf32> -> vector<64x32xf32>
    %c0_8 = arith.constant 0 : index
    %c0_9 = arith.constant 0 : index
    %c0_10 = arith.constant 0 : index
    %8 = vector.load %arg4[%c0_8, %c0_9, %c0_10] : memref<1x64x288xbf16, #tpu.memory_space<vmem>>, vector<1x64x288xbf16>
    %9 = vector.shape_cast %8 : vector<1x64x288xbf16> to vector<64x288xbf16>
    %c1 = arith.constant 1 : index
    %c0_11 = arith.constant 0 : index
    %c0_12 = arith.constant 0 : index
    %10 = vector.load %arg6[%c1, %c0_11, %c0_12] : memref<3x288x32xbf16, #tpu.memory_space<vmem>>, vector<1x288x32xbf16>
    %11 = vector.shape_cast %10 : vector<1x288x32xbf16> to vector<288x32xbf16>
    %cst_13 = arith.constant dense<0.000000e+00> : vector<64x32xf32>
    %12 = tpu.matmul %9, %11, %cst_13 {dimension_numbers = #tpu.dot_dimension_numbers<[1], [0], [0], [1], [0, 0, 1, 1], [], []>} : vector<64x288xbf16>, vector<288x32xbf16>, vector<64x32xf32> -> vector<64x32xf32>
    %13 = arith.addf %7, %12 : vector<64x32xf32>
    %c0_14 = arith.constant 0 : index
    %c0_15 = arith.constant 0 : index
    %c0_16 = arith.constant 0 : index
    %14 = vector.load %arg5[%c0_14, %c0_15, %c0_16] : memref<1x64x288xbf16, #tpu.memory_space<vmem>>, vector<1x64x288xbf16>
    %15 = vector.shape_cast %14 : vector<1x64x288xbf16> to vector<64x288xbf16>
    %c2 = arith.constant 2 : index
    %c0_17 = arith.constant 0 : index
    %c0_18 = arith.constant 0 : index
    %16 = vector.load %arg6[%c2, %c0_17, %c0_18] : memref<3x288x32xbf16, #tpu.memory_space<vmem>>, vector<1x288x32xbf16>
    %17 = vector.shape_cast %16 : vector<1x288x32xbf16> to vector<288x32xbf16>
    %cst_19 = arith.constant dense<0.000000e+00> : vector<64x32xf32>
    %18 = tpu.matmul %15, %17, %cst_19 {dimension_numbers = #tpu.dot_dimension_numbers<[1], [0], [0], [1], [0, 0, 1, 1], [], []>} : vector<64x288xbf16>, vector<288x32xbf16>, vector<64x32xf32> -> vector<64x32xf32>
    %19 = arith.addf %13, %18 : vector<64x32xf32>
    %c0_20 = arith.constant 0 : index
    %c0_21 = arith.constant 0 : index
    %20 = vector.load %arg7[%c0_20, %c0_21] : memref<1x32xf32, #tpu.memory_space<vmem>>, vector<1x32xf32>
    %21 = vector.broadcast %20 : vector<1x32xf32> to vector<64x32xf32>
    %22 = arith.mulf %19, %21 : vector<64x32xf32>
    %c0_22 = arith.constant 0 : index
    %c0_23 = arith.constant 0 : index
    %23 = vector.load %arg8[%c0_22, %c0_23] : memref<1x32xf32, #tpu.memory_space<vmem>>, vector<1x32xf32>
    %24 = vector.broadcast %23 : vector<1x32xf32> to vector<64x32xf32>
    %25 = arith.addf %22, %24 : vector<64x32xf32>
    %cst_24 = arith.constant 0.000000e+00 : f32
    %26 = vector.broadcast %cst_24 : f32 to vector<64x32xf32>
    %27 = arith.cmpf ogt, %25, %26 : vector<64x32xf32>
    %cst_25 = arith.constant 1.000000e-01 : f32
    %28 = vector.broadcast %cst_25 : f32 to vector<64x32xf32>
    %29 = arith.mulf %28, %25 : vector<64x32xf32>
    %30 = arith.select %27, %25, %29 : vector<64x32xi1>, vector<64x32xf32>
    %31 = arith.addf %30, %2 : vector<64x32xf32>
    %32 = arith.truncf %31 : vector<64x32xf32> to vector<64x32xbf16>
    %c0_26 = arith.constant 0 : index
    %c0_27 = arith.constant 0 : index
    %c0_28 = arith.constant 0 : index
    %33 = vector.load %arg10[%c0_26, %c0_27, %c0_28] : memref<1x64x32xbf16, #tpu.memory_space<vmem>>, vector<1x64x32xbf16>
    %34 = vector.shape_cast %33 : vector<1x64x32xbf16> to vector<64x32xbf16>
    %35 = vector.shape_cast %32 : vector<64x32xbf16> to vector<1x64x32xbf16>
    tpu.vector_store %arg10[%c0_26, %c0_27, %c0_28], %35 {strides = array<i32>} : memref<1x64x32xbf16, #tpu.memory_space<vmem>>, vector<1x64x32xbf16>,
    return
  }
  func.func @transform_0(%arg0: i32, %arg1: i32, %arg2: i32) -> (i32, i32, i32) {
    %c10_i32 = arith.constant 10 : i32
    %0 = arith.muli %arg0, %c10_i32 : i32
    %1 = arith.addi %0, %arg1 : i32
    %c0_i32 = arith.constant 0 : i32
    %2 = arith.addi %1, %c0_i32 : i32
    %c0_i32_0 = arith.constant 0 : i32
    %c0_i32_1 = arith.constant 0 : i32
    return %2, %arg2, %c0_i32_0 : i32, i32, i32
  }
  func.func @transform_1(%arg0: i32, %arg1: i32, %arg2: i32) -> (i32, i32, i32) {
    %c10_i32 = arith.constant 10 : i32
    %0 = arith.muli %arg0, %c10_i32 : i32
    %1 = arith.addi %0, %arg1 : i32
    %c1_i32 = arith.constant 1 : i32
    %2 = arith.addi %1, %c1_i32 : i32
    %c0_i32 = arith.constant 0 : i32
    %c0_i32_0 = arith.constant 0 : i32
    return %2, %arg2, %c0_i32 : i32, i32, i32
  }
  func.func @transform_2(%arg0: i32, %arg1: i32, %arg2: i32) -> (i32, i32, i32) {
    %c10_i32 = arith.constant 10 : i32
    %0 = arith.muli %arg0, %c10_i32 : i32
    %1 = arith.addi %0, %arg1 : i32
    %c2_i32 = arith.constant 2 : i32
    %2 = arith.addi %1, %c2_i32 : i32
    %c0_i32 = arith.constant 0 : i32
    %c0_i32_0 = arith.constant 0 : i32
    return %2, %arg2, %c0_i32 : i32, i32, i32
  }
  func.func @transform_3(%arg0: i32, %arg1: i32, %arg2: i32) -> (i32, i32, i32) {
    %c0_i32 = arith.constant 0 : i32
    %c0_i32_0 = arith.constant 0 : i32
    %c0_i32_1 = arith.constant 0 : i32
    %c0_i32_2 = arith.constant 0 : i32
    return %c0_i32, %c0_i32_0, %c0_i32_1 : i32, i32, i32
  }
  func.func @transform_4(%arg0: i32, %arg1: i32, %arg2: i32) -> (i32, i32) {
    %c0_i32 = arith.constant 0 : i32
    %c0_i32_0 = arith.constant 0 : i32
    %c0_i32_1 = arith.constant 0 : i32
    return %c0_i32, %c0_i32_0 : i32, i32
  }
  func.func @transform_5(%arg0: i32, %arg1: i32, %arg2: i32) -> (i32, i32) {
    %c0_i32 = arith.constant 0 : i32
    %c0_i32_0 = arith.constant 0 : i32
    %c0_i32_1 = arith.constant 0 : i32
    return %c0_i32, %c0_i32_0 : i32, i32
  }
  func.func @transform_6(%arg0: i32, %arg1: i32, %arg2: i32) -> (i32, i32, i32) {
    %c8_i32 = arith.constant 8 : i32
    %0 = arith.muli %arg0, %c8_i32 : i32
    %1 = arith.addi %0, %arg1 : i32
    %c0_i32 = arith.constant 0 : i32
    %c0_i32_0 = arith.constant 0 : i32
    return %1, %arg2, %c0_i32 : i32, i32, i32
  }
  func.func @transform_7(%arg0: i32, %arg1: i32, %arg2: i32) -> (i32, i32, i32) {
    %c8_i32 = arith.constant 8 : i32
    %0 = arith.muli %arg0, %c8_i32 : i32
    %1 = arith.addi %0, %arg1 : i32
    %c0_i32 = arith.constant 0 : i32
    %c0_i32_0 = arith.constant 0 : i32
    return %1, %arg2, %c0_i32 : i32, i32, i32
  }
}

module attributes {stable_mosaic.version = 11 : i64} {
  func.func @kernel(%arg0: i32, %arg1: i32, %arg2: i32, %arg3: memref<1x16x288xbf16, #tpu.memory_space<vmem>>, %arg4: memref<1x16x288xbf16, #tpu.memory_space<vmem>>, %arg5: memref<1x16x288xbf16, #tpu.memory_space<vmem>>, %arg6: memref<3x288x64xbf16, #tpu.memory_space<vmem>>, %arg7: memref<1x64xf32, #tpu.memory_space<vmem>>, %arg8: memref<1x64xf32, #tpu.memory_space<vmem>>, %arg9: memref<1x16x64xbf16, #tpu.memory_space<vmem>>) attributes {dimension_semantics = [#tpu.dimension_semantics<parallel>, #tpu.dimension_semantics<parallel>, #tpu.dimension_semantics<parallel>], iteration_bounds = array<i64: 1, 8, 1>, scalar_prefetch = 0 : i64, scratch_operands = 0 : i64, tpu.core_type = #tpu.core_type<tc>, window_params = [{transform_indices = @transform_0, window_bounds = array<i64: 1, 16, 288>}, {transform_indices = @transform_1, window_bounds = array<i64: 1, 16, 288>}, {transform_indices = @transform_2, window_bounds = array<i64: 1, 16, 288>}, {pipeline_mode = #tpu.pipeline_mode<synchronous>, transform_indices = @transform_3, window_bounds = array<i64: 3, 288, 64>}, {pipeline_mode = #tpu.pipeline_mode<synchronous>, transform_indices = @transform_4, window_bounds = array<i64: 1, 64>}, {pipeline_mode = #tpu.pipeline_mode<synchronous>, transform_indices = @transform_5, window_bounds = array<i64: 1, 64>}, {transform_indices = @transform_6, window_bounds = array<i64: 1, 16, 64>}]} {
    %c0 = arith.constant 0 : index
    %c0_0 = arith.constant 0 : index
    %c0_1 = arith.constant 0 : index
    %0 = vector.load %arg3[%c0, %c0_0, %c0_1] : memref<1x16x288xbf16, #tpu.memory_space<vmem>>, vector<1x16x288xbf16>
    %1 = vector.shape_cast %0 : vector<1x16x288xbf16> to vector<16x288xbf16>
    %c0_2 = arith.constant 0 : index
    %c0_3 = arith.constant 0 : index
    %c0_4 = arith.constant 0 : index
    %2 = vector.load %arg6[%c0_2, %c0_3, %c0_4] : memref<3x288x64xbf16, #tpu.memory_space<vmem>>, vector<1x288x64xbf16>
    %3 = vector.shape_cast %2 : vector<1x288x64xbf16> to vector<288x64xbf16>
    %cst = arith.constant dense<0.000000e+00> : vector<16x64xf32>
    %4 = tpu.matmul %1, %3, %cst {dimension_numbers = #tpu.dot_dimension_numbers<[1], [0], [0], [1], [0, 0, 1, 1], [], []>} : vector<16x288xbf16>, vector<288x64xbf16>, vector<16x64xf32> -> vector<16x64xf32>
    %c0_5 = arith.constant 0 : index
    %c0_6 = arith.constant 0 : index
    %c0_7 = arith.constant 0 : index
    %5 = vector.load %arg4[%c0_5, %c0_6, %c0_7] : memref<1x16x288xbf16, #tpu.memory_space<vmem>>, vector<1x16x288xbf16>
    %6 = vector.shape_cast %5 : vector<1x16x288xbf16> to vector<16x288xbf16>
    %c1 = arith.constant 1 : index
    %c0_8 = arith.constant 0 : index
    %c0_9 = arith.constant 0 : index
    %7 = vector.load %arg6[%c1, %c0_8, %c0_9] : memref<3x288x64xbf16, #tpu.memory_space<vmem>>, vector<1x288x64xbf16>
    %8 = vector.shape_cast %7 : vector<1x288x64xbf16> to vector<288x64xbf16>
    %cst_10 = arith.constant dense<0.000000e+00> : vector<16x64xf32>
    %9 = tpu.matmul %6, %8, %cst_10 {dimension_numbers = #tpu.dot_dimension_numbers<[1], [0], [0], [1], [0, 0, 1, 1], [], []>} : vector<16x288xbf16>, vector<288x64xbf16>, vector<16x64xf32> -> vector<16x64xf32>
    %10 = arith.addf %4, %9 : vector<16x64xf32>
    %c0_11 = arith.constant 0 : index
    %c0_12 = arith.constant 0 : index
    %c0_13 = arith.constant 0 : index
    %11 = vector.load %arg5[%c0_11, %c0_12, %c0_13] : memref<1x16x288xbf16, #tpu.memory_space<vmem>>, vector<1x16x288xbf16>
    %12 = vector.shape_cast %11 : vector<1x16x288xbf16> to vector<16x288xbf16>
    %c2 = arith.constant 2 : index
    %c0_14 = arith.constant 0 : index
    %c0_15 = arith.constant 0 : index
    %13 = vector.load %arg6[%c2, %c0_14, %c0_15] : memref<3x288x64xbf16, #tpu.memory_space<vmem>>, vector<1x288x64xbf16>
    %14 = vector.shape_cast %13 : vector<1x288x64xbf16> to vector<288x64xbf16>
    %cst_16 = arith.constant dense<0.000000e+00> : vector<16x64xf32>
    %15 = tpu.matmul %12, %14, %cst_16 {dimension_numbers = #tpu.dot_dimension_numbers<[1], [0], [0], [1], [0, 0, 1, 1], [], []>} : vector<16x288xbf16>, vector<288x64xbf16>, vector<16x64xf32> -> vector<16x64xf32>
    %16 = arith.addf %10, %15 : vector<16x64xf32>
    %c0_17 = arith.constant 0 : index
    %c0_18 = arith.constant 0 : index
    %17 = vector.load %arg7[%c0_17, %c0_18] : memref<1x64xf32, #tpu.memory_space<vmem>>, vector<1x64xf32>
    %18 = vector.broadcast %17 : vector<1x64xf32> to vector<16x64xf32>
    %19 = arith.mulf %16, %18 : vector<16x64xf32>
    %c0_19 = arith.constant 0 : index
    %c0_20 = arith.constant 0 : index
    %20 = vector.load %arg8[%c0_19, %c0_20] : memref<1x64xf32, #tpu.memory_space<vmem>>, vector<1x64xf32>
    %21 = vector.broadcast %20 : vector<1x64xf32> to vector<16x64xf32>
    %22 = arith.addf %19, %21 : vector<16x64xf32>
    %cst_21 = arith.constant 0.000000e+00 : f32
    %23 = vector.broadcast %cst_21 : f32 to vector<16x64xf32>
    %24 = arith.cmpf ogt, %22, %23 : vector<16x64xf32>
    %cst_22 = arith.constant 1.000000e-01 : f32
    %25 = vector.broadcast %cst_22 : f32 to vector<16x64xf32>
    %26 = arith.mulf %25, %22 : vector<16x64xf32>
    %27 = arith.select %24, %22, %26 : vector<16x64xi1>, vector<16x64xf32>
    %28 = arith.truncf %27 : vector<16x64xf32> to vector<16x64xbf16>
    %c0_23 = arith.constant 0 : index
    %c0_24 = arith.constant 0 : index
    %c0_25 = arith.constant 0 : index
    %29 = vector.load %arg9[%c0_23, %c0_24, %c0_25] : memref<1x16x64xbf16, #tpu.memory_space<vmem>>, vector<1x16x64xbf16>
    %30 = vector.shape_cast %29 : vector<1x16x64xbf16> to vector<16x64xbf16>
    %31 = vector.shape_cast %28 : vector<16x64xbf16> to vector<1x16x64xbf16>
    tpu.vector_store %arg9[%c0_23, %c0_24, %c0_25], %31 {strides = array<i32>} : memref<1x16x64xbf16, #tpu.memory_space<vmem>>, vector<1x16x64xbf16>,
    return
  }
  func.func @transform_0(%arg0: i32, %arg1: i32, %arg2: i32) -> (i32, i32, i32) {
    %c10_i32 = arith.constant 10 : i32
    %0 = arith.muli %arg0, %c10_i32 : i32
    %1 = arith.addi %0, %arg1 : i32
    %c0_i32 = arith.constant 0 : i32
    %2 = arith.addi %1, %c0_i32 : i32
    %c0_i32_0 = arith.constant 0 : i32
    %c0_i32_1 = arith.constant 0 : i32
    return %2, %arg2, %c0_i32_0 : i32, i32, i32
  }
  func.func @transform_1(%arg0: i32, %arg1: i32, %arg2: i32) -> (i32, i32, i32) {
    %c10_i32 = arith.constant 10 : i32
    %0 = arith.muli %arg0, %c10_i32 : i32
    %1 = arith.addi %0, %arg1 : i32
    %c1_i32 = arith.constant 1 : i32
    %2 = arith.addi %1, %c1_i32 : i32
    %c0_i32 = arith.constant 0 : i32
    %c0_i32_0 = arith.constant 0 : i32
    return %2, %arg2, %c0_i32 : i32, i32, i32
  }
  func.func @transform_2(%arg0: i32, %arg1: i32, %arg2: i32) -> (i32, i32, i32) {
    %c10_i32 = arith.constant 10 : i32
    %0 = arith.muli %arg0, %c10_i32 : i32
    %1 = arith.addi %0, %arg1 : i32
    %c2_i32 = arith.constant 2 : i32
    %2 = arith.addi %1, %c2_i32 : i32
    %c0_i32 = arith.constant 0 : i32
    %c0_i32_0 = arith.constant 0 : i32
    return %2, %arg2, %c0_i32 : i32, i32, i32
  }
  func.func @transform_3(%arg0: i32, %arg1: i32, %arg2: i32) -> (i32, i32, i32) {
    %c0_i32 = arith.constant 0 : i32
    %c0_i32_0 = arith.constant 0 : i32
    %c0_i32_1 = arith.constant 0 : i32
    %c0_i32_2 = arith.constant 0 : i32
    return %c0_i32, %c0_i32_0, %c0_i32_1 : i32, i32, i32
  }
  func.func @transform_4(%arg0: i32, %arg1: i32, %arg2: i32) -> (i32, i32) {
    %c0_i32 = arith.constant 0 : i32
    %c0_i32_0 = arith.constant 0 : i32
    %c0_i32_1 = arith.constant 0 : i32
    return %c0_i32, %c0_i32_0 : i32, i32
  }
  func.func @transform_5(%arg0: i32, %arg1: i32, %arg2: i32) -> (i32, i32) {
    %c0_i32 = arith.constant 0 : i32
    %c0_i32_0 = arith.constant 0 : i32
    %c0_i32_1 = arith.constant 0 : i32
    return %c0_i32, %c0_i32_0 : i32, i32
  }
  func.func @transform_6(%arg0: i32, %arg1: i32, %arg2: i32) -> (i32, i32, i32) {
    %c8_i32 = arith.constant 8 : i32
    %0 = arith.muli %arg0, %c8_i32 : i32
    %1 = arith.addi %0, %arg1 : i32
    %c0_i32 = arith.constant 0 : i32
    %c0_i32_0 = arith.constant 0 : i32
    return %1, %arg2, %c0_i32 : i32, i32, i32
  }
}

module attributes {stable_mosaic.version = 11 : i64} {
  func.func @kernel(%arg0: i32, %arg1: i32, %arg2: i32, %arg3: memref<1x16x576xbf16, #tpu.memory_space<vmem>>, %arg4: memref<1x16x576xbf16, #tpu.memory_space<vmem>>, %arg5: memref<1x16x576xbf16, #tpu.memory_space<vmem>>, %arg6: memref<3x576x64xbf16, #tpu.memory_space<vmem>>, %arg7: memref<1x64xf32, #tpu.memory_space<vmem>>, %arg8: memref<1x64xf32, #tpu.memory_space<vmem>>, %arg9: memref<1x16x64xbf16, #tpu.memory_space<vmem>>, %arg10: memref<1x16x64xbf16, #tpu.memory_space<vmem>>) attributes {dimension_semantics = [#tpu.dimension_semantics<parallel>, #tpu.dimension_semantics<parallel>, #tpu.dimension_semantics<parallel>], iteration_bounds = array<i64: 1, 8, 1>, scalar_prefetch = 0 : i64, scratch_operands = 0 : i64, tpu.core_type = #tpu.core_type<tc>, window_params = [{transform_indices = @transform_0, window_bounds = array<i64: 1, 16, 576>}, {transform_indices = @transform_1, window_bounds = array<i64: 1, 16, 576>}, {transform_indices = @transform_2, window_bounds = array<i64: 1, 16, 576>}, {pipeline_mode = #tpu.pipeline_mode<synchronous>, transform_indices = @transform_3, window_bounds = array<i64: 3, 576, 64>}, {pipeline_mode = #tpu.pipeline_mode<synchronous>, transform_indices = @transform_4, window_bounds = array<i64: 1, 64>}, {pipeline_mode = #tpu.pipeline_mode<synchronous>, transform_indices = @transform_5, window_bounds = array<i64: 1, 64>}, {transform_indices = @transform_6, window_bounds = array<i64: 1, 16, 64>}, {transform_indices = @transform_7, window_bounds = array<i64: 1, 16, 64>}]} {
    %c0 = arith.constant 0 : index
    %c0_0 = arith.constant 0 : index
    %c0_1 = arith.constant 0 : index
    %0 = vector.load %arg9[%c0, %c0_0, %c0_1] : memref<1x16x64xbf16, #tpu.memory_space<vmem>>, vector<1x16x64xbf16>
    %1 = vector.shape_cast %0 : vector<1x16x64xbf16> to vector<16x64xbf16>
    %2 = arith.extf %1 : vector<16x64xbf16> to vector<16x64xf32>
    %c0_2 = arith.constant 0 : index
    %c0_3 = arith.constant 0 : index
    %c0_4 = arith.constant 0 : index
    %3 = vector.load %arg3[%c0_2, %c0_3, %c0_4] : memref<1x16x576xbf16, #tpu.memory_space<vmem>>, vector<1x16x576xbf16>
    %4 = vector.shape_cast %3 : vector<1x16x576xbf16> to vector<16x576xbf16>
    %c0_5 = arith.constant 0 : index
    %c0_6 = arith.constant 0 : index
    %c0_7 = arith.constant 0 : index
    %5 = vector.load %arg6[%c0_5, %c0_6, %c0_7] : memref<3x576x64xbf16, #tpu.memory_space<vmem>>, vector<1x576x64xbf16>
    %6 = vector.shape_cast %5 : vector<1x576x64xbf16> to vector<576x64xbf16>
    %cst = arith.constant dense<0.000000e+00> : vector<16x64xf32>
    %7 = tpu.matmul %4, %6, %cst {dimension_numbers = #tpu.dot_dimension_numbers<[1], [0], [0], [1], [0, 0, 1, 1], [], []>} : vector<16x576xbf16>, vector<576x64xbf16>, vector<16x64xf32> -> vector<16x64xf32>
    %c0_8 = arith.constant 0 : index
    %c0_9 = arith.constant 0 : index
    %c0_10 = arith.constant 0 : index
    %8 = vector.load %arg4[%c0_8, %c0_9, %c0_10] : memref<1x16x576xbf16, #tpu.memory_space<vmem>>, vector<1x16x576xbf16>
    %9 = vector.shape_cast %8 : vector<1x16x576xbf16> to vector<16x576xbf16>
    %c1 = arith.constant 1 : index
    %c0_11 = arith.constant 0 : index
    %c0_12 = arith.constant 0 : index
    %10 = vector.load %arg6[%c1, %c0_11, %c0_12] : memref<3x576x64xbf16, #tpu.memory_space<vmem>>, vector<1x576x64xbf16>
    %11 = vector.shape_cast %10 : vector<1x576x64xbf16> to vector<576x64xbf16>
    %cst_13 = arith.constant dense<0.000000e+00> : vector<16x64xf32>
    %12 = tpu.matmul %9, %11, %cst_13 {dimension_numbers = #tpu.dot_dimension_numbers<[1], [0], [0], [1], [0, 0, 1, 1], [], []>} : vector<16x576xbf16>, vector<576x64xbf16>, vector<16x64xf32> -> vector<16x64xf32>
    %13 = arith.addf %7, %12 : vector<16x64xf32>
    %c0_14 = arith.constant 0 : index
    %c0_15 = arith.constant 0 : index
    %c0_16 = arith.constant 0 : index
    %14 = vector.load %arg5[%c0_14, %c0_15, %c0_16] : memref<1x16x576xbf16, #tpu.memory_space<vmem>>, vector<1x16x576xbf16>
    %15 = vector.shape_cast %14 : vector<1x16x576xbf16> to vector<16x576xbf16>
    %c2 = arith.constant 2 : index
    %c0_17 = arith.constant 0 : index
    %c0_18 = arith.constant 0 : index
    %16 = vector.load %arg6[%c2, %c0_17, %c0_18] : memref<3x576x64xbf16, #tpu.memory_space<vmem>>, vector<1x576x64xbf16>
    %17 = vector.shape_cast %16 : vector<1x576x64xbf16> to vector<576x64xbf16>
    %cst_19 = arith.constant dense<0.000000e+00> : vector<16x64xf32>
    %18 = tpu.matmul %15, %17, %cst_19 {dimension_numbers = #tpu.dot_dimension_numbers<[1], [0], [0], [1], [0, 0, 1, 1], [], []>} : vector<16x576xbf16>, vector<576x64xbf16>, vector<16x64xf32> -> vector<16x64xf32>
    %19 = arith.addf %13, %18 : vector<16x64xf32>
    %c0_20 = arith.constant 0 : index
    %c0_21 = arith.constant 0 : index
    %20 = vector.load %arg7[%c0_20, %c0_21] : memref<1x64xf32, #tpu.memory_space<vmem>>, vector<1x64xf32>
    %21 = vector.broadcast %20 : vector<1x64xf32> to vector<16x64xf32>
    %22 = arith.mulf %19, %21 : vector<16x64xf32>
    %c0_22 = arith.constant 0 : index
    %c0_23 = arith.constant 0 : index
    %23 = vector.load %arg8[%c0_22, %c0_23] : memref<1x64xf32, #tpu.memory_space<vmem>>, vector<1x64xf32>
    %24 = vector.broadcast %23 : vector<1x64xf32> to vector<16x64xf32>
    %25 = arith.addf %22, %24 : vector<16x64xf32>
    %cst_24 = arith.constant 0.000000e+00 : f32
    %26 = vector.broadcast %cst_24 : f32 to vector<16x64xf32>
    %27 = arith.cmpf ogt, %25, %26 : vector<16x64xf32>
    %cst_25 = arith.constant 1.000000e-01 : f32
    %28 = vector.broadcast %cst_25 : f32 to vector<16x64xf32>
    %29 = arith.mulf %28, %25 : vector<16x64xf32>
    %30 = arith.select %27, %25, %29 : vector<16x64xi1>, vector<16x64xf32>
    %31 = arith.addf %30, %2 : vector<16x64xf32>
    %32 = arith.truncf %31 : vector<16x64xf32> to vector<16x64xbf16>
    %c0_26 = arith.constant 0 : index
    %c0_27 = arith.constant 0 : index
    %c0_28 = arith.constant 0 : index
    %33 = vector.load %arg10[%c0_26, %c0_27, %c0_28] : memref<1x16x64xbf16, #tpu.memory_space<vmem>>, vector<1x16x64xbf16>
    %34 = vector.shape_cast %33 : vector<1x16x64xbf16> to vector<16x64xbf16>
    %35 = vector.shape_cast %32 : vector<16x64xbf16> to vector<1x16x64xbf16>
    tpu.vector_store %arg10[%c0_26, %c0_27, %c0_28], %35 {strides = array<i32>} : memref<1x16x64xbf16, #tpu.memory_space<vmem>>, vector<1x16x64xbf16>,
    return
  }
  func.func @transform_0(%arg0: i32, %arg1: i32, %arg2: i32) -> (i32, i32, i32) {
    %c10_i32 = arith.constant 10 : i32
    %0 = arith.muli %arg0, %c10_i32 : i32
    %1 = arith.addi %0, %arg1 : i32
    %c0_i32 = arith.constant 0 : i32
    %2 = arith.addi %1, %c0_i32 : i32
    %c0_i32_0 = arith.constant 0 : i32
    %c0_i32_1 = arith.constant 0 : i32
    return %2, %arg2, %c0_i32_0 : i32, i32, i32
  }
  func.func @transform_1(%arg0: i32, %arg1: i32, %arg2: i32) -> (i32, i32, i32) {
    %c10_i32 = arith.constant 10 : i32
    %0 = arith.muli %arg0, %c10_i32 : i32
    %1 = arith.addi %0, %arg1 : i32
    %c1_i32 = arith.constant 1 : i32
    %2 = arith.addi %1, %c1_i32 : i32
    %c0_i32 = arith.constant 0 : i32
    %c0_i32_0 = arith.constant 0 : i32
    return %2, %arg2, %c0_i32 : i32, i32, i32
  }
  func.func @transform_2(%arg0: i32, %arg1: i32, %arg2: i32) -> (i32, i32, i32) {
    %c10_i32 = arith.constant 10 : i32
    %0 = arith.muli %arg0, %c10_i32 : i32
    %1 = arith.addi %0, %arg1 : i32
    %c2_i32 = arith.constant 2 : i32
    %2 = arith.addi %1, %c2_i32 : i32
    %c0_i32 = arith.constant 0 : i32
    %c0_i32_0 = arith.constant 0 : i32
    return %2, %arg2, %c0_i32 : i32, i32, i32
  }
  func.func @transform_3(%arg0: i32, %arg1: i32, %arg2: i32) -> (i32, i32, i32) {
    %c0_i32 = arith.constant 0 : i32
    %c0_i32_0 = arith.constant 0 : i32
    %c0_i32_1 = arith.constant 0 : i32
    %c0_i32_2 = arith.constant 0 : i32
    return %c0_i32, %c0_i32_0, %c0_i32_1 : i32, i32, i32
  }
  func.func @transform_4(%arg0: i32, %arg1: i32, %arg2: i32) -> (i32, i32) {
    %c0_i32 = arith.constant 0 : i32
    %c0_i32_0 = arith.constant 0 : i32
    %c0_i32_1 = arith.constant 0 : i32
    return %c0_i32, %c0_i32_0 : i32, i32
  }
  func.func @transform_5(%arg0: i32, %arg1: i32, %arg2: i32) -> (i32, i32) {
    %c0_i32 = arith.constant 0 : i32
    %c0_i32_0 = arith.constant 0 : i32
    %c0_i32_1 = arith.constant 0 : i32
    return %c0_i32, %c0_i32_0 : i32, i32
  }
  func.func @transform_6(%arg0: i32, %arg1: i32, %arg2: i32) -> (i32, i32, i32) {
    %c8_i32 = arith.constant 8 : i32
    %0 = arith.muli %arg0, %c8_i32 : i32
    %1 = arith.addi %0, %arg1 : i32
    %c0_i32 = arith.constant 0 : i32
    %c0_i32_0 = arith.constant 0 : i32
    return %1, %arg2, %c0_i32 : i32, i32, i32
  }
  func.func @transform_7(%arg0: i32, %arg1: i32, %arg2: i32) -> (i32, i32, i32) {
    %c8_i32 = arith.constant 8 : i32
    %0 = arith.muli %arg0, %c8_i32 : i32
    %1 = arith.addi %0, %arg1 : i32
    %c0_i32 = arith.constant 0 : i32
    %c0_i32_0 = arith.constant 0 : i32
    return %1, %arg2, %c0_i32 : i32, i32, i32
  }
}

module attributes {stable_mosaic.version = 11 : i64} {
  func.func @kernel(%arg0: i32, %arg1: i32, %arg2: i32, %arg3: memref<1x4x576xbf16, #tpu.memory_space<vmem>>, %arg4: memref<1x4x576xbf16, #tpu.memory_space<vmem>>, %arg5: memref<1x4x576xbf16, #tpu.memory_space<vmem>>, %arg6: memref<3x576x128xbf16, #tpu.memory_space<vmem>>, %arg7: memref<1x128xf32, #tpu.memory_space<vmem>>, %arg8: memref<1x128xf32, #tpu.memory_space<vmem>>, %arg9: memref<1x4x128xbf16, #tpu.memory_space<vmem>>) attributes {dimension_semantics = [#tpu.dimension_semantics<parallel>, #tpu.dimension_semantics<parallel>, #tpu.dimension_semantics<parallel>], iteration_bounds = array<i64: 1, 8, 1>, scalar_prefetch = 0 : i64, scratch_operands = 0 : i64, tpu.core_type = #tpu.core_type<tc>, window_params = [{transform_indices = @transform_0, window_bounds = array<i64: 1, 4, 576>}, {transform_indices = @transform_1, window_bounds = array<i64: 1, 4, 576>}, {transform_indices = @transform_2, window_bounds = array<i64: 1, 4, 576>}, {pipeline_mode = #tpu.pipeline_mode<synchronous>, transform_indices = @transform_3, window_bounds = array<i64: 3, 576, 128>}, {pipeline_mode = #tpu.pipeline_mode<synchronous>, transform_indices = @transform_4, window_bounds = array<i64: 1, 128>}, {pipeline_mode = #tpu.pipeline_mode<synchronous>, transform_indices = @transform_5, window_bounds = array<i64: 1, 128>}, {transform_indices = @transform_6, window_bounds = array<i64: 1, 4, 128>}]} {
    %c0 = arith.constant 0 : index
    %c0_0 = arith.constant 0 : index
    %c0_1 = arith.constant 0 : index
    %0 = vector.load %arg3[%c0, %c0_0, %c0_1] : memref<1x4x576xbf16, #tpu.memory_space<vmem>>, vector<1x4x576xbf16>
    %1 = vector.shape_cast %0 : vector<1x4x576xbf16> to vector<4x576xbf16>
    %c0_2 = arith.constant 0 : index
    %c0_3 = arith.constant 0 : index
    %c0_4 = arith.constant 0 : index
    %2 = vector.load %arg6[%c0_2, %c0_3, %c0_4] : memref<3x576x128xbf16, #tpu.memory_space<vmem>>, vector<1x576x128xbf16>
    %3 = vector.shape_cast %2 : vector<1x576x128xbf16> to vector<576x128xbf16>
    %cst = arith.constant dense<0.000000e+00> : vector<4x128xf32>
    %4 = tpu.matmul %1, %3, %cst {dimension_numbers = #tpu.dot_dimension_numbers<[1], [0], [0], [1], [0, 0, 1, 1], [], []>} : vector<4x576xbf16>, vector<576x128xbf16>, vector<4x128xf32> -> vector<4x128xf32>
    %c0_5 = arith.constant 0 : index
    %c0_6 = arith.constant 0 : index
    %c0_7 = arith.constant 0 : index
    %5 = vector.load %arg4[%c0_5, %c0_6, %c0_7] : memref<1x4x576xbf16, #tpu.memory_space<vmem>>, vector<1x4x576xbf16>
    %6 = vector.shape_cast %5 : vector<1x4x576xbf16> to vector<4x576xbf16>
    %c1 = arith.constant 1 : index
    %c0_8 = arith.constant 0 : index
    %c0_9 = arith.constant 0 : index
    %7 = vector.load %arg6[%c1, %c0_8, %c0_9] : memref<3x576x128xbf16, #tpu.memory_space<vmem>>, vector<1x576x128xbf16>
    %8 = vector.shape_cast %7 : vector<1x576x128xbf16> to vector<576x128xbf16>
    %cst_10 = arith.constant dense<0.000000e+00> : vector<4x128xf32>
    %9 = tpu.matmul %6, %8, %cst_10 {dimension_numbers = #tpu.dot_dimension_numbers<[1], [0], [0], [1], [0, 0, 1, 1], [], []>} : vector<4x576xbf16>, vector<576x128xbf16>, vector<4x128xf32> -> vector<4x128xf32>
    %10 = arith.addf %4, %9 : vector<4x128xf32>
    %c0_11 = arith.constant 0 : index
    %c0_12 = arith.constant 0 : index
    %c0_13 = arith.constant 0 : index
    %11 = vector.load %arg5[%c0_11, %c0_12, %c0_13] : memref<1x4x576xbf16, #tpu.memory_space<vmem>>, vector<1x4x576xbf16>
    %12 = vector.shape_cast %11 : vector<1x4x576xbf16> to vector<4x576xbf16>
    %c2 = arith.constant 2 : index
    %c0_14 = arith.constant 0 : index
    %c0_15 = arith.constant 0 : index
    %13 = vector.load %arg6[%c2, %c0_14, %c0_15] : memref<3x576x128xbf16, #tpu.memory_space<vmem>>, vector<1x576x128xbf16>
    %14 = vector.shape_cast %13 : vector<1x576x128xbf16> to vector<576x128xbf16>
    %cst_16 = arith.constant dense<0.000000e+00> : vector<4x128xf32>
    %15 = tpu.matmul %12, %14, %cst_16 {dimension_numbers = #tpu.dot_dimension_numbers<[1], [0], [0], [1], [0, 0, 1, 1], [], []>} : vector<4x576xbf16>, vector<576x128xbf16>, vector<4x128xf32> -> vector<4x128xf32>
    %16 = arith.addf %10, %15 : vector<4x128xf32>
    %c0_17 = arith.constant 0 : index
    %c0_18 = arith.constant 0 : index
    %17 = vector.load %arg7[%c0_17, %c0_18] : memref<1x128xf32, #tpu.memory_space<vmem>>, vector<1x128xf32>
    %18 = vector.broadcast %17 : vector<1x128xf32> to vector<4x128xf32>
    %19 = arith.mulf %16, %18 : vector<4x128xf32>
    %c0_19 = arith.constant 0 : index
    %c0_20 = arith.constant 0 : index
    %20 = vector.load %arg8[%c0_19, %c0_20] : memref<1x128xf32, #tpu.memory_space<vmem>>, vector<1x128xf32>
    %21 = vector.broadcast %20 : vector<1x128xf32> to vector<4x128xf32>
    %22 = arith.addf %19, %21 : vector<4x128xf32>
    %cst_21 = arith.constant 0.000000e+00 : f32
    %23 = vector.broadcast %cst_21 : f32 to vector<4x128xf32>
    %24 = arith.cmpf ogt, %22, %23 : vector<4x128xf32>
    %cst_22 = arith.constant 1.000000e-01 : f32
    %25 = vector.broadcast %cst_22 : f32 to vector<4x128xf32>
    %26 = arith.mulf %25, %22 : vector<4x128xf32>
    %27 = arith.select %24, %22, %26 : vector<4x128xi1>, vector<4x128xf32>
    %28 = arith.truncf %27 : vector<4x128xf32> to vector<4x128xbf16>
    %c0_23 = arith.constant 0 : index
    %c0_24 = arith.constant 0 : index
    %c0_25 = arith.constant 0 : index
    %29 = vector.load %arg9[%c0_23, %c0_24, %c0_25] : memref<1x4x128xbf16, #tpu.memory_space<vmem>>, vector<1x4x128xbf16>
    %30 = vector.shape_cast %29 : vector<1x4x128xbf16> to vector<4x128xbf16>
    %31 = vector.shape_cast %28 : vector<4x128xbf16> to vector<1x4x128xbf16>
    tpu.vector_store %arg9[%c0_23, %c0_24, %c0_25], %31 {strides = array<i32>} : memref<1x4x128xbf16, #tpu.memory_space<vmem>>, vector<1x4x128xbf16>,
    return
  }
  func.func @transform_0(%arg0: i32, %arg1: i32, %arg2: i32) -> (i32, i32, i32) {
    %c10_i32 = arith.constant 10 : i32
    %0 = arith.muli %arg0, %c10_i32 : i32
    %1 = arith.addi %0, %arg1 : i32
    %c0_i32 = arith.constant 0 : i32
    %2 = arith.addi %1, %c0_i32 : i32
    %c0_i32_0 = arith.constant 0 : i32
    %c0_i32_1 = arith.constant 0 : i32
    return %2, %arg2, %c0_i32_0 : i32, i32, i32
  }
  func.func @transform_1(%arg0: i32, %arg1: i32, %arg2: i32) -> (i32, i32, i32) {
    %c10_i32 = arith.constant 10 : i32
    %0 = arith.muli %arg0, %c10_i32 : i32
    %1 = arith.addi %0, %arg1 : i32
    %c1_i32 = arith.constant 1 : i32
    %2 = arith.addi %1, %c1_i32 : i32
    %c0_i32 = arith.constant 0 : i32
    %c0_i32_0 = arith.constant 0 : i32
    return %2, %arg2, %c0_i32 : i32, i32, i32
  }
  func.func @transform_2(%arg0: i32, %arg1: i32, %arg2: i32) -> (i32, i32, i32) {
    %c10_i32 = arith.constant 10 : i32
    %0 = arith.muli %arg0, %c10_i32 : i32
    %1 = arith.addi %0, %arg1 : i32
    %c2_i32 = arith.constant 2 : i32
    %2 = arith.addi %1, %c2_i32 : i32
    %c0_i32 = arith.constant 0 : i32
    %c0_i32_0 = arith.constant 0 : i32
    return %2, %arg2, %c0_i32 : i32, i32, i32
  }
  func.func @transform_3(%arg0: i32, %arg1: i32, %arg2: i32) -> (i32, i32, i32) {
    %c0_i32 = arith.constant 0 : i32
    %c0_i32_0 = arith.constant 0 : i32
    %c0_i32_1 = arith.constant 0 : i32
    %c0_i32_2 = arith.constant 0 : i32
    return %c0_i32, %c0_i32_0, %c0_i32_1 : i32, i32, i32
  }
  func.func @transform_4(%arg0: i32, %arg1: i32, %arg2: i32) -> (i32, i32) {
    %c0_i32 = arith.constant 0 : i32
    %c0_i32_0 = arith.constant 0 : i32
    %c0_i32_1 = arith.constant 0 : i32
    return %c0_i32, %c0_i32_0 : i32, i32
  }
  func.func @transform_5(%arg0: i32, %arg1: i32, %arg2: i32) -> (i32, i32) {
    %c0_i32 = arith.constant 0 : i32
    %c0_i32_0 = arith.constant 0 : i32
    %c0_i32_1 = arith.constant 0 : i32
    return %c0_i32, %c0_i32_0 : i32, i32
  }
  func.func @transform_6(%arg0: i32, %arg1: i32, %arg2: i32) -> (i32, i32, i32) {
    %c8_i32 = arith.constant 8 : i32
    %0 = arith.muli %arg0, %c8_i32 : i32
    %1 = arith.addi %0, %arg1 : i32
    %c0_i32 = arith.constant 0 : i32
    %c0_i32_0 = arith.constant 0 : i32
    return %1, %arg2, %c0_i32 : i32, i32, i32
  }
}

module attributes {stable_mosaic.version = 11 : i64} {
  func.func @kernel(%arg0: i32, %arg1: i32, %arg2: i32, %arg3: memref<1x4x1152xbf16, #tpu.memory_space<vmem>>, %arg4: memref<1x4x1152xbf16, #tpu.memory_space<vmem>>, %arg5: memref<1x4x1152xbf16, #tpu.memory_space<vmem>>, %arg6: memref<3x1152x128xbf16, #tpu.memory_space<vmem>>, %arg7: memref<1x128xf32, #tpu.memory_space<vmem>>, %arg8: memref<1x128xf32, #tpu.memory_space<vmem>>, %arg9: memref<1x4x128xbf16, #tpu.memory_space<vmem>>, %arg10: memref<1x4x128xbf16, #tpu.memory_space<vmem>>) attributes {dimension_semantics = [#tpu.dimension_semantics<parallel>, #tpu.dimension_semantics<parallel>, #tpu.dimension_semantics<parallel>], iteration_bounds = array<i64: 1, 8, 1>, scalar_prefetch = 0 : i64, scratch_operands = 0 : i64, tpu.core_type = #tpu.core_type<tc>, window_params = [{transform_indices = @transform_0, window_bounds = array<i64: 1, 4, 1152>}, {transform_indices = @transform_1, window_bounds = array<i64: 1, 4, 1152>}, {transform_indices = @transform_2, window_bounds = array<i64: 1, 4, 1152>}, {pipeline_mode = #tpu.pipeline_mode<synchronous>, transform_indices = @transform_3, window_bounds = array<i64: 3, 1152, 128>}, {pipeline_mode = #tpu.pipeline_mode<synchronous>, transform_indices = @transform_4, window_bounds = array<i64: 1, 128>}, {pipeline_mode = #tpu.pipeline_mode<synchronous>, transform_indices = @transform_5, window_bounds = array<i64: 1, 128>}, {transform_indices = @transform_6, window_bounds = array<i64: 1, 4, 128>}, {transform_indices = @transform_7, window_bounds = array<i64: 1, 4, 128>}]} {
    %c0 = arith.constant 0 : index
    %c0_0 = arith.constant 0 : index
    %c0_1 = arith.constant 0 : index
    %0 = vector.load %arg9[%c0, %c0_0, %c0_1] : memref<1x4x128xbf16, #tpu.memory_space<vmem>>, vector<1x4x128xbf16>
    %1 = vector.shape_cast %0 : vector<1x4x128xbf16> to vector<4x128xbf16>
    %2 = arith.extf %1 : vector<4x128xbf16> to vector<4x128xf32>
    %c0_2 = arith.constant 0 : index
    %c0_3 = arith.constant 0 : index
    %c0_4 = arith.constant 0 : index
    %3 = vector.load %arg3[%c0_2, %c0_3, %c0_4] : memref<1x4x1152xbf16, #tpu.memory_space<vmem>>, vector<1x4x1152xbf16>
    %4 = vector.shape_cast %3 : vector<1x4x1152xbf16> to vector<4x1152xbf16>
    %c0_5 = arith.constant 0 : index
    %c0_6 = arith.constant 0 : index
    %c0_7 = arith.constant 0 : index
    %5 = vector.load %arg6[%c0_5, %c0_6, %c0_7] : memref<3x1152x128xbf16, #tpu.memory_space<vmem>>, vector<1x1152x128xbf16>
    %6 = vector.shape_cast %5 : vector<1x1152x128xbf16> to vector<1152x128xbf16>
    %cst = arith.constant dense<0.000000e+00> : vector<4x128xf32>
    %7 = tpu.matmul %4, %6, %cst {dimension_numbers = #tpu.dot_dimension_numbers<[1], [0], [0], [1], [0, 0, 1, 1], [], []>} : vector<4x1152xbf16>, vector<1152x128xbf16>, vector<4x128xf32> -> vector<4x128xf32>
    %c0_8 = arith.constant 0 : index
    %c0_9 = arith.constant 0 : index
    %c0_10 = arith.constant 0 : index
    %8 = vector.load %arg4[%c0_8, %c0_9, %c0_10] : memref<1x4x1152xbf16, #tpu.memory_space<vmem>>, vector<1x4x1152xbf16>
    %9 = vector.shape_cast %8 : vector<1x4x1152xbf16> to vector<4x1152xbf16>
    %c1 = arith.constant 1 : index
    %c0_11 = arith.constant 0 : index
    %c0_12 = arith.constant 0 : index
    %10 = vector.load %arg6[%c1, %c0_11, %c0_12] : memref<3x1152x128xbf16, #tpu.memory_space<vmem>>, vector<1x1152x128xbf16>
    %11 = vector.shape_cast %10 : vector<1x1152x128xbf16> to vector<1152x128xbf16>
    %cst_13 = arith.constant dense<0.000000e+00> : vector<4x128xf32>
    %12 = tpu.matmul %9, %11, %cst_13 {dimension_numbers = #tpu.dot_dimension_numbers<[1], [0], [0], [1], [0, 0, 1, 1], [], []>} : vector<4x1152xbf16>, vector<1152x128xbf16>, vector<4x128xf32> -> vector<4x128xf32>
    %13 = arith.addf %7, %12 : vector<4x128xf32>
    %c0_14 = arith.constant 0 : index
    %c0_15 = arith.constant 0 : index
    %c0_16 = arith.constant 0 : index
    %14 = vector.load %arg5[%c0_14, %c0_15, %c0_16] : memref<1x4x1152xbf16, #tpu.memory_space<vmem>>, vector<1x4x1152xbf16>
    %15 = vector.shape_cast %14 : vector<1x4x1152xbf16> to vector<4x1152xbf16>
    %c2 = arith.constant 2 : index
    %c0_17 = arith.constant 0 : index
    %c0_18 = arith.constant 0 : index
    %16 = vector.load %arg6[%c2, %c0_17, %c0_18] : memref<3x1152x128xbf16, #tpu.memory_space<vmem>>, vector<1x1152x128xbf16>
    %17 = vector.shape_cast %16 : vector<1x1152x128xbf16> to vector<1152x128xbf16>
    %cst_19 = arith.constant dense<0.000000e+00> : vector<4x128xf32>
    %18 = tpu.matmul %15, %17, %cst_19 {dimension_numbers = #tpu.dot_dimension_numbers<[1], [0], [0], [1], [0, 0, 1, 1], [], []>} : vector<4x1152xbf16>, vector<1152x128xbf16>, vector<4x128xf32> -> vector<4x128xf32>
    %19 = arith.addf %13, %18 : vector<4x128xf32>
    %c0_20 = arith.constant 0 : index
    %c0_21 = arith.constant 0 : index
    %20 = vector.load %arg7[%c0_20, %c0_21] : memref<1x128xf32, #tpu.memory_space<vmem>>, vector<1x128xf32>
    %21 = vector.broadcast %20 : vector<1x128xf32> to vector<4x128xf32>
    %22 = arith.mulf %19, %21 : vector<4x128xf32>
    %c0_22 = arith.constant 0 : index
    %c0_23 = arith.constant 0 : index
    %23 = vector.load %arg8[%c0_22, %c0_23] : memref<1x128xf32, #tpu.memory_space<vmem>>, vector<1x128xf32>
    %24 = vector.broadcast %23 : vector<1x128xf32> to vector<4x128xf32>
    %25 = arith.addf %22, %24 : vector<4x128xf32>
    %cst_24 = arith.constant 0.000000e+00 : f32
    %26 = vector.broadcast %cst_24 : f32 to vector<4x128xf32>
    %27 = arith.cmpf ogt, %25, %26 : vector<4x128xf32>
    %cst_25 = arith.constant 1.000000e-01 : f32
    %28 = vector.broadcast %cst_25 : f32 to vector<4x128xf32>
    %29 = arith.mulf %28, %25 : vector<4x128xf32>
    %30 = arith.select %27, %25, %29 : vector<4x128xi1>, vector<4x128xf32>
    %31 = arith.addf %30, %2 : vector<4x128xf32>
    %32 = arith.truncf %31 : vector<4x128xf32> to vector<4x128xbf16>
    %c0_26 = arith.constant 0 : index
    %c0_27 = arith.constant 0 : index
    %c0_28 = arith.constant 0 : index
    %33 = vector.load %arg10[%c0_26, %c0_27, %c0_28] : memref<1x4x128xbf16, #tpu.memory_space<vmem>>, vector<1x4x128xbf16>
    %34 = vector.shape_cast %33 : vector<1x4x128xbf16> to vector<4x128xbf16>
    %35 = vector.shape_cast %32 : vector<4x128xbf16> to vector<1x4x128xbf16>
    tpu.vector_store %arg10[%c0_26, %c0_27, %c0_28], %35 {strides = array<i32>} : memref<1x4x128xbf16, #tpu.memory_space<vmem>>, vector<1x4x128xbf16>,
    return
  }
  func.func @transform_0(%arg0: i32, %arg1: i32, %arg2: i32) -> (i32, i32, i32) {
    %c10_i32 = arith.constant 10 : i32
    %0 = arith.muli %arg0, %c10_i32 : i32
    %1 = arith.addi %0, %arg1 : i32
    %c0_i32 = arith.constant 0 : i32
    %2 = arith.addi %1, %c0_i32 : i32
    %c0_i32_0 = arith.constant 0 : i32
    %c0_i32_1 = arith.constant 0 : i32
    return %2, %arg2, %c0_i32_0 : i32, i32, i32
  }
  func.func @transform_1(%arg0: i32, %arg1: i32, %arg2: i32) -> (i32, i32, i32) {
    %c10_i32 = arith.constant 10 : i32
    %0 = arith.muli %arg0, %c10_i32 : i32
    %1 = arith.addi %0, %arg1 : i32
    %c1_i32 = arith.constant 1 : i32
    %2 = arith.addi %1, %c1_i32 : i32
    %c0_i32 = arith.constant 0 : i32
    %c0_i32_0 = arith.constant 0 : i32
    return %2, %arg2, %c0_i32 : i32, i32, i32
  }
  func.func @transform_2(%arg0: i32, %arg1: i32, %arg2: i32) -> (i32, i32, i32) {
    %c10_i32 = arith.constant 10 : i32
    %0 = arith.muli %arg0, %c10_i32 : i32
    %1 = arith.addi %0, %arg1 : i32
    %c2_i32 = arith.constant 2 : i32
    %2 = arith.addi %1, %c2_i32 : i32
    %c0_i32 = arith.constant 0 : i32
    %c0_i32_0 = arith.constant 0 : i32
    return %2, %arg2, %c0_i32 : i32, i32, i32
  }
  func.func @transform_3(%arg0: i32, %arg1: i32, %arg2: i32) -> (i32, i32, i32) {
    %c0_i32 = arith.constant 0 : i32
    %c0_i32_0 = arith.constant 0 : i32
    %c0_i32_1 = arith.constant 0 : i32
    %c0_i32_2 = arith.constant 0 : i32
    return %c0_i32, %c0_i32_0, %c0_i32_1 : i32, i32, i32
  }
  func.func @transform_4(%arg0: i32, %arg1: i32, %arg2: i32) -> (i32, i32) {
    %c0_i32 = arith.constant 0 : i32
    %c0_i32_0 = arith.constant 0 : i32
    %c0_i32_1 = arith.constant 0 : i32
    return %c0_i32, %c0_i32_0 : i32, i32
  }
  func.func @transform_5(%arg0: i32, %arg1: i32, %arg2: i32) -> (i32, i32) {
    %c0_i32 = arith.constant 0 : i32
    %c0_i32_0 = arith.constant 0 : i32
    %c0_i32_1 = arith.constant 0 : i32
    return %c0_i32, %c0_i32_0 : i32, i32
  }
  func.func @transform_6(%arg0: i32, %arg1: i32, %arg2: i32) -> (i32, i32, i32) {
    %c8_i32 = arith.constant 8 : i32
    %0 = arith.muli %arg0, %c8_i32 : i32
    %1 = arith.addi %0, %arg1 : i32
    %c0_i32 = arith.constant 0 : i32
    %c0_i32_0 = arith.constant 0 : i32
    return %1, %arg2, %c0_i32 : i32, i32, i32
  }
  func.func @transform_7(%arg0: i32, %arg1: i32, %arg2: i32) -> (i32, i32, i32) {
    %c8_i32 = arith.constant 8 : i32
    %0 = arith.muli %arg0, %c8_i32 : i32
    %1 = arith.addi %0, %arg1 : i32
    %c0_i32 = arith.constant 0 : i32
    %c0_i32_0 = arith.constant 0 : i32
    return %1, %arg2, %c0_i32 : i32, i32, i32
  }
}

module attributes {stable_mosaic.version = 11 : i64} {
  func.func @kernel(%arg0: i32, %arg1: i32, %arg2: i32, %arg3: memref<1x4x128xbf16, #tpu.memory_space<vmem>>, %arg4: memref<1x4x128xbf16, #tpu.memory_space<vmem>>, %arg5: memref<1x4x128xbf16, #tpu.memory_space<vmem>>, %arg6: memref<3x128x64xbf16, #tpu.memory_space<vmem>>, %arg7: memref<1x64xf32, #tpu.memory_space<vmem>>, %arg8: memref<1x64xf32, #tpu.memory_space<vmem>>, %arg9: memref<1x4x64xbf16, #tpu.memory_space<vmem>>, %arg10: memref<1x4x64xbf16, #tpu.memory_space<vmem>>) attributes {dimension_semantics = [#tpu.dimension_semantics<parallel>, #tpu.dimension_semantics<parallel>, #tpu.dimension_semantics<parallel>], iteration_bounds = array<i64: 1, 8, 1>, scalar_prefetch = 0 : i64, scratch_operands = 0 : i64, tpu.core_type = #tpu.core_type<tc>, window_params = [{transform_indices = @transform_0, window_bounds = array<i64: 1, 4, 128>}, {transform_indices = @transform_1, window_bounds = array<i64: 1, 4, 128>}, {transform_indices = @transform_2, window_bounds = array<i64: 1, 4, 128>}, {pipeline_mode = #tpu.pipeline_mode<synchronous>, transform_indices = @transform_3, window_bounds = array<i64: 3, 128, 64>}, {pipeline_mode = #tpu.pipeline_mode<synchronous>, transform_indices = @transform_4, window_bounds = array<i64: 1, 64>}, {pipeline_mode = #tpu.pipeline_mode<synchronous>, transform_indices = @transform_5, window_bounds = array<i64: 1, 64>}, {transform_indices = @transform_6, window_bounds = array<i64: 1, 4, 64>}, {transform_indices = @transform_7, window_bounds = array<i64: 1, 4, 64>}]} {
    %c0 = arith.constant 0 : index
    %c0_0 = arith.constant 0 : index
    %c0_1 = arith.constant 0 : index
    %0 = vector.load %arg9[%c0, %c0_0, %c0_1] : memref<1x4x64xbf16, #tpu.memory_space<vmem>>, vector<1x4x64xbf16>
    %1 = vector.shape_cast %0 : vector<1x4x64xbf16> to vector<4x64xbf16>
    %2 = arith.extf %1 : vector<4x64xbf16> to vector<4x64xf32>
    %c0_2 = arith.constant 0 : index
    %c0_3 = arith.constant 0 : index
    %c0_4 = arith.constant 0 : index
    %3 = vector.load %arg3[%c0_2, %c0_3, %c0_4] : memref<1x4x128xbf16, #tpu.memory_space<vmem>>, vector<1x4x128xbf16>
    %4 = vector.shape_cast %3 : vector<1x4x128xbf16> to vector<4x128xbf16>
    %c0_5 = arith.constant 0 : index
    %c0_6 = arith.constant 0 : index
    %c0_7 = arith.constant 0 : index
    %5 = vector.load %arg6[%c0_5, %c0_6, %c0_7] : memref<3x128x64xbf16, #tpu.memory_space<vmem>>, vector<1x128x64xbf16>
    %6 = vector.shape_cast %5 : vector<1x128x64xbf16> to vector<128x64xbf16>
    %cst = arith.constant dense<0.000000e+00> : vector<4x64xf32>
    %7 = tpu.matmul %4, %6, %cst {dimension_numbers = #tpu.dot_dimension_numbers<[1], [0], [0], [1], [0, 0, 1, 1], [], []>} : vector<4x128xbf16>, vector<128x64xbf16>, vector<4x64xf32> -> vector<4x64xf32>
    %c0_8 = arith.constant 0 : index
    %c0_9 = arith.constant 0 : index
    %c0_10 = arith.constant 0 : index
    %8 = vector.load %arg4[%c0_8, %c0_9, %c0_10] : memref<1x4x128xbf16, #tpu.memory_space<vmem>>, vector<1x4x128xbf16>
    %9 = vector.shape_cast %8 : vector<1x4x128xbf16> to vector<4x128xbf16>
    %c1 = arith.constant 1 : index
    %c0_11 = arith.constant 0 : index
    %c0_12 = arith.constant 0 : index
    %10 = vector.load %arg6[%c1, %c0_11, %c0_12] : memref<3x128x64xbf16, #tpu.memory_space<vmem>>, vector<1x128x64xbf16>
    %11 = vector.shape_cast %10 : vector<1x128x64xbf16> to vector<128x64xbf16>
    %cst_13 = arith.constant dense<0.000000e+00> : vector<4x64xf32>
    %12 = tpu.matmul %9, %11, %cst_13 {dimension_numbers = #tpu.dot_dimension_numbers<[1], [0], [0], [1], [0, 0, 1, 1], [], []>} : vector<4x128xbf16>, vector<128x64xbf16>, vector<4x64xf32> -> vector<4x64xf32>
    %13 = arith.addf %7, %12 : vector<4x64xf32>
    %c0_14 = arith.constant 0 : index
    %c0_15 = arith.constant 0 : index
    %c0_16 = arith.constant 0 : index
    %14 = vector.load %arg5[%c0_14, %c0_15, %c0_16] : memref<1x4x128xbf16, #tpu.memory_space<vmem>>, vector<1x4x128xbf16>
    %15 = vector.shape_cast %14 : vector<1x4x128xbf16> to vector<4x128xbf16>
    %c2 = arith.constant 2 : index
    %c0_17 = arith.constant 0 : index
    %c0_18 = arith.constant 0 : index
    %16 = vector.load %arg6[%c2, %c0_17, %c0_18] : memref<3x128x64xbf16, #tpu.memory_space<vmem>>, vector<1x128x64xbf16>
    %17 = vector.shape_cast %16 : vector<1x128x64xbf16> to vector<128x64xbf16>
    %cst_19 = arith.constant dense<0.000000e+00> : vector<4x64xf32>
    %18 = tpu.matmul %15, %17, %cst_19 {dimension_numbers = #tpu.dot_dimension_numbers<[1], [0], [0], [1], [0, 0, 1, 1], [], []>} : vector<4x128xbf16>, vector<128x64xbf16>, vector<4x64xf32> -> vector<4x64xf32>
    %19 = arith.addf %13, %18 : vector<4x64xf32>
    %c0_20 = arith.constant 0 : index
    %c0_21 = arith.constant 0 : index
    %20 = vector.load %arg7[%c0_20, %c0_21] : memref<1x64xf32, #tpu.memory_space<vmem>>, vector<1x64xf32>
    %21 = vector.broadcast %20 : vector<1x64xf32> to vector<4x64xf32>
    %22 = arith.mulf %19, %21 : vector<4x64xf32>
    %c0_22 = arith.constant 0 : index
    %c0_23 = arith.constant 0 : index
    %23 = vector.load %arg8[%c0_22, %c0_23] : memref<1x64xf32, #tpu.memory_space<vmem>>, vector<1x64xf32>
    %24 = vector.broadcast %23 : vector<1x64xf32> to vector<4x64xf32>
    %25 = arith.addf %22, %24 : vector<4x64xf32>
    %26 = arith.addf %25, %2 : vector<4x64xf32>
    %27 = arith.truncf %26 : vector<4x64xf32> to vector<4x64xbf16>
    %c0_24 = arith.constant 0 : index
    %c0_25 = arith.constant 0 : index
    %c0_26 = arith.constant 0 : index
    %28 = vector.load %arg10[%c0_24, %c0_25, %c0_26] : memref<1x4x64xbf16, #tpu.memory_space<vmem>>, vector<1x4x64xbf16>
    %29 = vector.shape_cast %28 : vector<1x4x64xbf16> to vector<4x64xbf16>
    %30 = vector.shape_cast %27 : vector<4x64xbf16> to vector<1x4x64xbf16>
    tpu.vector_store %arg10[%c0_24, %c0_25, %c0_26], %30 {strides = array<i32>} : memref<1x4x64xbf16, #tpu.memory_space<vmem>>, vector<1x4x64xbf16>,
    return
  }
  func.func @transform_0(%arg0: i32, %arg1: i32, %arg2: i32) -> (i32, i32, i32) {
    %c10_i32 = arith.constant 10 : i32
    %0 = arith.muli %arg0, %c10_i32 : i32
    %1 = arith.addi %0, %arg1 : i32
    %c0_i32 = arith.constant 0 : i32
    %2 = arith.addi %1, %c0_i32 : i32
    %c0_i32_0 = arith.constant 0 : i32
    %c0_i32_1 = arith.constant 0 : i32
    return %2, %arg2, %c0_i32_0 : i32, i32, i32
  }
  func.func @transform_1(%arg0: i32, %arg1: i32, %arg2: i32) -> (i32, i32, i32) {
    %c10_i32 = arith.constant 10 : i32
    %0 = arith.muli %arg0, %c10_i32 : i32
    %1 = arith.addi %0, %arg1 : i32
    %c1_i32 = arith.constant 1 : i32
    %2 = arith.addi %1, %c1_i32 : i32
    %c0_i32 = arith.constant 0 : i32
    %c0_i32_0 = arith.constant 0 : i32
    return %2, %arg2, %c0_i32 : i32, i32, i32
  }
  func.func @transform_2(%arg0: i32, %arg1: i32, %arg2: i32) -> (i32, i32, i32) {
    %c10_i32 = arith.constant 10 : i32
    %0 = arith.muli %arg0, %c10_i32 : i32
    %1 = arith.addi %0, %arg1 : i32
    %c2_i32 = arith.constant 2 : i32
    %2 = arith.addi %1, %c2_i32 : i32
    %c0_i32 = arith.constant 0 : i32
    %c0_i32_0 = arith.constant 0 : i32
    return %2, %arg2, %c0_i32 : i32, i32, i32
  }
  func.func @transform_3(%arg0: i32, %arg1: i32, %arg2: i32) -> (i32, i32, i32) {
    %c0_i32 = arith.constant 0 : i32
    %c0_i32_0 = arith.constant 0 : i32
    %c0_i32_1 = arith.constant 0 : i32
    %c0_i32_2 = arith.constant 0 : i32
    return %c0_i32, %c0_i32_0, %c0_i32_1 : i32, i32, i32
  }
  func.func @transform_4(%arg0: i32, %arg1: i32, %arg2: i32) -> (i32, i32) {
    %c0_i32 = arith.constant 0 : i32
    %c0_i32_0 = arith.constant 0 : i32
    %c0_i32_1 = arith.constant 0 : i32
    return %c0_i32, %c0_i32_0 : i32, i32
  }
  func.func @transform_5(%arg0: i32, %arg1: i32, %arg2: i32) -> (i32, i32) {
    %c0_i32 = arith.constant 0 : i32
    %c0_i32_0 = arith.constant 0 : i32
    %c0_i32_1 = arith.constant 0 : i32
    return %c0_i32, %c0_i32_0 : i32, i32
  }
  func.func @transform_6(%arg0: i32, %arg1: i32, %arg2: i32) -> (i32, i32, i32) {
    %c8_i32 = arith.constant 8 : i32
    %0 = arith.muli %arg0, %c8_i32 : i32
    %1 = arith.addi %0, %arg1 : i32
    %c0_i32 = arith.constant 0 : i32
    %c0_i32_0 = arith.constant 0 : i32
    return %1, %arg2, %c0_i32 : i32, i32, i32
  }
  func.func @transform_7(%arg0: i32, %arg1: i32, %arg2: i32) -> (i32, i32, i32) {
    %c8_i32 = arith.constant 8 : i32
    %0 = arith.muli %arg0, %c8_i32 : i32
    %1 = arith.addi %0, %arg1 : i32
    %c0_i32 = arith.constant 0 : i32
    %c0_i32_0 = arith.constant 0 : i32
    return %1, %arg2, %c0_i32 : i32, i32, i32
  }
}

module attributes {stable_mosaic.version = 11 : i64} {
  func.func @kernel(%arg0: i32, %arg1: i32, %arg2: i32, %arg3: memref<1x4x256xbf16, #tpu.memory_space<vmem>>, %arg4: memref<1x4x256xbf16, #tpu.memory_space<vmem>>, %arg5: memref<1x4x256xbf16, #tpu.memory_space<vmem>>, %arg6: memref<3x256x64xbf16, #tpu.memory_space<vmem>>, %arg7: memref<1x64xf32, #tpu.memory_space<vmem>>, %arg8: memref<1x64xf32, #tpu.memory_space<vmem>>, %arg9: memref<1x4x64xbf16, #tpu.memory_space<vmem>>, %arg10: memref<1x4x64xbf16, #tpu.memory_space<vmem>>) attributes {dimension_semantics = [#tpu.dimension_semantics<parallel>, #tpu.dimension_semantics<parallel>, #tpu.dimension_semantics<parallel>], iteration_bounds = array<i64: 1, 8, 1>, scalar_prefetch = 0 : i64, scratch_operands = 0 : i64, tpu.core_type = #tpu.core_type<tc>, window_params = [{transform_indices = @transform_0, window_bounds = array<i64: 1, 4, 256>}, {transform_indices = @transform_1, window_bounds = array<i64: 1, 4, 256>}, {transform_indices = @transform_2, window_bounds = array<i64: 1, 4, 256>}, {pipeline_mode = #tpu.pipeline_mode<synchronous>, transform_indices = @transform_3, window_bounds = array<i64: 3, 256, 64>}, {pipeline_mode = #tpu.pipeline_mode<synchronous>, transform_indices = @transform_4, window_bounds = array<i64: 1, 64>}, {pipeline_mode = #tpu.pipeline_mode<synchronous>, transform_indices = @transform_5, window_bounds = array<i64: 1, 64>}, {transform_indices = @transform_6, window_bounds = array<i64: 1, 4, 64>}, {transform_indices = @transform_7, window_bounds = array<i64: 1, 4, 64>}]} {
    %c0 = arith.constant 0 : index
    %c0_0 = arith.constant 0 : index
    %c0_1 = arith.constant 0 : index
    %0 = vector.load %arg9[%c0, %c0_0, %c0_1] : memref<1x4x64xbf16, #tpu.memory_space<vmem>>, vector<1x4x64xbf16>
    %1 = vector.shape_cast %0 : vector<1x4x64xbf16> to vector<4x64xbf16>
    %2 = arith.extf %1 : vector<4x64xbf16> to vector<4x64xf32>
    %c0_2 = arith.constant 0 : index
    %c0_3 = arith.constant 0 : index
    %c0_4 = arith.constant 0 : index
    %3 = vector.load %arg3[%c0_2, %c0_3, %c0_4] : memref<1x4x256xbf16, #tpu.memory_space<vmem>>, vector<1x4x256xbf16>
    %4 = vector.shape_cast %3 : vector<1x4x256xbf16> to vector<4x256xbf16>
    %c0_5 = arith.constant 0 : index
    %c0_6 = arith.constant 0 : index
    %c0_7 = arith.constant 0 : index
    %5 = vector.load %arg6[%c0_5, %c0_6, %c0_7] : memref<3x256x64xbf16, #tpu.memory_space<vmem>>, vector<1x256x64xbf16>
    %6 = vector.shape_cast %5 : vector<1x256x64xbf16> to vector<256x64xbf16>
    %cst = arith.constant dense<0.000000e+00> : vector<4x64xf32>
    %7 = tpu.matmul %4, %6, %cst {dimension_numbers = #tpu.dot_dimension_numbers<[1], [0], [0], [1], [0, 0, 1, 1], [], []>} : vector<4x256xbf16>, vector<256x64xbf16>, vector<4x64xf32> -> vector<4x64xf32>
    %c0_8 = arith.constant 0 : index
    %c0_9 = arith.constant 0 : index
    %c0_10 = arith.constant 0 : index
    %8 = vector.load %arg4[%c0_8, %c0_9, %c0_10] : memref<1x4x256xbf16, #tpu.memory_space<vmem>>, vector<1x4x256xbf16>
    %9 = vector.shape_cast %8 : vector<1x4x256xbf16> to vector<4x256xbf16>
    %c1 = arith.constant 1 : index
    %c0_11 = arith.constant 0 : index
    %c0_12 = arith.constant 0 : index
    %10 = vector.load %arg6[%c1, %c0_11, %c0_12] : memref<3x256x64xbf16, #tpu.memory_space<vmem>>, vector<1x256x64xbf16>
    %11 = vector.shape_cast %10 : vector<1x256x64xbf16> to vector<256x64xbf16>
    %cst_13 = arith.constant dense<0.000000e+00> : vector<4x64xf32>
    %12 = tpu.matmul %9, %11, %cst_13 {dimension_numbers = #tpu.dot_dimension_numbers<[1], [0], [0], [1], [0, 0, 1, 1], [], []>} : vector<4x256xbf16>, vector<256x64xbf16>, vector<4x64xf32> -> vector<4x64xf32>
    %13 = arith.addf %7, %12 : vector<4x64xf32>
    %c0_14 = arith.constant 0 : index
    %c0_15 = arith.constant 0 : index
    %c0_16 = arith.constant 0 : index
    %14 = vector.load %arg5[%c0_14, %c0_15, %c0_16] : memref<1x4x256xbf16, #tpu.memory_space<vmem>>, vector<1x4x256xbf16>
    %15 = vector.shape_cast %14 : vector<1x4x256xbf16> to vector<4x256xbf16>
    %c2 = arith.constant 2 : index
    %c0_17 = arith.constant 0 : index
    %c0_18 = arith.constant 0 : index
    %16 = vector.load %arg6[%c2, %c0_17, %c0_18] : memref<3x256x64xbf16, #tpu.memory_space<vmem>>, vector<1x256x64xbf16>
    %17 = vector.shape_cast %16 : vector<1x256x64xbf16> to vector<256x64xbf16>
    %cst_19 = arith.constant dense<0.000000e+00> : vector<4x64xf32>
    %18 = tpu.matmul %15, %17, %cst_19 {dimension_numbers = #tpu.dot_dimension_numbers<[1], [0], [0], [1], [0, 0, 1, 1], [], []>} : vector<4x256xbf16>, vector<256x64xbf16>, vector<4x64xf32> -> vector<4x64xf32>
    %19 = arith.addf %13, %18 : vector<4x64xf32>
    %c0_20 = arith.constant 0 : index
    %c0_21 = arith.constant 0 : index
    %20 = vector.load %arg7[%c0_20, %c0_21] : memref<1x64xf32, #tpu.memory_space<vmem>>, vector<1x64xf32>
    %21 = vector.broadcast %20 : vector<1x64xf32> to vector<4x64xf32>
    %22 = arith.mulf %19, %21 : vector<4x64xf32>
    %c0_22 = arith.constant 0 : index
    %c0_23 = arith.constant 0 : index
    %23 = vector.load %arg8[%c0_22, %c0_23] : memref<1x64xf32, #tpu.memory_space<vmem>>, vector<1x64xf32>
    %24 = vector.broadcast %23 : vector<1x64xf32> to vector<4x64xf32>
    %25 = arith.addf %22, %24 : vector<4x64xf32>
    %26 = arith.addf %25, %2 : vector<4x64xf32>
    %27 = arith.truncf %26 : vector<4x64xf32> to vector<4x64xbf16>
    %c0_24 = arith.constant 0 : index
    %c0_25 = arith.constant 0 : index
    %c0_26 = arith.constant 0 : index
    %28 = vector.load %arg10[%c0_24, %c0_25, %c0_26] : memref<1x4x64xbf16, #tpu.memory_space<vmem>>, vector<1x4x64xbf16>
    %29 = vector.shape_cast %28 : vector<1x4x64xbf16> to vector<4x64xbf16>
    %30 = vector.shape_cast %27 : vector<4x64xbf16> to vector<1x4x64xbf16>
    tpu.vector_store %arg10[%c0_24, %c0_25, %c0_26], %30 {strides = array<i32>} : memref<1x4x64xbf16, #tpu.memory_space<vmem>>, vector<1x4x64xbf16>,
    return
  }
  func.func @transform_0(%arg0: i32, %arg1: i32, %arg2: i32) -> (i32, i32, i32) {
    %c10_i32 = arith.constant 10 : i32
    %0 = arith.muli %arg0, %c10_i32 : i32
    %1 = arith.addi %0, %arg1 : i32
    %c0_i32 = arith.constant 0 : i32
    %2 = arith.addi %1, %c0_i32 : i32
    %c0_i32_0 = arith.constant 0 : i32
    %c0_i32_1 = arith.constant 0 : i32
    return %2, %arg2, %c0_i32_0 : i32, i32, i32
  }
  func.func @transform_1(%arg0: i32, %arg1: i32, %arg2: i32) -> (i32, i32, i32) {
    %c10_i32 = arith.constant 10 : i32
    %0 = arith.muli %arg0, %c10_i32 : i32
    %1 = arith.addi %0, %arg1 : i32
    %c1_i32 = arith.constant 1 : i32
    %2 = arith.addi %1, %c1_i32 : i32
    %c0_i32 = arith.constant 0 : i32
    %c0_i32_0 = arith.constant 0 : i32
    return %2, %arg2, %c0_i32 : i32, i32, i32
  }
  func.func @transform_2(%arg0: i32, %arg1: i32, %arg2: i32) -> (i32, i32, i32) {
    %c10_i32 = arith.constant 10 : i32
    %0 = arith.muli %arg0, %c10_i32 : i32
    %1 = arith.addi %0, %arg1 : i32
    %c2_i32 = arith.constant 2 : i32
    %2 = arith.addi %1, %c2_i32 : i32
    %c0_i32 = arith.constant 0 : i32
    %c0_i32_0 = arith.constant 0 : i32
    return %2, %arg2, %c0_i32 : i32, i32, i32
  }
  func.func @transform_3(%arg0: i32, %arg1: i32, %arg2: i32) -> (i32, i32, i32) {
    %c0_i32 = arith.constant 0 : i32
    %c0_i32_0 = arith.constant 0 : i32
    %c0_i32_1 = arith.constant 0 : i32
    %c0_i32_2 = arith.constant 0 : i32
    return %c0_i32, %c0_i32_0, %c0_i32_1 : i32, i32, i32
  }
  func.func @transform_4(%arg0: i32, %arg1: i32, %arg2: i32) -> (i32, i32) {
    %c0_i32 = arith.constant 0 : i32
    %c0_i32_0 = arith.constant 0 : i32
    %c0_i32_1 = arith.constant 0 : i32
    return %c0_i32, %c0_i32_0 : i32, i32
  }
  func.func @transform_5(%arg0: i32, %arg1: i32, %arg2: i32) -> (i32, i32) {
    %c0_i32 = arith.constant 0 : i32
    %c0_i32_0 = arith.constant 0 : i32
    %c0_i32_1 = arith.constant 0 : i32
    return %c0_i32, %c0_i32_0 : i32, i32
  }
  func.func @transform_6(%arg0: i32, %arg1: i32, %arg2: i32) -> (i32, i32, i32) {
    %c8_i32 = arith.constant 8 : i32
    %0 = arith.muli %arg0, %c8_i32 : i32
    %1 = arith.addi %0, %arg1 : i32
    %c0_i32 = arith.constant 0 : i32
    %c0_i32_0 = arith.constant 0 : i32
    return %1, %arg2, %c0_i32 : i32, i32, i32
  }
  func.func @transform_7(%arg0: i32, %arg1: i32, %arg2: i32) -> (i32, i32, i32) {
    %c8_i32 = arith.constant 8 : i32
    %0 = arith.muli %arg0, %c8_i32 : i32
    %1 = arith.addi %0, %arg1 : i32
    %c0_i32 = arith.constant 0 : i32
    %c0_i32_0 = arith.constant 0 : i32
    return %1, %arg2, %c0_i32 : i32, i32, i32
  }
}

module attributes {stable_mosaic.version = 11 : i64} {
  func.func @kernel(%arg0: i32, %arg1: i32, %arg2: i32, %arg3: memref<1x4x512xbf16, #tpu.memory_space<vmem>>, %arg4: memref<1x4x512xbf16, #tpu.memory_space<vmem>>, %arg5: memref<1x4x512xbf16, #tpu.memory_space<vmem>>, %arg6: memref<3x512x64xbf16, #tpu.memory_space<vmem>>, %arg7: memref<1x64xf32, #tpu.memory_space<vmem>>, %arg8: memref<1x64xf32, #tpu.memory_space<vmem>>, %arg9: memref<1x4x64xbf16, #tpu.memory_space<vmem>>, %arg10: memref<1x4x64xbf16, #tpu.memory_space<vmem>>) attributes {dimension_semantics = [#tpu.dimension_semantics<parallel>, #tpu.dimension_semantics<parallel>, #tpu.dimension_semantics<parallel>], iteration_bounds = array<i64: 1, 8, 1>, scalar_prefetch = 0 : i64, scratch_operands = 0 : i64, tpu.core_type = #tpu.core_type<tc>, window_params = [{transform_indices = @transform_0, window_bounds = array<i64: 1, 4, 512>}, {transform_indices = @transform_1, window_bounds = array<i64: 1, 4, 512>}, {transform_indices = @transform_2, window_bounds = array<i64: 1, 4, 512>}, {pipeline_mode = #tpu.pipeline_mode<synchronous>, transform_indices = @transform_3, window_bounds = array<i64: 3, 512, 64>}, {pipeline_mode = #tpu.pipeline_mode<synchronous>, transform_indices = @transform_4, window_bounds = array<i64: 1, 64>}, {pipeline_mode = #tpu.pipeline_mode<synchronous>, transform_indices = @transform_5, window_bounds = array<i64: 1, 64>}, {transform_indices = @transform_6, window_bounds = array<i64: 1, 4, 64>}, {transform_indices = @transform_7, window_bounds = array<i64: 1, 4, 64>}]} {
    %c0 = arith.constant 0 : index
    %c0_0 = arith.constant 0 : index
    %c0_1 = arith.constant 0 : index
    %0 = vector.load %arg9[%c0, %c0_0, %c0_1] : memref<1x4x64xbf16, #tpu.memory_space<vmem>>, vector<1x4x64xbf16>
    %1 = vector.shape_cast %0 : vector<1x4x64xbf16> to vector<4x64xbf16>
    %2 = arith.extf %1 : vector<4x64xbf16> to vector<4x64xf32>
    %c0_2 = arith.constant 0 : index
    %c0_3 = arith.constant 0 : index
    %c0_4 = arith.constant 0 : index
    %3 = vector.load %arg3[%c0_2, %c0_3, %c0_4] : memref<1x4x512xbf16, #tpu.memory_space<vmem>>, vector<1x4x512xbf16>
    %4 = vector.shape_cast %3 : vector<1x4x512xbf16> to vector<4x512xbf16>
    %c0_5 = arith.constant 0 : index
    %c0_6 = arith.constant 0 : index
    %c0_7 = arith.constant 0 : index
    %5 = vector.load %arg6[%c0_5, %c0_6, %c0_7] : memref<3x512x64xbf16, #tpu.memory_space<vmem>>, vector<1x512x64xbf16>
    %6 = vector.shape_cast %5 : vector<1x512x64xbf16> to vector<512x64xbf16>
    %cst = arith.constant dense<0.000000e+00> : vector<4x64xf32>
    %7 = tpu.matmul %4, %6, %cst {dimension_numbers = #tpu.dot_dimension_numbers<[1], [0], [0], [1], [0, 0, 1, 1], [], []>} : vector<4x512xbf16>, vector<512x64xbf16>, vector<4x64xf32> -> vector<4x64xf32>
    %c0_8 = arith.constant 0 : index
    %c0_9 = arith.constant 0 : index
    %c0_10 = arith.constant 0 : index
    %8 = vector.load %arg4[%c0_8, %c0_9, %c0_10] : memref<1x4x512xbf16, #tpu.memory_space<vmem>>, vector<1x4x512xbf16>
    %9 = vector.shape_cast %8 : vector<1x4x512xbf16> to vector<4x512xbf16>
    %c1 = arith.constant 1 : index
    %c0_11 = arith.constant 0 : index
    %c0_12 = arith.constant 0 : index
    %10 = vector.load %arg6[%c1, %c0_11, %c0_12] : memref<3x512x64xbf16, #tpu.memory_space<vmem>>, vector<1x512x64xbf16>
    %11 = vector.shape_cast %10 : vector<1x512x64xbf16> to vector<512x64xbf16>
    %cst_13 = arith.constant dense<0.000000e+00> : vector<4x64xf32>
    %12 = tpu.matmul %9, %11, %cst_13 {dimension_numbers = #tpu.dot_dimension_numbers<[1], [0], [0], [1], [0, 0, 1, 1], [], []>} : vector<4x512xbf16>, vector<512x64xbf16>, vector<4x64xf32> -> vector<4x64xf32>
    %13 = arith.addf %7, %12 : vector<4x64xf32>
    %c0_14 = arith.constant 0 : index
    %c0_15 = arith.constant 0 : index
    %c0_16 = arith.constant 0 : index
    %14 = vector.load %arg5[%c0_14, %c0_15, %c0_16] : memref<1x4x512xbf16, #tpu.memory_space<vmem>>, vector<1x4x512xbf16>
    %15 = vector.shape_cast %14 : vector<1x4x512xbf16> to vector<4x512xbf16>
    %c2 = arith.constant 2 : index
    %c0_17 = arith.constant 0 : index
    %c0_18 = arith.constant 0 : index
    %16 = vector.load %arg6[%c2, %c0_17, %c0_18] : memref<3x512x64xbf16, #tpu.memory_space<vmem>>, vector<1x512x64xbf16>
    %17 = vector.shape_cast %16 : vector<1x512x64xbf16> to vector<512x64xbf16>
    %cst_19 = arith.constant dense<0.000000e+00> : vector<4x64xf32>
    %18 = tpu.matmul %15, %17, %cst_19 {dimension_numbers = #tpu.dot_dimension_numbers<[1], [0], [0], [1], [0, 0, 1, 1], [], []>} : vector<4x512xbf16>, vector<512x64xbf16>, vector<4x64xf32> -> vector<4x64xf32>
    %19 = arith.addf %13, %18 : vector<4x64xf32>
    %c0_20 = arith.constant 0 : index
    %c0_21 = arith.constant 0 : index
    %20 = vector.load %arg7[%c0_20, %c0_21] : memref<1x64xf32, #tpu.memory_space<vmem>>, vector<1x64xf32>
    %21 = vector.broadcast %20 : vector<1x64xf32> to vector<4x64xf32>
    %22 = arith.mulf %19, %21 : vector<4x64xf32>
    %c0_22 = arith.constant 0 : index
    %c0_23 = arith.constant 0 : index
    %23 = vector.load %arg8[%c0_22, %c0_23] : memref<1x64xf32, #tpu.memory_space<vmem>>, vector<1x64xf32>
    %24 = vector.broadcast %23 : vector<1x64xf32> to vector<4x64xf32>
    %25 = arith.addf %22, %24 : vector<4x64xf32>
    %26 = arith.addf %25, %2 : vector<4x64xf32>
    %27 = arith.truncf %26 : vector<4x64xf32> to vector<4x64xbf16>
    %c0_24 = arith.constant 0 : index
    %c0_25 = arith.constant 0 : index
    %c0_26 = arith.constant 0 : index
    %28 = vector.load %arg10[%c0_24, %c0_25, %c0_26] : memref<1x4x64xbf16, #tpu.memory_space<vmem>>, vector<1x4x64xbf16>
    %29 = vector.shape_cast %28 : vector<1x4x64xbf16> to vector<4x64xbf16>
    %30 = vector.shape_cast %27 : vector<4x64xbf16> to vector<1x4x64xbf16>
    tpu.vector_store %arg10[%c0_24, %c0_25, %c0_26], %30 {strides = array<i32>} : memref<1x4x64xbf16, #tpu.memory_space<vmem>>, vector<1x4x64xbf16>,
    return
  }
  func.func @transform_0(%arg0: i32, %arg1: i32, %arg2: i32) -> (i32, i32, i32) {
    %c10_i32 = arith.constant 10 : i32
    %0 = arith.muli %arg0, %c10_i32 : i32
    %1 = arith.addi %0, %arg1 : i32
    %c0_i32 = arith.constant 0 : i32
    %2 = arith.addi %1, %c0_i32 : i32
    %c0_i32_0 = arith.constant 0 : i32
    %c0_i32_1 = arith.constant 0 : i32
    return %2, %arg2, %c0_i32_0 : i32, i32, i32
  }
  func.func @transform_1(%arg0: i32, %arg1: i32, %arg2: i32) -> (i32, i32, i32) {
    %c10_i32 = arith.constant 10 : i32
    %0 = arith.muli %arg0, %c10_i32 : i32
    %1 = arith.addi %0, %arg1 : i32
    %c1_i32 = arith.constant 1 : i32
    %2 = arith.addi %1, %c1_i32 : i32
    %c0_i32 = arith.constant 0 : i32
    %c0_i32_0 = arith.constant 0 : i32
    return %2, %arg2, %c0_i32 : i32, i32, i32
  }
  func.func @transform_2(%arg0: i32, %arg1: i32, %arg2: i32) -> (i32, i32, i32) {
    %c10_i32 = arith.constant 10 : i32
    %0 = arith.muli %arg0, %c10_i32 : i32
    %1 = arith.addi %0, %arg1 : i32
    %c2_i32 = arith.constant 2 : i32
    %2 = arith.addi %1, %c2_i32 : i32
    %c0_i32 = arith.constant 0 : i32
    %c0_i32_0 = arith.constant 0 : i32
    return %2, %arg2, %c0_i32 : i32, i32, i32
  }
  func.func @transform_3(%arg0: i32, %arg1: i32, %arg2: i32) -> (i32, i32, i32) {
    %c0_i32 = arith.constant 0 : i32
    %c0_i32_0 = arith.constant 0 : i32
    %c0_i32_1 = arith.constant 0 : i32
    %c0_i32_2 = arith.constant 0 : i32
    return %c0_i32, %c0_i32_0, %c0_i32_1 : i32, i32, i32
  }
  func.func @transform_4(%arg0: i32, %arg1: i32, %arg2: i32) -> (i32, i32) {
    %c0_i32 = arith.constant 0 : i32
    %c0_i32_0 = arith.constant 0 : i32
    %c0_i32_1 = arith.constant 0 : i32
    return %c0_i32, %c0_i32_0 : i32, i32
  }
  func.func @transform_5(%arg0: i32, %arg1: i32, %arg2: i32) -> (i32, i32) {
    %c0_i32 = arith.constant 0 : i32
    %c0_i32_0 = arith.constant 0 : i32
    %c0_i32_1 = arith.constant 0 : i32
    return %c0_i32, %c0_i32_0 : i32, i32
  }
  func.func @transform_6(%arg0: i32, %arg1: i32, %arg2: i32) -> (i32, i32, i32) {
    %c8_i32 = arith.constant 8 : i32
    %0 = arith.muli %arg0, %c8_i32 : i32
    %1 = arith.addi %0, %arg1 : i32
    %c0_i32 = arith.constant 0 : i32
    %c0_i32_0 = arith.constant 0 : i32
    return %1, %arg2, %c0_i32 : i32, i32, i32
  }
  func.func @transform_7(%arg0: i32, %arg1: i32, %arg2: i32) -> (i32, i32, i32) {
    %c8_i32 = arith.constant 8 : i32
    %0 = arith.muli %arg0, %c8_i32 : i32
    %1 = arith.addi %0, %arg1 : i32
    %c0_i32 = arith.constant 0 : i32
    %c0_i32_0 = arith.constant 0 : i32
    return %1, %arg2, %c0_i32 : i32, i32, i32
  }
}

module attributes {stable_mosaic.version = 11 : i64} {
  func.func @kernel(%arg0: i32, %arg1: i32, %arg2: i32, %arg3: memref<1x16x64xbf16, #tpu.memory_space<vmem>>, %arg4: memref<1x16x64xbf16, #tpu.memory_space<vmem>>, %arg5: memref<1x16x64xbf16, #tpu.memory_space<vmem>>, %arg6: memref<3x64x32xbf16, #tpu.memory_space<vmem>>, %arg7: memref<1x32xf32, #tpu.memory_space<vmem>>, %arg8: memref<1x32xf32, #tpu.memory_space<vmem>>, %arg9: memref<1x16x32xbf16, #tpu.memory_space<vmem>>, %arg10: memref<1x16x32xbf16, #tpu.memory_space<vmem>>) attributes {dimension_semantics = [#tpu.dimension_semantics<parallel>, #tpu.dimension_semantics<parallel>, #tpu.dimension_semantics<parallel>], iteration_bounds = array<i64: 1, 8, 1>, scalar_prefetch = 0 : i64, scratch_operands = 0 : i64, tpu.core_type = #tpu.core_type<tc>, window_params = [{transform_indices = @transform_0, window_bounds = array<i64: 1, 16, 64>}, {transform_indices = @transform_1, window_bounds = array<i64: 1, 16, 64>}, {transform_indices = @transform_2, window_bounds = array<i64: 1, 16, 64>}, {pipeline_mode = #tpu.pipeline_mode<synchronous>, transform_indices = @transform_3, window_bounds = array<i64: 3, 64, 32>}, {pipeline_mode = #tpu.pipeline_mode<synchronous>, transform_indices = @transform_4, window_bounds = array<i64: 1, 32>}, {pipeline_mode = #tpu.pipeline_mode<synchronous>, transform_indices = @transform_5, window_bounds = array<i64: 1, 32>}, {transform_indices = @transform_6, window_bounds = array<i64: 1, 16, 32>}, {transform_indices = @transform_7, window_bounds = array<i64: 1, 16, 32>}]} {
    %c0 = arith.constant 0 : index
    %c0_0 = arith.constant 0 : index
    %c0_1 = arith.constant 0 : index
    %0 = vector.load %arg9[%c0, %c0_0, %c0_1] : memref<1x16x32xbf16, #tpu.memory_space<vmem>>, vector<1x16x32xbf16>
    %1 = vector.shape_cast %0 : vector<1x16x32xbf16> to vector<16x32xbf16>
    %2 = arith.extf %1 : vector<16x32xbf16> to vector<16x32xf32>
    %c0_2 = arith.constant 0 : index
    %c0_3 = arith.constant 0 : index
    %c0_4 = arith.constant 0 : index
    %3 = vector.load %arg3[%c0_2, %c0_3, %c0_4] : memref<1x16x64xbf16, #tpu.memory_space<vmem>>, vector<1x16x64xbf16>
    %4 = vector.shape_cast %3 : vector<1x16x64xbf16> to vector<16x64xbf16>
    %c0_5 = arith.constant 0 : index
    %c0_6 = arith.constant 0 : index
    %c0_7 = arith.constant 0 : index
    %5 = vector.load %arg6[%c0_5, %c0_6, %c0_7] : memref<3x64x32xbf16, #tpu.memory_space<vmem>>, vector<1x64x32xbf16>
    %6 = vector.shape_cast %5 : vector<1x64x32xbf16> to vector<64x32xbf16>
    %cst = arith.constant dense<0.000000e+00> : vector<16x32xf32>
    %7 = tpu.matmul %4, %6, %cst {dimension_numbers = #tpu.dot_dimension_numbers<[1], [0], [0], [1], [0, 0, 1, 1], [], []>} : vector<16x64xbf16>, vector<64x32xbf16>, vector<16x32xf32> -> vector<16x32xf32>
    %c0_8 = arith.constant 0 : index
    %c0_9 = arith.constant 0 : index
    %c0_10 = arith.constant 0 : index
    %8 = vector.load %arg4[%c0_8, %c0_9, %c0_10] : memref<1x16x64xbf16, #tpu.memory_space<vmem>>, vector<1x16x64xbf16>
    %9 = vector.shape_cast %8 : vector<1x16x64xbf16> to vector<16x64xbf16>
    %c1 = arith.constant 1 : index
    %c0_11 = arith.constant 0 : index
    %c0_12 = arith.constant 0 : index
    %10 = vector.load %arg6[%c1, %c0_11, %c0_12] : memref<3x64x32xbf16, #tpu.memory_space<vmem>>, vector<1x64x32xbf16>
    %11 = vector.shape_cast %10 : vector<1x64x32xbf16> to vector<64x32xbf16>
    %cst_13 = arith.constant dense<0.000000e+00> : vector<16x32xf32>
    %12 = tpu.matmul %9, %11, %cst_13 {dimension_numbers = #tpu.dot_dimension_numbers<[1], [0], [0], [1], [0, 0, 1, 1], [], []>} : vector<16x64xbf16>, vector<64x32xbf16>, vector<16x32xf32> -> vector<16x32xf32>
    %13 = arith.addf %7, %12 : vector<16x32xf32>
    %c0_14 = arith.constant 0 : index
    %c0_15 = arith.constant 0 : index
    %c0_16 = arith.constant 0 : index
    %14 = vector.load %arg5[%c0_14, %c0_15, %c0_16] : memref<1x16x64xbf16, #tpu.memory_space<vmem>>, vector<1x16x64xbf16>
    %15 = vector.shape_cast %14 : vector<1x16x64xbf16> to vector<16x64xbf16>
    %c2 = arith.constant 2 : index
    %c0_17 = arith.constant 0 : index
    %c0_18 = arith.constant 0 : index
    %16 = vector.load %arg6[%c2, %c0_17, %c0_18] : memref<3x64x32xbf16, #tpu.memory_space<vmem>>, vector<1x64x32xbf16>
    %17 = vector.shape_cast %16 : vector<1x64x32xbf16> to vector<64x32xbf16>
    %cst_19 = arith.constant dense<0.000000e+00> : vector<16x32xf32>
    %18 = tpu.matmul %15, %17, %cst_19 {dimension_numbers = #tpu.dot_dimension_numbers<[1], [0], [0], [1], [0, 0, 1, 1], [], []>} : vector<16x64xbf16>, vector<64x32xbf16>, vector<16x32xf32> -> vector<16x32xf32>
    %19 = arith.addf %13, %18 : vector<16x32xf32>
    %c0_20 = arith.constant 0 : index
    %c0_21 = arith.constant 0 : index
    %20 = vector.load %arg7[%c0_20, %c0_21] : memref<1x32xf32, #tpu.memory_space<vmem>>, vector<1x32xf32>
    %21 = vector.broadcast %20 : vector<1x32xf32> to vector<16x32xf32>
    %22 = arith.mulf %19, %21 : vector<16x32xf32>
    %c0_22 = arith.constant 0 : index
    %c0_23 = arith.constant 0 : index
    %23 = vector.load %arg8[%c0_22, %c0_23] : memref<1x32xf32, #tpu.memory_space<vmem>>, vector<1x32xf32>
    %24 = vector.broadcast %23 : vector<1x32xf32> to vector<16x32xf32>
    %25 = arith.addf %22, %24 : vector<16x32xf32>
    %26 = arith.addf %25, %2 : vector<16x32xf32>
    %27 = arith.truncf %26 : vector<16x32xf32> to vector<16x32xbf16>
    %c0_24 = arith.constant 0 : index
    %c0_25 = arith.constant 0 : index
    %c0_26 = arith.constant 0 : index
    %28 = vector.load %arg10[%c0_24, %c0_25, %c0_26] : memref<1x16x32xbf16, #tpu.memory_space<vmem>>, vector<1x16x32xbf16>
    %29 = vector.shape_cast %28 : vector<1x16x32xbf16> to vector<16x32xbf16>
    %30 = vector.shape_cast %27 : vector<16x32xbf16> to vector<1x16x32xbf16>
    tpu.vector_store %arg10[%c0_24, %c0_25, %c0_26], %30 {strides = array<i32>} : memref<1x16x32xbf16, #tpu.memory_space<vmem>>, vector<1x16x32xbf16>,
    return
  }
  func.func @transform_0(%arg0: i32, %arg1: i32, %arg2: i32) -> (i32, i32, i32) {
    %c10_i32 = arith.constant 10 : i32
    %0 = arith.muli %arg0, %c10_i32 : i32
    %1 = arith.addi %0, %arg1 : i32
    %c0_i32 = arith.constant 0 : i32
    %2 = arith.addi %1, %c0_i32 : i32
    %c0_i32_0 = arith.constant 0 : i32
    %c0_i32_1 = arith.constant 0 : i32
    return %2, %arg2, %c0_i32_0 : i32, i32, i32
  }
  func.func @transform_1(%arg0: i32, %arg1: i32, %arg2: i32) -> (i32, i32, i32) {
    %c10_i32 = arith.constant 10 : i32
    %0 = arith.muli %arg0, %c10_i32 : i32
    %1 = arith.addi %0, %arg1 : i32
    %c1_i32 = arith.constant 1 : i32
    %2 = arith.addi %1, %c1_i32 : i32
    %c0_i32 = arith.constant 0 : i32
    %c0_i32_0 = arith.constant 0 : i32
    return %2, %arg2, %c0_i32 : i32, i32, i32
  }
  func.func @transform_2(%arg0: i32, %arg1: i32, %arg2: i32) -> (i32, i32, i32) {
    %c10_i32 = arith.constant 10 : i32
    %0 = arith.muli %arg0, %c10_i32 : i32
    %1 = arith.addi %0, %arg1 : i32
    %c2_i32 = arith.constant 2 : i32
    %2 = arith.addi %1, %c2_i32 : i32
    %c0_i32 = arith.constant 0 : i32
    %c0_i32_0 = arith.constant 0 : i32
    return %2, %arg2, %c0_i32 : i32, i32, i32
  }
  func.func @transform_3(%arg0: i32, %arg1: i32, %arg2: i32) -> (i32, i32, i32) {
    %c0_i32 = arith.constant 0 : i32
    %c0_i32_0 = arith.constant 0 : i32
    %c0_i32_1 = arith.constant 0 : i32
    %c0_i32_2 = arith.constant 0 : i32
    return %c0_i32, %c0_i32_0, %c0_i32_1 : i32, i32, i32
  }
  func.func @transform_4(%arg0: i32, %arg1: i32, %arg2: i32) -> (i32, i32) {
    %c0_i32 = arith.constant 0 : i32
    %c0_i32_0 = arith.constant 0 : i32
    %c0_i32_1 = arith.constant 0 : i32
    return %c0_i32, %c0_i32_0 : i32, i32
  }
  func.func @transform_5(%arg0: i32, %arg1: i32, %arg2: i32) -> (i32, i32) {
    %c0_i32 = arith.constant 0 : i32
    %c0_i32_0 = arith.constant 0 : i32
    %c0_i32_1 = arith.constant 0 : i32
    return %c0_i32, %c0_i32_0 : i32, i32
  }
  func.func @transform_6(%arg0: i32, %arg1: i32, %arg2: i32) -> (i32, i32, i32) {
    %c8_i32 = arith.constant 8 : i32
    %0 = arith.muli %arg0, %c8_i32 : i32
    %1 = arith.addi %0, %arg1 : i32
    %c0_i32 = arith.constant 0 : i32
    %c0_i32_0 = arith.constant 0 : i32
    return %1, %arg2, %c0_i32 : i32, i32, i32
  }
  func.func @transform_7(%arg0: i32, %arg1: i32, %arg2: i32) -> (i32, i32, i32) {
    %c8_i32 = arith.constant 8 : i32
    %0 = arith.muli %arg0, %c8_i32 : i32
    %1 = arith.addi %0, %arg1 : i32
    %c0_i32 = arith.constant 0 : i32
    %c0_i32_0 = arith.constant 0 : i32
    return %1, %arg2, %c0_i32 : i32, i32, i32
  }
}

module attributes {stable_mosaic.version = 11 : i64} {
  func.func @kernel(%arg0: i32, %arg1: i32, %arg2: i32, %arg3: memref<1x16x128xbf16, #tpu.memory_space<vmem>>, %arg4: memref<1x16x128xbf16, #tpu.memory_space<vmem>>, %arg5: memref<1x16x128xbf16, #tpu.memory_space<vmem>>, %arg6: memref<3x128x32xbf16, #tpu.memory_space<vmem>>, %arg7: memref<1x32xf32, #tpu.memory_space<vmem>>, %arg8: memref<1x32xf32, #tpu.memory_space<vmem>>, %arg9: memref<1x16x32xbf16, #tpu.memory_space<vmem>>, %arg10: memref<1x16x32xbf16, #tpu.memory_space<vmem>>) attributes {dimension_semantics = [#tpu.dimension_semantics<parallel>, #tpu.dimension_semantics<parallel>, #tpu.dimension_semantics<parallel>], iteration_bounds = array<i64: 1, 8, 1>, scalar_prefetch = 0 : i64, scratch_operands = 0 : i64, tpu.core_type = #tpu.core_type<tc>, window_params = [{transform_indices = @transform_0, window_bounds = array<i64: 1, 16, 128>}, {transform_indices = @transform_1, window_bounds = array<i64: 1, 16, 128>}, {transform_indices = @transform_2, window_bounds = array<i64: 1, 16, 128>}, {pipeline_mode = #tpu.pipeline_mode<synchronous>, transform_indices = @transform_3, window_bounds = array<i64: 3, 128, 32>}, {pipeline_mode = #tpu.pipeline_mode<synchronous>, transform_indices = @transform_4, window_bounds = array<i64: 1, 32>}, {pipeline_mode = #tpu.pipeline_mode<synchronous>, transform_indices = @transform_5, window_bounds = array<i64: 1, 32>}, {transform_indices = @transform_6, window_bounds = array<i64: 1, 16, 32>}, {transform_indices = @transform_7, window_bounds = array<i64: 1, 16, 32>}]} {
    %c0 = arith.constant 0 : index
    %c0_0 = arith.constant 0 : index
    %c0_1 = arith.constant 0 : index
    %0 = vector.load %arg9[%c0, %c0_0, %c0_1] : memref<1x16x32xbf16, #tpu.memory_space<vmem>>, vector<1x16x32xbf16>
    %1 = vector.shape_cast %0 : vector<1x16x32xbf16> to vector<16x32xbf16>
    %2 = arith.extf %1 : vector<16x32xbf16> to vector<16x32xf32>
    %c0_2 = arith.constant 0 : index
    %c0_3 = arith.constant 0 : index
    %c0_4 = arith.constant 0 : index
    %3 = vector.load %arg3[%c0_2, %c0_3, %c0_4] : memref<1x16x128xbf16, #tpu.memory_space<vmem>>, vector<1x16x128xbf16>
    %4 = vector.shape_cast %3 : vector<1x16x128xbf16> to vector<16x128xbf16>
    %c0_5 = arith.constant 0 : index
    %c0_6 = arith.constant 0 : index
    %c0_7 = arith.constant 0 : index
    %5 = vector.load %arg6[%c0_5, %c0_6, %c0_7] : memref<3x128x32xbf16, #tpu.memory_space<vmem>>, vector<1x128x32xbf16>
    %6 = vector.shape_cast %5 : vector<1x128x32xbf16> to vector<128x32xbf16>
    %cst = arith.constant dense<0.000000e+00> : vector<16x32xf32>
    %7 = tpu.matmul %4, %6, %cst {dimension_numbers = #tpu.dot_dimension_numbers<[1], [0], [0], [1], [0, 0, 1, 1], [], []>} : vector<16x128xbf16>, vector<128x32xbf16>, vector<16x32xf32> -> vector<16x32xf32>
    %c0_8 = arith.constant 0 : index
    %c0_9 = arith.constant 0 : index
    %c0_10 = arith.constant 0 : index
    %8 = vector.load %arg4[%c0_8, %c0_9, %c0_10] : memref<1x16x128xbf16, #tpu.memory_space<vmem>>, vector<1x16x128xbf16>
    %9 = vector.shape_cast %8 : vector<1x16x128xbf16> to vector<16x128xbf16>
    %c1 = arith.constant 1 : index
    %c0_11 = arith.constant 0 : index
    %c0_12 = arith.constant 0 : index
    %10 = vector.load %arg6[%c1, %c0_11, %c0_12] : memref<3x128x32xbf16, #tpu.memory_space<vmem>>, vector<1x128x32xbf16>
    %11 = vector.shape_cast %10 : vector<1x128x32xbf16> to vector<128x32xbf16>
    %cst_13 = arith.constant dense<0.000000e+00> : vector<16x32xf32>
    %12 = tpu.matmul %9, %11, %cst_13 {dimension_numbers = #tpu.dot_dimension_numbers<[1], [0], [0], [1], [0, 0, 1, 1], [], []>} : vector<16x128xbf16>, vector<128x32xbf16>, vector<16x32xf32> -> vector<16x32xf32>
    %13 = arith.addf %7, %12 : vector<16x32xf32>
    %c0_14 = arith.constant 0 : index
    %c0_15 = arith.constant 0 : index
    %c0_16 = arith.constant 0 : index
    %14 = vector.load %arg5[%c0_14, %c0_15, %c0_16] : memref<1x16x128xbf16, #tpu.memory_space<vmem>>, vector<1x16x128xbf16>
    %15 = vector.shape_cast %14 : vector<1x16x128xbf16> to vector<16x128xbf16>
    %c2 = arith.constant 2 : index
    %c0_17 = arith.constant 0 : index
    %c0_18 = arith.constant 0 : index
    %16 = vector.load %arg6[%c2, %c0_17, %c0_18] : memref<3x128x32xbf16, #tpu.memory_space<vmem>>, vector<1x128x32xbf16>
    %17 = vector.shape_cast %16 : vector<1x128x32xbf16> to vector<128x32xbf16>
    %cst_19 = arith.constant dense<0.000000e+00> : vector<16x32xf32>
    %18 = tpu.matmul %15, %17, %cst_19 {dimension_numbers = #tpu.dot_dimension_numbers<[1], [0], [0], [1], [0, 0, 1, 1], [], []>} : vector<16x128xbf16>, vector<128x32xbf16>, vector<16x32xf32> -> vector<16x32xf32>
    %19 = arith.addf %13, %18 : vector<16x32xf32>
    %c0_20 = arith.constant 0 : index
    %c0_21 = arith.constant 0 : index
    %20 = vector.load %arg7[%c0_20, %c0_21] : memref<1x32xf32, #tpu.memory_space<vmem>>, vector<1x32xf32>
    %21 = vector.broadcast %20 : vector<1x32xf32> to vector<16x32xf32>
    %22 = arith.mulf %19, %21 : vector<16x32xf32>
    %c0_22 = arith.constant 0 : index
    %c0_23 = arith.constant 0 : index
    %23 = vector.load %arg8[%c0_22, %c0_23] : memref<1x32xf32, #tpu.memory_space<vmem>>, vector<1x32xf32>
    %24 = vector.broadcast %23 : vector<1x32xf32> to vector<16x32xf32>
    %25 = arith.addf %22, %24 : vector<16x32xf32>
    %26 = arith.addf %25, %2 : vector<16x32xf32>
    %27 = arith.truncf %26 : vector<16x32xf32> to vector<16x32xbf16>
    %c0_24 = arith.constant 0 : index
    %c0_25 = arith.constant 0 : index
    %c0_26 = arith.constant 0 : index
    %28 = vector.load %arg10[%c0_24, %c0_25, %c0_26] : memref<1x16x32xbf16, #tpu.memory_space<vmem>>, vector<1x16x32xbf16>
    %29 = vector.shape_cast %28 : vector<1x16x32xbf16> to vector<16x32xbf16>
    %30 = vector.shape_cast %27 : vector<16x32xbf16> to vector<1x16x32xbf16>
    tpu.vector_store %arg10[%c0_24, %c0_25, %c0_26], %30 {strides = array<i32>} : memref<1x16x32xbf16, #tpu.memory_space<vmem>>, vector<1x16x32xbf16>,
    return
  }
  func.func @transform_0(%arg0: i32, %arg1: i32, %arg2: i32) -> (i32, i32, i32) {
    %c10_i32 = arith.constant 10 : i32
    %0 = arith.muli %arg0, %c10_i32 : i32
    %1 = arith.addi %0, %arg1 : i32
    %c0_i32 = arith.constant 0 : i32
    %2 = arith.addi %1, %c0_i32 : i32
    %c0_i32_0 = arith.constant 0 : i32
    %c0_i32_1 = arith.constant 0 : i32
    return %2, %arg2, %c0_i32_0 : i32, i32, i32
  }
  func.func @transform_1(%arg0: i32, %arg1: i32, %arg2: i32) -> (i32, i32, i32) {
    %c10_i32 = arith.constant 10 : i32
    %0 = arith.muli %arg0, %c10_i32 : i32
    %1 = arith.addi %0, %arg1 : i32
    %c1_i32 = arith.constant 1 : i32
    %2 = arith.addi %1, %c1_i32 : i32
    %c0_i32 = arith.constant 0 : i32
    %c0_i32_0 = arith.constant 0 : i32
    return %2, %arg2, %c0_i32 : i32, i32, i32
  }
  func.func @transform_2(%arg0: i32, %arg1: i32, %arg2: i32) -> (i32, i32, i32) {
    %c10_i32 = arith.constant 10 : i32
    %0 = arith.muli %arg0, %c10_i32 : i32
    %1 = arith.addi %0, %arg1 : i32
    %c2_i32 = arith.constant 2 : i32
    %2 = arith.addi %1, %c2_i32 : i32
    %c0_i32 = arith.constant 0 : i32
    %c0_i32_0 = arith.constant 0 : i32
    return %2, %arg2, %c0_i32 : i32, i32, i32
  }
  func.func @transform_3(%arg0: i32, %arg1: i32, %arg2: i32) -> (i32, i32, i32) {
    %c0_i32 = arith.constant 0 : i32
    %c0_i32_0 = arith.constant 0 : i32
    %c0_i32_1 = arith.constant 0 : i32
    %c0_i32_2 = arith.constant 0 : i32
    return %c0_i32, %c0_i32_0, %c0_i32_1 : i32, i32, i32
  }
  func.func @transform_4(%arg0: i32, %arg1: i32, %arg2: i32) -> (i32, i32) {
    %c0_i32 = arith.constant 0 : i32
    %c0_i32_0 = arith.constant 0 : i32
    %c0_i32_1 = arith.constant 0 : i32
    return %c0_i32, %c0_i32_0 : i32, i32
  }
  func.func @transform_5(%arg0: i32, %arg1: i32, %arg2: i32) -> (i32, i32) {
    %c0_i32 = arith.constant 0 : i32
    %c0_i32_0 = arith.constant 0 : i32
    %c0_i32_1 = arith.constant 0 : i32
    return %c0_i32, %c0_i32_0 : i32, i32
  }
  func.func @transform_6(%arg0: i32, %arg1: i32, %arg2: i32) -> (i32, i32, i32) {
    %c8_i32 = arith.constant 8 : i32
    %0 = arith.muli %arg0, %c8_i32 : i32
    %1 = arith.addi %0, %arg1 : i32
    %c0_i32 = arith.constant 0 : i32
    %c0_i32_0 = arith.constant 0 : i32
    return %1, %arg2, %c0_i32 : i32, i32, i32
  }
  func.func @transform_7(%arg0: i32, %arg1: i32, %arg2: i32) -> (i32, i32, i32) {
    %c8_i32 = arith.constant 8 : i32
    %0 = arith.muli %arg0, %c8_i32 : i32
    %1 = arith.addi %0, %arg1 : i32
    %c0_i32 = arith.constant 0 : i32
    %c0_i32_0 = arith.constant 0 : i32
    return %1, %arg2, %c0_i32 : i32, i32, i32
  }
}

module attributes {stable_mosaic.version = 11 : i64} {
  func.func @kernel(%arg0: i32, %arg1: i32, %arg2: i32, %arg3: memref<1x16x256xbf16, #tpu.memory_space<vmem>>, %arg4: memref<1x16x256xbf16, #tpu.memory_space<vmem>>, %arg5: memref<1x16x256xbf16, #tpu.memory_space<vmem>>, %arg6: memref<3x256x32xbf16, #tpu.memory_space<vmem>>, %arg7: memref<1x32xf32, #tpu.memory_space<vmem>>, %arg8: memref<1x32xf32, #tpu.memory_space<vmem>>, %arg9: memref<1x16x32xbf16, #tpu.memory_space<vmem>>, %arg10: memref<1x16x32xbf16, #tpu.memory_space<vmem>>) attributes {dimension_semantics = [#tpu.dimension_semantics<parallel>, #tpu.dimension_semantics<parallel>, #tpu.dimension_semantics<parallel>], iteration_bounds = array<i64: 1, 8, 1>, scalar_prefetch = 0 : i64, scratch_operands = 0 : i64, tpu.core_type = #tpu.core_type<tc>, window_params = [{transform_indices = @transform_0, window_bounds = array<i64: 1, 16, 256>}, {transform_indices = @transform_1, window_bounds = array<i64: 1, 16, 256>}, {transform_indices = @transform_2, window_bounds = array<i64: 1, 16, 256>}, {pipeline_mode = #tpu.pipeline_mode<synchronous>, transform_indices = @transform_3, window_bounds = array<i64: 3, 256, 32>}, {pipeline_mode = #tpu.pipeline_mode<synchronous>, transform_indices = @transform_4, window_bounds = array<i64: 1, 32>}, {pipeline_mode = #tpu.pipeline_mode<synchronous>, transform_indices = @transform_5, window_bounds = array<i64: 1, 32>}, {transform_indices = @transform_6, window_bounds = array<i64: 1, 16, 32>}, {transform_indices = @transform_7, window_bounds = array<i64: 1, 16, 32>}]} {
    %c0 = arith.constant 0 : index
    %c0_0 = arith.constant 0 : index
    %c0_1 = arith.constant 0 : index
    %0 = vector.load %arg9[%c0, %c0_0, %c0_1] : memref<1x16x32xbf16, #tpu.memory_space<vmem>>, vector<1x16x32xbf16>
    %1 = vector.shape_cast %0 : vector<1x16x32xbf16> to vector<16x32xbf16>
    %2 = arith.extf %1 : vector<16x32xbf16> to vector<16x32xf32>
    %c0_2 = arith.constant 0 : index
    %c0_3 = arith.constant 0 : index
    %c0_4 = arith.constant 0 : index
    %3 = vector.load %arg3[%c0_2, %c0_3, %c0_4] : memref<1x16x256xbf16, #tpu.memory_space<vmem>>, vector<1x16x256xbf16>
    %4 = vector.shape_cast %3 : vector<1x16x256xbf16> to vector<16x256xbf16>
    %c0_5 = arith.constant 0 : index
    %c0_6 = arith.constant 0 : index
    %c0_7 = arith.constant 0 : index
    %5 = vector.load %arg6[%c0_5, %c0_6, %c0_7] : memref<3x256x32xbf16, #tpu.memory_space<vmem>>, vector<1x256x32xbf16>
    %6 = vector.shape_cast %5 : vector<1x256x32xbf16> to vector<256x32xbf16>
    %cst = arith.constant dense<0.000000e+00> : vector<16x32xf32>
    %7 = tpu.matmul %4, %6, %cst {dimension_numbers = #tpu.dot_dimension_numbers<[1], [0], [0], [1], [0, 0, 1, 1], [], []>} : vector<16x256xbf16>, vector<256x32xbf16>, vector<16x32xf32> -> vector<16x32xf32>
    %c0_8 = arith.constant 0 : index
    %c0_9 = arith.constant 0 : index
    %c0_10 = arith.constant 0 : index
    %8 = vector.load %arg4[%c0_8, %c0_9, %c0_10] : memref<1x16x256xbf16, #tpu.memory_space<vmem>>, vector<1x16x256xbf16>
    %9 = vector.shape_cast %8 : vector<1x16x256xbf16> to vector<16x256xbf16>
    %c1 = arith.constant 1 : index
    %c0_11 = arith.constant 0 : index
    %c0_12 = arith.constant 0 : index
    %10 = vector.load %arg6[%c1, %c0_11, %c0_12] : memref<3x256x32xbf16, #tpu.memory_space<vmem>>, vector<1x256x32xbf16>
    %11 = vector.shape_cast %10 : vector<1x256x32xbf16> to vector<256x32xbf16>
    %cst_13 = arith.constant dense<0.000000e+00> : vector<16x32xf32>
    %12 = tpu.matmul %9, %11, %cst_13 {dimension_numbers = #tpu.dot_dimension_numbers<[1], [0], [0], [1], [0, 0, 1, 1], [], []>} : vector<16x256xbf16>, vector<256x32xbf16>, vector<16x32xf32> -> vector<16x32xf32>
    %13 = arith.addf %7, %12 : vector<16x32xf32>
    %c0_14 = arith.constant 0 : index
    %c0_15 = arith.constant 0 : index
    %c0_16 = arith.constant 0 : index
    %14 = vector.load %arg5[%c0_14, %c0_15, %c0_16] : memref<1x16x256xbf16, #tpu.memory_space<vmem>>, vector<1x16x256xbf16>
    %15 = vector.shape_cast %14 : vector<1x16x256xbf16> to vector<16x256xbf16>
    %c2 = arith.constant 2 : index
    %c0_17 = arith.constant 0 : index
    %c0_18 = arith.constant 0 : index
    %16 = vector.load %arg6[%c2, %c0_17, %c0_18] : memref<3x256x32xbf16, #tpu.memory_space<vmem>>, vector<1x256x32xbf16>
    %17 = vector.shape_cast %16 : vector<1x256x32xbf16> to vector<256x32xbf16>
    %cst_19 = arith.constant dense<0.000000e+00> : vector<16x32xf32>
    %18 = tpu.matmul %15, %17, %cst_19 {dimension_numbers = #tpu.dot_dimension_numbers<[1], [0], [0], [1], [0, 0, 1, 1], [], []>} : vector<16x256xbf16>, vector<256x32xbf16>, vector<16x32xf32> -> vector<16x32xf32>
    %19 = arith.addf %13, %18 : vector<16x32xf32>
    %c0_20 = arith.constant 0 : index
    %c0_21 = arith.constant 0 : index
    %20 = vector.load %arg7[%c0_20, %c0_21] : memref<1x32xf32, #tpu.memory_space<vmem>>, vector<1x32xf32>
    %21 = vector.broadcast %20 : vector<1x32xf32> to vector<16x32xf32>
    %22 = arith.mulf %19, %21 : vector<16x32xf32>
    %c0_22 = arith.constant 0 : index
    %c0_23 = arith.constant 0 : index
    %23 = vector.load %arg8[%c0_22, %c0_23] : memref<1x32xf32, #tpu.memory_space<vmem>>, vector<1x32xf32>
    %24 = vector.broadcast %23 : vector<1x32xf32> to vector<16x32xf32>
    %25 = arith.addf %22, %24 : vector<16x32xf32>
    %26 = arith.addf %25, %2 : vector<16x32xf32>
    %27 = arith.truncf %26 : vector<16x32xf32> to vector<16x32xbf16>
    %c0_24 = arith.constant 0 : index
    %c0_25 = arith.constant 0 : index
    %c0_26 = arith.constant 0 : index
    %28 = vector.load %arg10[%c0_24, %c0_25, %c0_26] : memref<1x16x32xbf16, #tpu.memory_space<vmem>>, vector<1x16x32xbf16>
    %29 = vector.shape_cast %28 : vector<1x16x32xbf16> to vector<16x32xbf16>
    %30 = vector.shape_cast %27 : vector<16x32xbf16> to vector<1x16x32xbf16>
    tpu.vector_store %arg10[%c0_24, %c0_25, %c0_26], %30 {strides = array<i32>} : memref<1x16x32xbf16, #tpu.memory_space<vmem>>, vector<1x16x32xbf16>,
    return
  }
  func.func @transform_0(%arg0: i32, %arg1: i32, %arg2: i32) -> (i32, i32, i32) {
    %c10_i32 = arith.constant 10 : i32
    %0 = arith.muli %arg0, %c10_i32 : i32
    %1 = arith.addi %0, %arg1 : i32
    %c0_i32 = arith.constant 0 : i32
    %2 = arith.addi %1, %c0_i32 : i32
    %c0_i32_0 = arith.constant 0 : i32
    %c0_i32_1 = arith.constant 0 : i32
    return %2, %arg2, %c0_i32_0 : i32, i32, i32
  }
  func.func @transform_1(%arg0: i32, %arg1: i32, %arg2: i32) -> (i32, i32, i32) {
    %c10_i32 = arith.constant 10 : i32
    %0 = arith.muli %arg0, %c10_i32 : i32
    %1 = arith.addi %0, %arg1 : i32
    %c1_i32 = arith.constant 1 : i32
    %2 = arith.addi %1, %c1_i32 : i32
    %c0_i32 = arith.constant 0 : i32
    %c0_i32_0 = arith.constant 0 : i32
    return %2, %arg2, %c0_i32 : i32, i32, i32
  }
  func.func @transform_2(%arg0: i32, %arg1: i32, %arg2: i32) -> (i32, i32, i32) {
    %c10_i32 = arith.constant 10 : i32
    %0 = arith.muli %arg0, %c10_i32 : i32
    %1 = arith.addi %0, %arg1 : i32
    %c2_i32 = arith.constant 2 : i32
    %2 = arith.addi %1, %c2_i32 : i32
    %c0_i32 = arith.constant 0 : i32
    %c0_i32_0 = arith.constant 0 : i32
    return %2, %arg2, %c0_i32 : i32, i32, i32
  }
  func.func @transform_3(%arg0: i32, %arg1: i32, %arg2: i32) -> (i32, i32, i32) {
    %c0_i32 = arith.constant 0 : i32
    %c0_i32_0 = arith.constant 0 : i32
    %c0_i32_1 = arith.constant 0 : i32
    %c0_i32_2 = arith.constant 0 : i32
    return %c0_i32, %c0_i32_0, %c0_i32_1 : i32, i32, i32
  }
  func.func @transform_4(%arg0: i32, %arg1: i32, %arg2: i32) -> (i32, i32) {
    %c0_i32 = arith.constant 0 : i32
    %c0_i32_0 = arith.constant 0 : i32
    %c0_i32_1 = arith.constant 0 : i32
    return %c0_i32, %c0_i32_0 : i32, i32
  }
  func.func @transform_5(%arg0: i32, %arg1: i32, %arg2: i32) -> (i32, i32) {
    %c0_i32 = arith.constant 0 : i32
    %c0_i32_0 = arith.constant 0 : i32
    %c0_i32_1 = arith.constant 0 : i32
    return %c0_i32, %c0_i32_0 : i32, i32
  }
  func.func @transform_6(%arg0: i32, %arg1: i32, %arg2: i32) -> (i32, i32, i32) {
    %c8_i32 = arith.constant 8 : i32
    %0 = arith.muli %arg0, %c8_i32 : i32
    %1 = arith.addi %0, %arg1 : i32
    %c0_i32 = arith.constant 0 : i32
    %c0_i32_0 = arith.constant 0 : i32
    return %1, %arg2, %c0_i32 : i32, i32, i32
  }
  func.func @transform_7(%arg0: i32, %arg1: i32, %arg2: i32) -> (i32, i32, i32) {
    %c8_i32 = arith.constant 8 : i32
    %0 = arith.muli %arg0, %c8_i32 : i32
    %1 = arith.addi %0, %arg1 : i32
    %c0_i32 = arith.constant 0 : i32
    %c0_i32_0 = arith.constant 0 : i32
    return %1, %arg2, %c0_i32 : i32, i32, i32
  }
}

module attributes {stable_mosaic.version = 11 : i64} {
  func.func @kernel(%arg0: i32, %arg1: i32, %arg2: i32, %arg3: memref<1x64x64xbf16, #tpu.memory_space<vmem>>, %arg4: memref<1x64x64xbf16, #tpu.memory_space<vmem>>, %arg5: memref<1x64x64xbf16, #tpu.memory_space<vmem>>, %arg6: memref<3x64x16xbf16, #tpu.memory_space<vmem>>, %arg7: memref<1x16xf32, #tpu.memory_space<vmem>>, %arg8: memref<1x16xf32, #tpu.memory_space<vmem>>, %arg9: memref<1x64x16xbf16, #tpu.memory_space<vmem>>) attributes {dimension_semantics = [#tpu.dimension_semantics<parallel>, #tpu.dimension_semantics<parallel>, #tpu.dimension_semantics<parallel>], iteration_bounds = array<i64: 1, 8, 1>, scalar_prefetch = 0 : i64, scratch_operands = 0 : i64, tpu.core_type = #tpu.core_type<tc>, window_params = [{transform_indices = @transform_0, window_bounds = array<i64: 1, 64, 64>}, {transform_indices = @transform_1, window_bounds = array<i64: 1, 64, 64>}, {transform_indices = @transform_2, window_bounds = array<i64: 1, 64, 64>}, {pipeline_mode = #tpu.pipeline_mode<synchronous>, transform_indices = @transform_3, window_bounds = array<i64: 3, 64, 16>}, {pipeline_mode = #tpu.pipeline_mode<synchronous>, transform_indices = @transform_4, window_bounds = array<i64: 1, 16>}, {pipeline_mode = #tpu.pipeline_mode<synchronous>, transform_indices = @transform_5, window_bounds = array<i64: 1, 16>}, {transform_indices = @transform_6, window_bounds = array<i64: 1, 64, 16>}]} {
    %c0 = arith.constant 0 : index
    %c0_0 = arith.constant 0 : index
    %c0_1 = arith.constant 0 : index
    %0 = vector.load %arg3[%c0, %c0_0, %c0_1] : memref<1x64x64xbf16, #tpu.memory_space<vmem>>, vector<1x64x64xbf16>
    %1 = vector.shape_cast %0 : vector<1x64x64xbf16> to vector<64x64xbf16>
    %c0_2 = arith.constant 0 : index
    %c0_3 = arith.constant 0 : index
    %c0_4 = arith.constant 0 : index
    %2 = vector.load %arg6[%c0_2, %c0_3, %c0_4] : memref<3x64x16xbf16, #tpu.memory_space<vmem>>, vector<1x64x16xbf16>
    %3 = vector.shape_cast %2 : vector<1x64x16xbf16> to vector<64x16xbf16>
    %cst = arith.constant dense<0.000000e+00> : vector<64x16xf32>
    %4 = tpu.matmul %1, %3, %cst {dimension_numbers = #tpu.dot_dimension_numbers<[1], [0], [0], [1], [0, 0, 1, 1], [], []>} : vector<64x64xbf16>, vector<64x16xbf16>, vector<64x16xf32> -> vector<64x16xf32>
    %c0_5 = arith.constant 0 : index
    %c0_6 = arith.constant 0 : index
    %c0_7 = arith.constant 0 : index
    %5 = vector.load %arg4[%c0_5, %c0_6, %c0_7] : memref<1x64x64xbf16, #tpu.memory_space<vmem>>, vector<1x64x64xbf16>
    %6 = vector.shape_cast %5 : vector<1x64x64xbf16> to vector<64x64xbf16>
    %c1 = arith.constant 1 : index
    %c0_8 = arith.constant 0 : index
    %c0_9 = arith.constant 0 : index
    %7 = vector.load %arg6[%c1, %c0_8, %c0_9] : memref<3x64x16xbf16, #tpu.memory_space<vmem>>, vector<1x64x16xbf16>
    %8 = vector.shape_cast %7 : vector<1x64x16xbf16> to vector<64x16xbf16>
    %cst_10 = arith.constant dense<0.000000e+00> : vector<64x16xf32>
    %9 = tpu.matmul %6, %8, %cst_10 {dimension_numbers = #tpu.dot_dimension_numbers<[1], [0], [0], [1], [0, 0, 1, 1], [], []>} : vector<64x64xbf16>, vector<64x16xbf16>, vector<64x16xf32> -> vector<64x16xf32>
    %10 = arith.addf %4, %9 : vector<64x16xf32>
    %c0_11 = arith.constant 0 : index
    %c0_12 = arith.constant 0 : index
    %c0_13 = arith.constant 0 : index
    %11 = vector.load %arg5[%c0_11, %c0_12, %c0_13] : memref<1x64x64xbf16, #tpu.memory_space<vmem>>, vector<1x64x64xbf16>
    %12 = vector.shape_cast %11 : vector<1x64x64xbf16> to vector<64x64xbf16>
    %c2 = arith.constant 2 : index
    %c0_14 = arith.constant 0 : index
    %c0_15 = arith.constant 0 : index
    %13 = vector.load %arg6[%c2, %c0_14, %c0_15] : memref<3x64x16xbf16, #tpu.memory_space<vmem>>, vector<1x64x16xbf16>
    %14 = vector.shape_cast %13 : vector<1x64x16xbf16> to vector<64x16xbf16>
    %cst_16 = arith.constant dense<0.000000e+00> : vector<64x16xf32>
    %15 = tpu.matmul %12, %14, %cst_16 {dimension_numbers = #tpu.dot_dimension_numbers<[1], [0], [0], [1], [0, 0, 1, 1], [], []>} : vector<64x64xbf16>, vector<64x16xbf16>, vector<64x16xf32> -> vector<64x16xf32>
    %16 = arith.addf %10, %15 : vector<64x16xf32>
    %c0_17 = arith.constant 0 : index
    %c0_18 = arith.constant 0 : index
    %17 = vector.load %arg7[%c0_17, %c0_18] : memref<1x16xf32, #tpu.memory_space<vmem>>, vector<1x16xf32>
    %18 = vector.broadcast %17 : vector<1x16xf32> to vector<64x16xf32>
    %19 = arith.mulf %16, %18 : vector<64x16xf32>
    %c0_19 = arith.constant 0 : index
    %c0_20 = arith.constant 0 : index
    %20 = vector.load %arg8[%c0_19, %c0_20] : memref<1x16xf32, #tpu.memory_space<vmem>>, vector<1x16xf32>
    %21 = vector.broadcast %20 : vector<1x16xf32> to vector<64x16xf32>
    %22 = arith.addf %19, %21 : vector<64x16xf32>
    %23 = arith.truncf %22 : vector<64x16xf32> to vector<64x16xbf16>
    %c0_21 = arith.constant 0 : index
    %c0_22 = arith.constant 0 : index
    %c0_23 = arith.constant 0 : index
    %24 = vector.load %arg9[%c0_21, %c0_22, %c0_23] : memref<1x64x16xbf16, #tpu.memory_space<vmem>>, vector<1x64x16xbf16>
    %25 = vector.shape_cast %24 : vector<1x64x16xbf16> to vector<64x16xbf16>
    %26 = vector.shape_cast %23 : vector<64x16xbf16> to vector<1x64x16xbf16>
    tpu.vector_store %arg9[%c0_21, %c0_22, %c0_23], %26 {strides = array<i32>} : memref<1x64x16xbf16, #tpu.memory_space<vmem>>, vector<1x64x16xbf16>,
    return
  }
  func.func @transform_0(%arg0: i32, %arg1: i32, %arg2: i32) -> (i32, i32, i32) {
    %c10_i32 = arith.constant 10 : i32
    %0 = arith.muli %arg0, %c10_i32 : i32
    %1 = arith.addi %0, %arg1 : i32
    %c0_i32 = arith.constant 0 : i32
    %2 = arith.addi %1, %c0_i32 : i32
    %c0_i32_0 = arith.constant 0 : i32
    %c0_i32_1 = arith.constant 0 : i32
    return %2, %arg2, %c0_i32_0 : i32, i32, i32
  }
  func.func @transform_1(%arg0: i32, %arg1: i32, %arg2: i32) -> (i32, i32, i32) {
    %c10_i32 = arith.constant 10 : i32
    %0 = arith.muli %arg0, %c10_i32 : i32
    %1 = arith.addi %0, %arg1 : i32
    %c1_i32 = arith.constant 1 : i32
    %2 = arith.addi %1, %c1_i32 : i32
    %c0_i32 = arith.constant 0 : i32
    %c0_i32_0 = arith.constant 0 : i32
    return %2, %arg2, %c0_i32 : i32, i32, i32
  }
  func.func @transform_2(%arg0: i32, %arg1: i32, %arg2: i32) -> (i32, i32, i32) {
    %c10_i32 = arith.constant 10 : i32
    %0 = arith.muli %arg0, %c10_i32 : i32
    %1 = arith.addi %0, %arg1 : i32
    %c2_i32 = arith.constant 2 : i32
    %2 = arith.addi %1, %c2_i32 : i32
    %c0_i32 = arith.constant 0 : i32
    %c0_i32_0 = arith.constant 0 : i32
    return %2, %arg2, %c0_i32 : i32, i32, i32
  }
  func.func @transform_3(%arg0: i32, %arg1: i32, %arg2: i32) -> (i32, i32, i32) {
    %c0_i32 = arith.constant 0 : i32
    %c0_i32_0 = arith.constant 0 : i32
    %c0_i32_1 = arith.constant 0 : i32
    %c0_i32_2 = arith.constant 0 : i32
    return %c0_i32, %c0_i32_0, %c0_i32_1 : i32, i32, i32
  }
  func.func @transform_4(%arg0: i32, %arg1: i32, %arg2: i32) -> (i32, i32) {
    %c0_i32 = arith.constant 0 : i32
    %c0_i32_0 = arith.constant 0 : i32
    %c0_i32_1 = arith.constant 0 : i32
    return %c0_i32, %c0_i32_0 : i32, i32
  }
  func.func @transform_5(%arg0: i32, %arg1: i32, %arg2: i32) -> (i32, i32) {
    %c0_i32 = arith.constant 0 : i32
    %c0_i32_0 = arith.constant 0 : i32
    %c0_i32_1 = arith.constant 0 : i32
    return %c0_i32, %c0_i32_0 : i32, i32
  }
  func.func @transform_6(%arg0: i32, %arg1: i32, %arg2: i32) -> (i32, i32, i32) {
    %c8_i32 = arith.constant 8 : i32
    %0 = arith.muli %arg0, %c8_i32 : i32
    %1 = arith.addi %0, %arg1 : i32
    %c0_i32 = arith.constant 0 : i32
    %c0_i32_0 = arith.constant 0 : i32
    return %1, %arg2, %c0_i32 : i32, i32, i32
  }
}

module attributes {stable_mosaic.version = 11 : i64} {
  func.func @kernel(%arg0: i32, %arg1: i32, %arg2: i32, %arg3: memref<1x64x32xbf16, #tpu.memory_space<vmem>>, %arg4: memref<1x64x32xbf16, #tpu.memory_space<vmem>>, %arg5: memref<1x64x32xbf16, #tpu.memory_space<vmem>>, %arg6: memref<3x32x16xbf16, #tpu.memory_space<vmem>>, %arg7: memref<1x16xf32, #tpu.memory_space<vmem>>, %arg8: memref<1x16xf32, #tpu.memory_space<vmem>>, %arg9: memref<1x64x16xbf16, #tpu.memory_space<vmem>>) attributes {dimension_semantics = [#tpu.dimension_semantics<parallel>, #tpu.dimension_semantics<parallel>, #tpu.dimension_semantics<parallel>], iteration_bounds = array<i64: 1, 8, 1>, scalar_prefetch = 0 : i64, scratch_operands = 0 : i64, tpu.core_type = #tpu.core_type<tc>, window_params = [{transform_indices = @transform_0, window_bounds = array<i64: 1, 64, 32>}, {transform_indices = @transform_1, window_bounds = array<i64: 1, 64, 32>}, {transform_indices = @transform_2, window_bounds = array<i64: 1, 64, 32>}, {pipeline_mode = #tpu.pipeline_mode<synchronous>, transform_indices = @transform_3, window_bounds = array<i64: 3, 32, 16>}, {pipeline_mode = #tpu.pipeline_mode<synchronous>, transform_indices = @transform_4, window_bounds = array<i64: 1, 16>}, {pipeline_mode = #tpu.pipeline_mode<synchronous>, transform_indices = @transform_5, window_bounds = array<i64: 1, 16>}, {transform_indices = @transform_6, window_bounds = array<i64: 1, 64, 16>}]} {
    %c0 = arith.constant 0 : index
    %c0_0 = arith.constant 0 : index
    %c0_1 = arith.constant 0 : index
    %0 = vector.load %arg3[%c0, %c0_0, %c0_1] : memref<1x64x32xbf16, #tpu.memory_space<vmem>>, vector<1x64x32xbf16>
    %1 = vector.shape_cast %0 : vector<1x64x32xbf16> to vector<64x32xbf16>
    %c0_2 = arith.constant 0 : index
    %c0_3 = arith.constant 0 : index
    %c0_4 = arith.constant 0 : index
    %2 = vector.load %arg6[%c0_2, %c0_3, %c0_4] : memref<3x32x16xbf16, #tpu.memory_space<vmem>>, vector<1x32x16xbf16>
    %3 = vector.shape_cast %2 : vector<1x32x16xbf16> to vector<32x16xbf16>
    %cst = arith.constant dense<0.000000e+00> : vector<64x16xf32>
    %4 = tpu.matmul %1, %3, %cst {dimension_numbers = #tpu.dot_dimension_numbers<[1], [0], [0], [1], [0, 0, 1, 1], [], []>} : vector<64x32xbf16>, vector<32x16xbf16>, vector<64x16xf32> -> vector<64x16xf32>
    %c0_5 = arith.constant 0 : index
    %c0_6 = arith.constant 0 : index
    %c0_7 = arith.constant 0 : index
    %5 = vector.load %arg4[%c0_5, %c0_6, %c0_7] : memref<1x64x32xbf16, #tpu.memory_space<vmem>>, vector<1x64x32xbf16>
    %6 = vector.shape_cast %5 : vector<1x64x32xbf16> to vector<64x32xbf16>
    %c1 = arith.constant 1 : index
    %c0_8 = arith.constant 0 : index
    %c0_9 = arith.constant 0 : index
    %7 = vector.load %arg6[%c1, %c0_8, %c0_9] : memref<3x32x16xbf16, #tpu.memory_space<vmem>>, vector<1x32x16xbf16>
    %8 = vector.shape_cast %7 : vector<1x32x16xbf16> to vector<32x16xbf16>
    %cst_10 = arith.constant dense<0.000000e+00> : vector<64x16xf32>
    %9 = tpu.matmul %6, %8, %cst_10 {dimension_numbers = #tpu.dot_dimension_numbers<[1], [0], [0], [1], [0, 0, 1, 1], [], []>} : vector<64x32xbf16>, vector<32x16xbf16>, vector<64x16xf32> -> vector<64x16xf32>
    %10 = arith.addf %4, %9 : vector<64x16xf32>
    %c0_11 = arith.constant 0 : index
    %c0_12 = arith.constant 0 : index
    %c0_13 = arith.constant 0 : index
    %11 = vector.load %arg5[%c0_11, %c0_12, %c0_13] : memref<1x64x32xbf16, #tpu.memory_space<vmem>>, vector<1x64x32xbf16>
    %12 = vector.shape_cast %11 : vector<1x64x32xbf16> to vector<64x32xbf16>
    %c2 = arith.constant 2 : index
    %c0_14 = arith.constant 0 : index
    %c0_15 = arith.constant 0 : index
    %13 = vector.load %arg6[%c2, %c0_14, %c0_15] : memref<3x32x16xbf16, #tpu.memory_space<vmem>>, vector<1x32x16xbf16>
    %14 = vector.shape_cast %13 : vector<1x32x16xbf16> to vector<32x16xbf16>
    %cst_16 = arith.constant dense<0.000000e+00> : vector<64x16xf32>
    %15 = tpu.matmul %12, %14, %cst_16 {dimension_numbers = #tpu.dot_dimension_numbers<[1], [0], [0], [1], [0, 0, 1, 1], [], []>} : vector<64x32xbf16>, vector<32x16xbf16>, vector<64x16xf32> -> vector<64x16xf32>
    %16 = arith.addf %10, %15 : vector<64x16xf32>
    %c0_17 = arith.constant 0 : index
    %c0_18 = arith.constant 0 : index
    %17 = vector.load %arg7[%c0_17, %c0_18] : memref<1x16xf32, #tpu.memory_space<vmem>>, vector<1x16xf32>
    %18 = vector.broadcast %17 : vector<1x16xf32> to vector<64x16xf32>
    %19 = arith.mulf %16, %18 : vector<64x16xf32>
    %c0_19 = arith.constant 0 : index
    %c0_20 = arith.constant 0 : index
    %20 = vector.load %arg8[%c0_19, %c0_20] : memref<1x16xf32, #tpu.memory_space<vmem>>, vector<1x16xf32>
    %21 = vector.broadcast %20 : vector<1x16xf32> to vector<64x16xf32>
    %22 = arith.addf %19, %21 : vector<64x16xf32>
    %23 = arith.truncf %22 : vector<64x16xf32> to vector<64x16xbf16>
    %c0_21 = arith.constant 0 : index
    %c0_22 = arith.constant 0 : index
    %c0_23 = arith.constant 0 : index
    %24 = vector.load %arg9[%c0_21, %c0_22, %c0_23] : memref<1x64x16xbf16, #tpu.memory_space<vmem>>, vector<1x64x16xbf16>
    %25 = vector.shape_cast %24 : vector<1x64x16xbf16> to vector<64x16xbf16>
    %26 = vector.shape_cast %23 : vector<64x16xbf16> to vector<1x64x16xbf16>
    tpu.vector_store %arg9[%c0_21, %c0_22, %c0_23], %26 {strides = array<i32>} : memref<1x64x16xbf16, #tpu.memory_space<vmem>>, vector<1x64x16xbf16>,
    return
  }
  func.func @transform_0(%arg0: i32, %arg1: i32, %arg2: i32) -> (i32, i32, i32) {
    %c10_i32 = arith.constant 10 : i32
    %0 = arith.muli %arg0, %c10_i32 : i32
    %1 = arith.addi %0, %arg1 : i32
    %c0_i32 = arith.constant 0 : i32
    %2 = arith.addi %1, %c0_i32 : i32
    %c0_i32_0 = arith.constant 0 : i32
    %c0_i32_1 = arith.constant 0 : i32
    return %2, %arg2, %c0_i32_0 : i32, i32, i32
  }
  func.func @transform_1(%arg0: i32, %arg1: i32, %arg2: i32) -> (i32, i32, i32) {
    %c10_i32 = arith.constant 10 : i32
    %0 = arith.muli %arg0, %c10_i32 : i32
    %1 = arith.addi %0, %arg1 : i32
    %c1_i32 = arith.constant 1 : i32
    %2 = arith.addi %1, %c1_i32 : i32
    %c0_i32 = arith.constant 0 : i32
    %c0_i32_0 = arith.constant 0 : i32
    return %2, %arg2, %c0_i32 : i32, i32, i32
  }
  func.func @transform_2(%arg0: i32, %arg1: i32, %arg2: i32) -> (i32, i32, i32) {
    %c10_i32 = arith.constant 10 : i32
    %0 = arith.muli %arg0, %c10_i32 : i32
    %1 = arith.addi %0, %arg1 : i32
    %c2_i32 = arith.constant 2 : i32
    %2 = arith.addi %1, %c2_i32 : i32
    %c0_i32 = arith.constant 0 : i32
    %c0_i32_0 = arith.constant 0 : i32
    return %2, %arg2, %c0_i32 : i32, i32, i32
  }
  func.func @transform_3(%arg0: i32, %arg1: i32, %arg2: i32) -> (i32, i32, i32) {
    %c0_i32 = arith.constant 0 : i32
    %c0_i32_0 = arith.constant 0 : i32
    %c0_i32_1 = arith.constant 0 : i32
    %c0_i32_2 = arith.constant 0 : i32
    return %c0_i32, %c0_i32_0, %c0_i32_1 : i32, i32, i32
  }
  func.func @transform_4(%arg0: i32, %arg1: i32, %arg2: i32) -> (i32, i32) {
    %c0_i32 = arith.constant 0 : i32
    %c0_i32_0 = arith.constant 0 : i32
    %c0_i32_1 = arith.constant 0 : i32
    return %c0_i32, %c0_i32_0 : i32, i32
  }
  func.func @transform_5(%arg0: i32, %arg1: i32, %arg2: i32) -> (i32, i32) {
    %c0_i32 = arith.constant 0 : i32
    %c0_i32_0 = arith.constant 0 : i32
    %c0_i32_1 = arith.constant 0 : i32
    return %c0_i32, %c0_i32_0 : i32, i32
  }
  func.func @transform_6(%arg0: i32, %arg1: i32, %arg2: i32) -> (i32, i32, i32) {
    %c8_i32 = arith.constant 8 : i32
    %0 = arith.muli %arg0, %c8_i32 : i32
    %1 = arith.addi %0, %arg1 : i32
    %c0_i32 = arith.constant 0 : i32
    %c0_i32_0 = arith.constant 0 : i32
    return %1, %arg2, %c0_i32 : i32, i32, i32
  }
}

module attributes {stable_mosaic.version = 11 : i64} {
  func.func @kernel(%arg0: i32, %arg1: i32, %arg2: i32, %arg3: memref<1x64x128xbf16, #tpu.memory_space<vmem>>, %arg4: memref<1x64x128xbf16, #tpu.memory_space<vmem>>, %arg5: memref<1x64x128xbf16, #tpu.memory_space<vmem>>, %arg6: memref<3x128x16xbf16, #tpu.memory_space<vmem>>, %arg7: memref<1x16xf32, #tpu.memory_space<vmem>>, %arg8: memref<1x16xf32, #tpu.memory_space<vmem>>, %arg9: memref<1x64x16xbf16, #tpu.memory_space<vmem>>) attributes {dimension_semantics = [#tpu.dimension_semantics<parallel>, #tpu.dimension_semantics<parallel>, #tpu.dimension_semantics<parallel>], iteration_bounds = array<i64: 1, 8, 1>, scalar_prefetch = 0 : i64, scratch_operands = 0 : i64, tpu.core_type = #tpu.core_type<tc>, window_params = [{transform_indices = @transform_0, window_bounds = array<i64: 1, 64, 128>}, {transform_indices = @transform_1, window_bounds = array<i64: 1, 64, 128>}, {transform_indices = @transform_2, window_bounds = array<i64: 1, 64, 128>}, {pipeline_mode = #tpu.pipeline_mode<synchronous>, transform_indices = @transform_3, window_bounds = array<i64: 3, 128, 16>}, {pipeline_mode = #tpu.pipeline_mode<synchronous>, transform_indices = @transform_4, window_bounds = array<i64: 1, 16>}, {pipeline_mode = #tpu.pipeline_mode<synchronous>, transform_indices = @transform_5, window_bounds = array<i64: 1, 16>}, {transform_indices = @transform_6, window_bounds = array<i64: 1, 64, 16>}]} {
    %c0 = arith.constant 0 : index
    %c0_0 = arith.constant 0 : index
    %c0_1 = arith.constant 0 : index
    %0 = vector.load %arg3[%c0, %c0_0, %c0_1] : memref<1x64x128xbf16, #tpu.memory_space<vmem>>, vector<1x64x128xbf16>
    %1 = vector.shape_cast %0 : vector<1x64x128xbf16> to vector<64x128xbf16>
    %c0_2 = arith.constant 0 : index
    %c0_3 = arith.constant 0 : index
    %c0_4 = arith.constant 0 : index
    %2 = vector.load %arg6[%c0_2, %c0_3, %c0_4] : memref<3x128x16xbf16, #tpu.memory_space<vmem>>, vector<1x128x16xbf16>
    %3 = vector.shape_cast %2 : vector<1x128x16xbf16> to vector<128x16xbf16>
    %cst = arith.constant dense<0.000000e+00> : vector<64x16xf32>
    %4 = tpu.matmul %1, %3, %cst {dimension_numbers = #tpu.dot_dimension_numbers<[1], [0], [0], [1], [0, 0, 1, 1], [], []>} : vector<64x128xbf16>, vector<128x16xbf16>, vector<64x16xf32> -> vector<64x16xf32>
    %c0_5 = arith.constant 0 : index
    %c0_6 = arith.constant 0 : index
    %c0_7 = arith.constant 0 : index
    %5 = vector.load %arg4[%c0_5, %c0_6, %c0_7] : memref<1x64x128xbf16, #tpu.memory_space<vmem>>, vector<1x64x128xbf16>
    %6 = vector.shape_cast %5 : vector<1x64x128xbf16> to vector<64x128xbf16>
    %c1 = arith.constant 1 : index
    %c0_8 = arith.constant 0 : index
    %c0_9 = arith.constant 0 : index
    %7 = vector.load %arg6[%c1, %c0_8, %c0_9] : memref<3x128x16xbf16, #tpu.memory_space<vmem>>, vector<1x128x16xbf16>
    %8 = vector.shape_cast %7 : vector<1x128x16xbf16> to vector<128x16xbf16>
    %cst_10 = arith.constant dense<0.000000e+00> : vector<64x16xf32>
    %9 = tpu.matmul %6, %8, %cst_10 {dimension_numbers = #tpu.dot_dimension_numbers<[1], [0], [0], [1], [0, 0, 1, 1], [], []>} : vector<64x128xbf16>, vector<128x16xbf16>, vector<64x16xf32> -> vector<64x16xf32>
    %10 = arith.addf %4, %9 : vector<64x16xf32>
    %c0_11 = arith.constant 0 : index
    %c0_12 = arith.constant 0 : index
    %c0_13 = arith.constant 0 : index
    %11 = vector.load %arg5[%c0_11, %c0_12, %c0_13] : memref<1x64x128xbf16, #tpu.memory_space<vmem>>, vector<1x64x128xbf16>
    %12 = vector.shape_cast %11 : vector<1x64x128xbf16> to vector<64x128xbf16>
    %c2 = arith.constant 2 : index
    %c0_14 = arith.constant 0 : index
    %c0_15 = arith.constant 0 : index
    %13 = vector.load %arg6[%c2, %c0_14, %c0_15] : memref<3x128x16xbf16, #tpu.memory_space<vmem>>, vector<1x128x16xbf16>
    %14 = vector.shape_cast %13 : vector<1x128x16xbf16> to vector<128x16xbf16>
    %cst_16 = arith.constant dense<0.000000e+00> : vector<64x16xf32>
    %15 = tpu.matmul %12, %14, %cst_16 {dimension_numbers = #tpu.dot_dimension_numbers<[1], [0], [0], [1], [0, 0, 1, 1], [], []>} : vector<64x128xbf16>, vector<128x16xbf16>, vector<64x16xf32> -> vector<64x16xf32>
    %16 = arith.addf %10, %15 : vector<64x16xf32>
    %c0_17 = arith.constant 0 : index
    %c0_18 = arith.constant 0 : index
    %17 = vector.load %arg7[%c0_17, %c0_18] : memref<1x16xf32, #tpu.memory_space<vmem>>, vector<1x16xf32>
    %18 = vector.broadcast %17 : vector<1x16xf32> to vector<64x16xf32>
    %19 = arith.mulf %16, %18 : vector<64x16xf32>
    %c0_19 = arith.constant 0 : index
    %c0_20 = arith.constant 0 : index
    %20 = vector.load %arg8[%c0_19, %c0_20] : memref<1x16xf32, #tpu.memory_space<vmem>>, vector<1x16xf32>
    %21 = vector.broadcast %20 : vector<1x16xf32> to vector<64x16xf32>
    %22 = arith.addf %19, %21 : vector<64x16xf32>
    %23 = arith.truncf %22 : vector<64x16xf32> to vector<64x16xbf16>
    %c0_21 = arith.constant 0 : index
    %c0_22 = arith.constant 0 : index
    %c0_23 = arith.constant 0 : index
    %24 = vector.load %arg9[%c0_21, %c0_22, %c0_23] : memref<1x64x16xbf16, #tpu.memory_space<vmem>>, vector<1x64x16xbf16>
    %25 = vector.shape_cast %24 : vector<1x64x16xbf16> to vector<64x16xbf16>
    %26 = vector.shape_cast %23 : vector<64x16xbf16> to vector<1x64x16xbf16>
    tpu.vector_store %arg9[%c0_21, %c0_22, %c0_23], %26 {strides = array<i32>} : memref<1x64x16xbf16, #tpu.memory_space<vmem>>, vector<1x64x16xbf16>,
    return
  }
  func.func @transform_0(%arg0: i32, %arg1: i32, %arg2: i32) -> (i32, i32, i32) {
    %c10_i32 = arith.constant 10 : i32
    %0 = arith.muli %arg0, %c10_i32 : i32
    %1 = arith.addi %0, %arg1 : i32
    %c0_i32 = arith.constant 0 : i32
    %2 = arith.addi %1, %c0_i32 : i32
    %c0_i32_0 = arith.constant 0 : i32
    %c0_i32_1 = arith.constant 0 : i32
    return %2, %arg2, %c0_i32_0 : i32, i32, i32
  }
  func.func @transform_1(%arg0: i32, %arg1: i32, %arg2: i32) -> (i32, i32, i32) {
    %c10_i32 = arith.constant 10 : i32
    %0 = arith.muli %arg0, %c10_i32 : i32
    %1 = arith.addi %0, %arg1 : i32
    %c1_i32 = arith.constant 1 : i32
    %2 = arith.addi %1, %c1_i32 : i32
    %c0_i32 = arith.constant 0 : i32
    %c0_i32_0 = arith.constant 0 : i32
    return %2, %arg2, %c0_i32 : i32, i32, i32
  }
  func.func @transform_2(%arg0: i32, %arg1: i32, %arg2: i32) -> (i32, i32, i32) {
    %c10_i32 = arith.constant 10 : i32
    %0 = arith.muli %arg0, %c10_i32 : i32
    %1 = arith.addi %0, %arg1 : i32
    %c2_i32 = arith.constant 2 : i32
    %2 = arith.addi %1, %c2_i32 : i32
    %c0_i32 = arith.constant 0 : i32
    %c0_i32_0 = arith.constant 0 : i32
    return %2, %arg2, %c0_i32 : i32, i32, i32
  }
  func.func @transform_3(%arg0: i32, %arg1: i32, %arg2: i32) -> (i32, i32, i32) {
    %c0_i32 = arith.constant 0 : i32
    %c0_i32_0 = arith.constant 0 : i32
    %c0_i32_1 = arith.constant 0 : i32
    %c0_i32_2 = arith.constant 0 : i32
    return %c0_i32, %c0_i32_0, %c0_i32_1 : i32, i32, i32
  }
  func.func @transform_4(%arg0: i32, %arg1: i32, %arg2: i32) -> (i32, i32) {
    %c0_i32 = arith.constant 0 : i32
    %c0_i32_0 = arith.constant 0 : i32
    %c0_i32_1 = arith.constant 0 : i32
    return %c0_i32, %c0_i32_0 : i32, i32
  }
  func.func @transform_5(%arg0: i32, %arg1: i32, %arg2: i32) -> (i32, i32) {
    %c0_i32 = arith.constant 0 : i32
    %c0_i32_0 = arith.constant 0 : i32
    %c0_i32_1 = arith.constant 0 : i32
    return %c0_i32, %c0_i32_0 : i32, i32
  }
  func.func @transform_6(%arg0: i32, %arg1: i32, %arg2: i32) -> (i32, i32, i32) {
    %c8_i32 = arith.constant 8 : i32
    %0 = arith.muli %arg0, %c8_i32 : i32
    %1 = arith.addi %0, %arg1 : i32
    %c0_i32 = arith.constant 0 : i32
    %c0_i32_0 = arith.constant 0 : i32
    return %1, %arg2, %c0_i32 : i32, i32, i32
  }
}

module attributes {stable_mosaic.version = 11 : i64} {
  func.func @kernel(%arg0: i32, %arg1: i32, %arg2: i32, %arg3: memref<1x256x144xbf16, #tpu.memory_space<vmem>>, %arg4: memref<1x256x144xbf16, #tpu.memory_space<vmem>>, %arg5: memref<1x256x144xbf16, #tpu.memory_space<vmem>>, %arg6: memref<3x144x32xbf16, #tpu.memory_space<vmem>>, %arg7: memref<1x32xf32, #tpu.memory_space<vmem>>, %arg8: memref<1x32xf32, #tpu.memory_space<vmem>>, %arg9: memref<1x256x32xbf16, #tpu.memory_space<vmem>>) attributes {dimension_semantics = [#tpu.dimension_semantics<parallel>, #tpu.dimension_semantics<parallel>, #tpu.dimension_semantics<parallel>], iteration_bounds = array<i64: 1, 8, 1>, scalar_prefetch = 0 : i64, scratch_operands = 0 : i64, tpu.core_type = #tpu.core_type<tc>, window_params = [{transform_indices = @transform_0, window_bounds = array<i64: 1, 256, 144>}, {transform_indices = @transform_1, window_bounds = array<i64: 1, 256, 144>}, {transform_indices = @transform_2, window_bounds = array<i64: 1, 256, 144>}, {pipeline_mode = #tpu.pipeline_mode<synchronous>, transform_indices = @transform_3, window_bounds = array<i64: 3, 144, 32>}, {pipeline_mode = #tpu.pipeline_mode<synchronous>, transform_indices = @transform_4, window_bounds = array<i64: 1, 32>}, {pipeline_mode = #tpu.pipeline_mode<synchronous>, transform_indices = @transform_5, window_bounds = array<i64: 1, 32>}, {transform_indices = @transform_6, window_bounds = array<i64: 1, 256, 32>}]} {
    %c0 = arith.constant 0 : index
    %c0_0 = arith.constant 0 : index
    %c0_1 = arith.constant 0 : index
    %0 = vector.load %arg3[%c0, %c0_0, %c0_1] : memref<1x256x144xbf16, #tpu.memory_space<vmem>>, vector<1x256x144xbf16>
    %1 = vector.shape_cast %0 : vector<1x256x144xbf16> to vector<256x144xbf16>
    %c0_2 = arith.constant 0 : index
    %c0_3 = arith.constant 0 : index
    %c0_4 = arith.constant 0 : index
    %2 = vector.load %arg6[%c0_2, %c0_3, %c0_4] : memref<3x144x32xbf16, #tpu.memory_space<vmem>>, vector<1x144x32xbf16>
    %3 = vector.shape_cast %2 : vector<1x144x32xbf16> to vector<144x32xbf16>
    %cst = arith.constant dense<0.000000e+00> : vector<256x32xf32>
    %4 = tpu.matmul %1, %3, %cst {dimension_numbers = #tpu.dot_dimension_numbers<[1], [0], [0], [1], [0, 0, 1, 1], [], []>} : vector<256x144xbf16>, vector<144x32xbf16>, vector<256x32xf32> -> vector<256x32xf32>
    %c0_5 = arith.constant 0 : index
    %c0_6 = arith.constant 0 : index
    %c0_7 = arith.constant 0 : index
    %5 = vector.load %arg4[%c0_5, %c0_6, %c0_7] : memref<1x256x144xbf16, #tpu.memory_space<vmem>>, vector<1x256x144xbf16>
    %6 = vector.shape_cast %5 : vector<1x256x144xbf16> to vector<256x144xbf16>
    %c1 = arith.constant 1 : index
    %c0_8 = arith.constant 0 : index
    %c0_9 = arith.constant 0 : index
    %7 = vector.load %arg6[%c1, %c0_8, %c0_9] : memref<3x144x32xbf16, #tpu.memory_space<vmem>>, vector<1x144x32xbf16>
    %8 = vector.shape_cast %7 : vector<1x144x32xbf16> to vector<144x32xbf16>
    %cst_10 = arith.constant dense<0.000000e+00> : vector<256x32xf32>
    %9 = tpu.matmul %6, %8, %cst_10 {dimension_numbers = #tpu.dot_dimension_numbers<[1], [0], [0], [1], [0, 0, 1, 1], [], []>} : vector<256x144xbf16>, vector<144x32xbf16>, vector<256x32xf32> -> vector<256x32xf32>
    %10 = arith.addf %4, %9 : vector<256x32xf32>
    %c0_11 = arith.constant 0 : index
    %c0_12 = arith.constant 0 : index
    %c0_13 = arith.constant 0 : index
    %11 = vector.load %arg5[%c0_11, %c0_12, %c0_13] : memref<1x256x144xbf16, #tpu.memory_space<vmem>>, vector<1x256x144xbf16>
    %12 = vector.shape_cast %11 : vector<1x256x144xbf16> to vector<256x144xbf16>
    %c2 = arith.constant 2 : index
    %c0_14 = arith.constant 0 : index
    %c0_15 = arith.constant 0 : index
    %13 = vector.load %arg6[%c2, %c0_14, %c0_15] : memref<3x144x32xbf16, #tpu.memory_space<vmem>>, vector<1x144x32xbf16>
    %14 = vector.shape_cast %13 : vector<1x144x32xbf16> to vector<144x32xbf16>
    %cst_16 = arith.constant dense<0.000000e+00> : vector<256x32xf32>
    %15 = tpu.matmul %12, %14, %cst_16 {dimension_numbers = #tpu.dot_dimension_numbers<[1], [0], [0], [1], [0, 0, 1, 1], [], []>} : vector<256x144xbf16>, vector<144x32xbf16>, vector<256x32xf32> -> vector<256x32xf32>
    %16 = arith.addf %10, %15 : vector<256x32xf32>
    %c0_17 = arith.constant 0 : index
    %c0_18 = arith.constant 0 : index
    %17 = vector.load %arg7[%c0_17, %c0_18] : memref<1x32xf32, #tpu.memory_space<vmem>>, vector<1x32xf32>
    %18 = vector.broadcast %17 : vector<1x32xf32> to vector<256x32xf32>
    %19 = arith.mulf %16, %18 : vector<256x32xf32>
    %c0_19 = arith.constant 0 : index
    %c0_20 = arith.constant 0 : index
    %20 = vector.load %arg8[%c0_19, %c0_20] : memref<1x32xf32, #tpu.memory_space<vmem>>, vector<1x32xf32>
    %21 = vector.broadcast %20 : vector<1x32xf32> to vector<256x32xf32>
    %22 = arith.addf %19, %21 : vector<256x32xf32>
    %cst_21 = arith.constant 0.000000e+00 : f32
    %23 = vector.broadcast %cst_21 : f32 to vector<256x32xf32>
    %24 = arith.cmpf ogt, %22, %23 : vector<256x32xf32>
    %cst_22 = arith.constant 1.000000e-01 : f32
    %25 = vector.broadcast %cst_22 : f32 to vector<256x32xf32>
    %26 = arith.mulf %25, %22 : vector<256x32xf32>
    %27 = arith.select %24, %22, %26 : vector<256x32xi1>, vector<256x32xf32>
    %28 = arith.truncf %27 : vector<256x32xf32> to vector<256x32xbf16>
    %c0_23 = arith.constant 0 : index
    %c0_24 = arith.constant 0 : index
    %c0_25 = arith.constant 0 : index
    %29 = vector.load %arg9[%c0_23, %c0_24, %c0_25] : memref<1x256x32xbf16, #tpu.memory_space<vmem>>, vector<1x256x32xbf16>
    %30 = vector.shape_cast %29 : vector<1x256x32xbf16> to vector<256x32xbf16>
    %31 = vector.shape_cast %28 : vector<256x32xbf16> to vector<1x256x32xbf16>
    tpu.vector_store %arg9[%c0_23, %c0_24, %c0_25], %31 {strides = array<i32>} : memref<1x256x32xbf16, #tpu.memory_space<vmem>>, vector<1x256x32xbf16>,
    return
  }
  func.func @transform_0(%arg0: i32, %arg1: i32, %arg2: i32) -> (i32, i32, i32) {
    %c10_i32 = arith.constant 10 : i32
    %0 = arith.muli %arg0, %c10_i32 : i32
    %1 = arith.addi %0, %arg1 : i32
    %c0_i32 = arith.constant 0 : i32
    %2 = arith.addi %1, %c0_i32 : i32
    %c0_i32_0 = arith.constant 0 : i32
    %c0_i32_1 = arith.constant 0 : i32
    return %2, %arg2, %c0_i32_0 : i32, i32, i32
  }
  func.func @transform_1(%arg0: i32, %arg1: i32, %arg2: i32) -> (i32, i32, i32) {
    %c10_i32 = arith.constant 10 : i32
    %0 = arith.muli %arg0, %c10_i32 : i32
    %1 = arith.addi %0, %arg1 : i32
    %c1_i32 = arith.constant 1 : i32
    %2 = arith.addi %1, %c1_i32 : i32
    %c0_i32 = arith.constant 0 : i32
    %c0_i32_0 = arith.constant 0 : i32
    return %2, %arg2, %c0_i32 : i32, i32, i32
  }
  func.func @transform_2(%arg0: i32, %arg1: i32, %arg2: i32) -> (i32, i32, i32) {
    %c10_i32 = arith.constant 10 : i32
    %0 = arith.muli %arg0, %c10_i32 : i32
    %1 = arith.addi %0, %arg1 : i32
    %c2_i32 = arith.constant 2 : i32
    %2 = arith.addi %1, %c2_i32 : i32
    %c0_i32 = arith.constant 0 : i32
    %c0_i32_0 = arith.constant 0 : i32
    return %2, %arg2, %c0_i32 : i32, i32, i32
  }
  func.func @transform_3(%arg0: i32, %arg1: i32, %arg2: i32) -> (i32, i32, i32) {
    %c0_i32 = arith.constant 0 : i32
    %c0_i32_0 = arith.constant 0 : i32
    %c0_i32_1 = arith.constant 0 : i32
    %c0_i32_2 = arith.constant 0 : i32
    return %c0_i32, %c0_i32_0, %c0_i32_1 : i32, i32, i32
  }
  func.func @transform_4(%arg0: i32, %arg1: i32, %arg2: i32) -> (i32, i32) {
    %c0_i32 = arith.constant 0 : i32
    %c0_i32_0 = arith.constant 0 : i32
    %c0_i32_1 = arith.constant 0 : i32
    return %c0_i32, %c0_i32_0 : i32, i32
  }
  func.func @transform_5(%arg0: i32, %arg1: i32, %arg2: i32) -> (i32, i32) {
    %c0_i32 = arith.constant 0 : i32
    %c0_i32_0 = arith.constant 0 : i32
    %c0_i32_1 = arith.constant 0 : i32
    return %c0_i32, %c0_i32_0 : i32, i32
  }
  func.func @transform_6(%arg0: i32, %arg1: i32, %arg2: i32) -> (i32, i32, i32) {
    %c8_i32 = arith.constant 8 : i32
    %0 = arith.muli %arg0, %c8_i32 : i32
    %1 = arith.addi %0, %arg1 : i32
    %c0_i32 = arith.constant 0 : i32
    %c0_i32_0 = arith.constant 0 : i32
    return %1, %arg2, %c0_i32 : i32, i32, i32
  }
}

module attributes {stable_mosaic.version = 11 : i64} {
  func.func @_matvec_kernel(%arg0: i32, %arg1: i32, %arg2: i32, %arg3: memref<1x256x288xbf16, #tpu.memory_space<vmem>>, %arg4: memref<1x256x288xbf16, #tpu.memory_space<vmem>>, %arg5: memref<1x256x288xbf16, #tpu.memory_space<vmem>>, %arg6: memref<3x1x288xf32, #tpu.memory_space<vmem>>, %arg7: memref<1x1x256xf32, #tpu.memory_space<vmem>>) attributes {dimension_semantics = [#tpu.dimension_semantics<parallel>, #tpu.dimension_semantics<parallel>, #tpu.dimension_semantics<parallel>], iteration_bounds = array<i64: 1, 8, 1>, scalar_prefetch = 0 : i64, scratch_operands = 0 : i64, tpu.core_type = #tpu.core_type<tc>, window_params = [{transform_indices = @transform_0, window_bounds = array<i64: 1, 256, 288>}, {transform_indices = @transform_1, window_bounds = array<i64: 1, 256, 288>}, {transform_indices = @transform_2, window_bounds = array<i64: 1, 256, 288>}, {pipeline_mode = #tpu.pipeline_mode<synchronous>, transform_indices = @transform_3, window_bounds = array<i64: 3, 1, 288>}, {transform_indices = @transform_4, window_bounds = array<i64: 1, 1, 256>}]} {
    %c0 = arith.constant 0 : index
    %c0_0 = arith.constant 0 : index
    %c0_1 = arith.constant 0 : index
    %0 = vector.load %arg3[%c0, %c0_0, %c0_1] : memref<1x256x288xbf16, #tpu.memory_space<vmem>>, vector<1x256x288xbf16>
    %1 = vector.shape_cast %0 : vector<1x256x288xbf16> to vector<256x288xbf16>
    %2 = arith.extf %1 : vector<256x288xbf16> to vector<256x288xf32>
    %c0_2 = arith.constant 0 : index
    %c0_3 = arith.constant 0 : index
    %c0_4 = arith.constant 0 : index
    %3 = vector.load %arg6[%c0_2, %c0_3, %c0_4] : memref<3x1x288xf32, #tpu.memory_space<vmem>>, vector<1x1x288xf32>
    %4 = vector.shape_cast %3 : vector<1x1x288xf32> to vector<1x288xf32>
    %5 = vector.broadcast %4 : vector<1x288xf32> to vector<256x288xf32>
    %6 = arith.mulf %2, %5 : vector<256x288xf32>
    %cst = arith.constant dense<0.000000e+00> : vector<256xf32>
    %7 = vector.multi_reduction <add>, %6, %cst [1] : vector<256x288xf32> to vector<256xf32>
    %c0_5 = arith.constant 0 : index
    %c0_6 = arith.constant 0 : index
    %c0_7 = arith.constant 0 : index
    %8 = vector.load %arg4[%c0_5, %c0_6, %c0_7] : memref<1x256x288xbf16, #tpu.memory_space<vmem>>, vector<1x256x288xbf16>
    %9 = vector.shape_cast %8 : vector<1x256x288xbf16> to vector<256x288xbf16>
    %10 = arith.extf %9 : vector<256x288xbf16> to vector<256x288xf32>
    %c1 = arith.constant 1 : index
    %c0_8 = arith.constant 0 : index
    %c0_9 = arith.constant 0 : index
    %11 = vector.load %arg6[%c1, %c0_8, %c0_9] : memref<3x1x288xf32, #tpu.memory_space<vmem>>, vector<1x1x288xf32>
    %12 = vector.shape_cast %11 : vector<1x1x288xf32> to vector<1x288xf32>
    %13 = vector.broadcast %12 : vector<1x288xf32> to vector<256x288xf32>
    %14 = arith.mulf %10, %13 : vector<256x288xf32>
    %cst_10 = arith.constant dense<0.000000e+00> : vector<256xf32>
    %15 = vector.multi_reduction <add>, %14, %cst_10 [1] : vector<256x288xf32> to vector<256xf32>
    %16 = arith.addf %7, %15 : vector<256xf32>
    %c0_11 = arith.constant 0 : index
    %c0_12 = arith.constant 0 : index
    %c0_13 = arith.constant 0 : index
    %17 = vector.load %arg5[%c0_11, %c0_12, %c0_13] : memref<1x256x288xbf16, #tpu.memory_space<vmem>>, vector<1x256x288xbf16>
    %18 = vector.shape_cast %17 : vector<1x256x288xbf16> to vector<256x288xbf16>
    %19 = arith.extf %18 : vector<256x288xbf16> to vector<256x288xf32>
    %c2 = arith.constant 2 : index
    %c0_14 = arith.constant 0 : index
    %c0_15 = arith.constant 0 : index
    %20 = vector.load %arg6[%c2, %c0_14, %c0_15] : memref<3x1x288xf32, #tpu.memory_space<vmem>>, vector<1x1x288xf32>
    %21 = vector.shape_cast %20 : vector<1x1x288xf32> to vector<1x288xf32>
    %22 = vector.broadcast %21 : vector<1x288xf32> to vector<256x288xf32>
    %23 = arith.mulf %19, %22 : vector<256x288xf32>
    %cst_16 = arith.constant dense<0.000000e+00> : vector<256xf32>
    %24 = vector.multi_reduction <add>, %23, %cst_16 [1] : vector<256x288xf32> to vector<256xf32>
    %25 = arith.addf %16, %24 : vector<256xf32>
    %26 = vector.shape_cast %25 : vector<256xf32> to vector<1x1x256xf32>
    %c0_17 = arith.constant 0 : index
    %c0_18 = arith.constant 0 : index
    %c0_19 = arith.constant 0 : index
    %27 = vector.load %arg7[%c0_17, %c0_18, %c0_19] : memref<1x1x256xf32, #tpu.memory_space<vmem>>, vector<1x1x256xf32>
    tpu.vector_store %arg7[%c0_17, %c0_18, %c0_19], %26 {strides = array<i32>} : memref<1x1x256xf32, #tpu.memory_space<vmem>>, vector<1x1x256xf32>,
    return
  }
  func.func @transform_0(%arg0: i32, %arg1: i32, %arg2: i32) -> (i32, i32, i32) {
    %c10_i32 = arith.constant 10 : i32
    %0 = arith.muli %arg0, %c10_i32 : i32
    %1 = arith.addi %0, %arg1 : i32
    %c0_i32 = arith.constant 0 : i32
    %2 = arith.addi %1, %c0_i32 : i32
    %c0_i32_0 = arith.constant 0 : i32
    %c0_i32_1 = arith.constant 0 : i32
    return %2, %arg2, %c0_i32_0 : i32, i32, i32
  }
  func.func @transform_1(%arg0: i32, %arg1: i32, %arg2: i32) -> (i32, i32, i32) {
    %c10_i32 = arith.constant 10 : i32
    %0 = arith.muli %arg0, %c10_i32 : i32
    %1 = arith.addi %0, %arg1 : i32
    %c1_i32 = arith.constant 1 : i32
    %2 = arith.addi %1, %c1_i32 : i32
    %c0_i32 = arith.constant 0 : i32
    %c0_i32_0 = arith.constant 0 : i32
    return %2, %arg2, %c0_i32 : i32, i32, i32
  }
  func.func @transform_2(%arg0: i32, %arg1: i32, %arg2: i32) -> (i32, i32, i32) {
    %c10_i32 = arith.constant 10 : i32
    %0 = arith.muli %arg0, %c10_i32 : i32
    %1 = arith.addi %0, %arg1 : i32
    %c2_i32 = arith.constant 2 : i32
    %2 = arith.addi %1, %c2_i32 : i32
    %c0_i32 = arith.constant 0 : i32
    %c0_i32_0 = arith.constant 0 : i32
    return %2, %arg2, %c0_i32 : i32, i32, i32
  }
  func.func @transform_3(%arg0: i32, %arg1: i32, %arg2: i32) -> (i32, i32, i32) {
    %c0_i32 = arith.constant 0 : i32
    %c0_i32_0 = arith.constant 0 : i32
    %c0_i32_1 = arith.constant 0 : i32
    %c0_i32_2 = arith.constant 0 : i32
    return %c0_i32, %c0_i32_0, %c0_i32_1 : i32, i32, i32
  }
  func.func @transform_4(%arg0: i32, %arg1: i32, %arg2: i32) -> (i32, i32, i32) {
    %c8_i32 = arith.constant 8 : i32
    %0 = arith.muli %arg0, %c8_i32 : i32
    %1 = arith.addi %0, %arg1 : i32
    %c0_i32 = arith.constant 0 : i32
    %c0_i32_0 = arith.constant 0 : i32
    return %1, %c0_i32, %arg2 : i32, i32, i32
  }
}

module attributes {stable_mosaic.version = 11 : i64} {
  func.func @_softmax_wsum_kernel(%arg0: i32, %arg1: i32, %arg2: memref<1x8x256xf32, #tpu.memory_space<vmem>>, %arg3: memref<1x8x256xf32, #tpu.memory_space<vmem>>, %arg4: memref<1x1x256xf32, #tpu.memory_space<vmem>>) attributes {dimension_semantics = [#tpu.dimension_semantics<parallel>, #tpu.dimension_semantics<parallel>], iteration_bounds = array<i64: 1, 1>, scalar_prefetch = 0 : i64, scratch_operands = 0 : i64, tpu.core_type = #tpu.core_type<tc>, window_params = [{transform_indices = @transform_0, window_bounds = array<i64: 1, 8, 256>}, {transform_indices = @transform_1, window_bounds = array<i64: 1, 8, 256>}, {transform_indices = @transform_2, window_bounds = array<i64: 1, 1, 256>}]} {
    %c0 = arith.constant 0 : index
    %c0_0 = arith.constant 0 : index
    %c0_1 = arith.constant 0 : index
    %0 = vector.load %arg2[%c0, %c0_0, %c0_1] : memref<1x8x256xf32, #tpu.memory_space<vmem>>, vector<1x8x256xf32>
    %1 = vector.shape_cast %0 : vector<1x8x256xf32> to vector<8x256xf32>
    %cst = arith.constant dense<0xFF800000> : vector<256xf32>
    %2 = vector.multi_reduction <maximumf>, %1, %cst [0] : vector<8x256xf32> to vector<256xf32>
    %3 = vector.shape_cast %2 : vector<256xf32> to vector<1x256xf32>
    %4 = vector.broadcast %3 : vector<1x256xf32> to vector<8x256xf32>
    %5 = arith.subf %1, %4 : vector<8x256xf32>
    %6 = math.exp %5 : vector<8x256xf32>
    %cst_2 = arith.constant dense<0.000000e+00> : vector<256xf32>
    %7 = vector.multi_reduction <add>, %6, %cst_2 [0] : vector<8x256xf32> to vector<256xf32>
    %8 = vector.shape_cast %7 : vector<256xf32> to vector<1x256xf32>
    %9 = tpu.reciprocal %8 {approx = true} : vector<1x256xf32> -> vector<1x256xf32>
    %10 = vector.broadcast %9 : vector<1x256xf32> to vector<8x256xf32>
    %11 = arith.mulf %6, %10 : vector<8x256xf32>
    %c0_3 = arith.constant 0 : index
    %c0_4 = arith.constant 0 : index
    %c0_5 = arith.constant 0 : index
    %12 = vector.load %arg3[%c0_3, %c0_4, %c0_5] : memref<1x8x256xf32, #tpu.memory_space<vmem>>, vector<1x8x256xf32>
    %13 = vector.shape_cast %12 : vector<1x8x256xf32> to vector<8x256xf32>
    %14 = arith.mulf %11, %13 : vector<8x256xf32>
    %cst_6 = arith.constant dense<0.000000e+00> : vector<256xf32>
    %15 = vector.multi_reduction <add>, %14, %cst_6 [0] : vector<8x256xf32> to vector<256xf32>
    %16 = vector.shape_cast %15 : vector<256xf32> to vector<1x256xf32>
    %c0_7 = arith.constant 0 : index
    %c0_8 = arith.constant 0 : index
    %c0_9 = arith.constant 0 : index
    %17 = vector.load %arg4[%c0_7, %c0_8, %c0_9] : memref<1x1x256xf32, #tpu.memory_space<vmem>>, vector<1x1x256xf32>
    %18 = vector.shape_cast %17 : vector<1x1x256xf32> to vector<1x256xf32>
    %19 = vector.shape_cast %16 : vector<1x256xf32> to vector<1x1x256xf32>
    tpu.vector_store %arg4[%c0_7, %c0_8, %c0_9], %19 {strides = array<i32>} : memref<1x1x256xf32, #tpu.memory_space<vmem>>, vector<1x1x256xf32>,
    return
  }
  func.func @transform_0(%arg0: i32, %arg1: i32) -> (i32, i32, i32) {
    %c0_i32 = arith.constant 0 : i32
    %c0_i32_0 = arith.constant 0 : i32
    return %arg0, %c0_i32, %arg1 : i32, i32, i32
  }
  func.func @transform_1(%arg0: i32, %arg1: i32) -> (i32, i32, i32) {
    %c0_i32 = arith.constant 0 : i32
    %c0_i32_0 = arith.constant 0 : i32
    return %arg0, %c0_i32, %arg1 : i32, i32, i32
  }
  func.func @transform_2(%arg0: i32, %arg1: i32) -> (i32, i32, i32) {
    %c0_i32 = arith.constant 0 : i32
    %c0_i32_0 = arith.constant 0 : i32
    return %arg0, %c0_i32, %arg1 : i32, i32, i32
  }
}

</mosaic_0001>

<llo_original>
// kernel: squeeze.595
$region0: #{squeeze.595}
  %s0 = inlined_call_operand.vmem [shape: f32[1,1,8,16,16], index: 0, kind: input, shape index: {}]
  %s1 = inlined_call_operand.vmem [shape: f32[1,8,256], index: 1, kind: output, shape index: {}]
  %v2 = vld [vmem:[%s0] ss:$8 sm:$0xf]
  %v3 = vld [vmem:[%s0] ss:$8 sm:$0xf0]
  %vm4 = vcmask 1047556
  %v5 = vsel %vm4, %v3, %v2
  %vm6 = vcmask 130048
  %7 = vst.msk [vmem:[%s1] ss:$8 sm:$0x3] %vm6, %v5
  %s8 = scalar_lea.vmem %s1, 4294967281
  %9 = vst.msk [vmem:[%s8] ss:$8 sm:$0xc] %vm6, %v5
  %s10 = scalar_lea.vmem %s1, 4294967266
  %11 = vst.msk [vmem:[%s10] ss:$8 sm:$0x30] %vm6, %v5
  %s12 = scalar_lea.vmem %s1, 4294967251
  %13 = vst.msk [vmem:[%s12] ss:$8 sm:$0xc0] %vm6, %v5
  %s14 = scalar_lea.vmem %s0, 64
  %v15 = vld [vmem:[%s14] ss:$8 sm:$0xf]
  %s16 = scalar_lea.vmem %s0, 64
  %v17 = vld [vmem:[%s16] ss:$8 sm:$0xf0]
  %vm18 = vcmask 1047556
  %v19 = vsel %vm18, %v17, %v15
  %vm20 = vcmask 130048
  %s21 = scalar_lea.vmem %s1, 4
  %22 = vst.msk [vmem:[%s21] ss:$8 sm:$0x3] %vm20, %v19
  %s23 = scalar_lea.vmem %s1, 4294967285
  %24 = vst.msk [vmem:[%s23] ss:$8 sm:$0xc] %vm20, %v19
  %s25 = scalar_lea.vmem %s1, 4294967270
  %26 = vst.msk [vmem:[%s25] ss:$8 sm:$0x30] %vm20, %v19
  %s27 = scalar_lea.vmem %s1, 4294967255
  %28 = vst.msk [vmem:[%s27] ss:$8 sm:$0xc0] %vm20, %v19
  %s29 = scalar_lea.vmem %s0, 7
  %s30 = smov 3
  %v31 = vld [vmem:[%s29] ss:$16 sm:%s30]
  %s32 = scalar_lea.vmem %s0, 7
  %s33 = smov 12
  %v34 = vld [vmem:[%s32] ss:$16 sm:%s33]
  %vm35 = vcmask 1043458
  %v36 = vsel %vm35, %v34, %v31
  %s37 = scalar_lea.vmem %s0, 7
  %s38 = smov 48
  %v39 = vld [vmem:[%s37] ss:$16 sm:%s38]
  %vm40 = vcmask 1045508
  %v41 = vsel %vm40, %v39, %v36
  %s42 = scalar_lea.vmem %s0, 7
  %s43 = smov 192
  %v44 = vld [vmem:[%s42] ss:$16 sm:%s43]
  %vm45 = vcmask 1047558
  %v46 = vsel %vm45, %v44, %v41
  %47 = vrot.lane.b32.xlu0 %v46, 112
  %v48 = vpop.permute.xlu0 %47
  %vm49 = vcmask 1048448
  %50 = vst.msk [vmem:[%s1] sm:$0xff] %vm49, %v48
  %s51 = scalar_lea.vmem %s0, 15
  %s52 = smov 3
  %v53 = vld [vmem:[%s51] ss:$16 sm:%s52]
  %s54 = scalar_lea.vmem %s0, 15
  %s55 = smov 12
  %v56 = vld [vmem:[%s54] ss:$16 sm:%s55]
  %vm57 = vcmask 1043458
  %v58 = vsel %vm57, %v56, %v53
  %s59 = scalar_lea.vmem %s0, 15
  %s60 = smov 48
  %v61 = vld [vmem:[%s59] ss:$16 sm:%s60]
  %vm62 = vcmask 1045508
  %v63 = vsel %vm62, %v61, %v58
  %s64 = scalar_lea.vmem %s0, 15
  %s65 = smov 192
  %v66 = vld [vmem:[%s64] ss:$16 sm:%s65]
  %vm67 = vcmask 1047558
  %v68 = vsel %vm67, %v66, %v63
  %69 = vrot.lane.b32.xlu0 %v68, 112
  %v70 = vpop.permute.xlu0 %69
  %vm71 = vcmask 1048448
  %s72 = scalar_lea.vmem %s1, 8
  %73 = vst.msk [vmem:[%s72] sm:$0xff] %vm71, %v70
  %s74 = scalar_lea.vmem %s0, 6
  %s75 = smov 3
  %v76 = vld [vmem:[%s74] ss:$16 sm:%s75]
  %s77 = scalar_lea.vmem %s0, 6
  %s78 = smov 12
  %v79 = vld [vmem:[%s77] ss:$16 sm:%s78]
  %vm80 = vcmask 1043458
  %v81 = vsel %vm80, %v79, %v76
  %s82 = scalar_lea.vmem %s0, 6
  %s83 = smov 48
  %v84 = vld [vmem:[%s82] ss:$16 sm:%s83]
  %vm85 = vcmask 1045508
  %v86 = vsel %vm85, %v84, %v81
  %s87 = scalar_lea.vmem %s0, 6
  %s88 = smov 192
  %v89 = vld [vmem:[%s87] ss:$16 sm:%s88]
  %vm90 = vcmask 1047558
  %v91 = vsel %vm90, %v89, %v86
  %92 = vrot.lane.b32.xlu0 %v91, 96
  %v93 = vpop.permute.xlu0 %92
  %vm94 = vcmask 917248
  %95 = vst.msk [vmem:[%s1] sm:$0xff] %vm94, %v93
  %s96 = scalar_lea.vmem %s0, 14
  %s97 = smov 3
  %v98 = vld [vmem:[%s96] ss:$16 sm:%s97]
  %s99 = scalar_lea.vmem %s0, 14
  %s100 = smov 12
  %v101 = vld [vmem:[%s99] ss:$16 sm:%s100]
  %vm102 = vcmask 1043458
  %v103 = vsel %vm102, %v101, %v98
  %s104 = scalar_lea.vmem %s0, 14
  %s105 = smov 48
  %v106 = vld [vmem:[%s104] ss:$16 sm:%s105]
  %vm107 = vcmask 1045508
  %v108 = vsel %vm107, %v106, %v103
  %s109 = scalar_lea.vmem %s0, 14
  %s110 = smov 192
  %v111 = vld [vmem:[%s109] ss:$16 sm:%s110]
  %vm112 = vcmask 1047558
  %v113 = vsel %vm112, %v111, %v108
  %114 = vrot.lane.b32.xlu0 %v113, 96
  %v115 = vpop.permute.xlu0 %114
  %vm116 = vcmask 917248
  %s117 = scalar_lea.vmem %s1, 8
  %118 = vst.msk [vmem:[%s117] sm:$0xff] %vm116, %v115
  %s119 = scalar_lea.vmem %s0, 5
  %s120 = smov 3
  %v121 = vld [vmem:[%s119] ss:$16 sm:%s120]
  %s122 = scalar_lea.vmem %s0, 5
  %s123 = smov 12
  %v124 = vld [vmem:[%s122] ss:$16 sm:%s123]
  %vm125 = vcmask 1043458
  %v126 = vsel %vm125, %v124, %v121
  %s127 = scalar_lea.vmem %s0, 5
  %s128 = smov 48
  %v129 = vld [vmem:[%s127] ss:$16 sm:%s128]
  %vm130 = vcmask 1045508
  %v131 = vsel %vm130, %v129, %v126
  %s132 = scalar_lea.vmem %s0, 5
  %s133 = smov 192
  %v134 = vld [vmem:[%s132] ss:$16 sm:%s133]
  %vm135 = vcmask 1047558
  %v136 = vsel %vm135, %v134, %v131
  %137 = vrot.lane.b32.xlu0 %v136, 80
  %v138 = vpop.permute.xlu0 %137
  %vm139 = vcmask 786048
  %140 = vst.msk [vmem:[%s1] sm:$0xff] %vm139, %v138
  %s141 = scalar_lea.vmem %s0, 13
  %s142 = smov 3
  %v143 = vld [vmem:[%s141] ss:$16 sm:%s142]
  %s144 = scalar_lea.vmem %s0, 13
  %s145 = smov 12
  %v146 = vld [vmem:[%s144] ss:$16 sm:%s145]
  %vm147 = vcmask 1043458
  %v148 = vsel %vm147, %v146, %v143
  %s149 = scalar_lea.vmem %s0, 13
  %s150 = smov 48
  %v151 = vld [vmem:[%s149] ss:$16 sm:%s150]
  %vm152 = vcmask 1045508
  %v153 = vsel %vm152, %v151, %v148
  %s154 = scalar_lea.vmem %s0, 13
  %s155 = smov 192
  %v156 = vld [vmem:[%s154] ss:$16 sm:%s155]
  %vm157 = vcmask 1047558
  %v158 = vsel %vm157, %v156, %v153
  %159 = vrot.lane.b32.xlu0 %v158, 80
  %v160 = vpop.permute.xlu0 %159
  %vm161 = vcmask 786048
  %s162 = scalar_lea.vmem %s1, 8
  %163 = vst.msk [vmem:[%s162] sm:$0xff] %vm161, %v160
  %s164 = scalar_lea.vmem %s0, 4
  %s165 = smov 3
  %v166 = vld [vmem:[%s164] ss:$16 sm:%s165]
  %s167 = scalar_lea.vmem %s0, 4
  %s168 = smov 12
  %v169 = vld [vmem:[%s167] ss:$16 sm:%s168]
  %vm170 = vcmask 1043458
  %v171 = vsel %vm170, %v169, %v166
  %s172 = scalar_lea.vmem %s0, 4
  %s173 = smov 48
  %v174 = vld [vmem:[%s172] ss:$16 sm:%s173]
  %vm175 = vcmask 1045508
  %v176 = vsel %vm175, %v174, %v171
  %s177 = scalar_lea.vmem %s0, 4
  %s178 = smov 192
  %v179 = vld [vmem:[%s177] ss:$16 sm:%s178]
  %vm180 = vcmask 1047558
  %v181 = vsel %vm180, %v179, %v176
  %182 = vrot.lane.b32.xlu0 %v181, 64
  %v183 = vpop.permute.xlu0 %182
  %vm184 = vcmask 654848
  %185 = vst.msk [vmem:[%s1] sm:$0xff] %vm184, %v183
  %s186 = scalar_lea.vmem %s0, 12
  %s187 = smov 3
  %v188 = vld [vmem:[%s186] ss:$16 sm:%s187]
  %s189 = scalar_lea.vmem %s0, 12
  %s190 = smov 12
  %v191 = vld [vmem:[%s189] ss:$16 sm:%s190]
  %vm192 = vcmask 1043458
  %v193 = vsel %vm192, %v191, %v188
  %s194 = scalar_lea.vmem %s0, 12
  %s195 = smov 48
  %v196 = vld [vmem:[%s194] ss:$16 sm:%s195]
  %vm197 = vcmask 1045508
  %v198 = vsel %vm197, %v196, %v193
  %s199 = scalar_lea.vmem %s0, 12
  %s200 = smov 192
  %v201 = vld [vmem:[%s199] ss:$16 sm:%s200]
  %vm202 = vcmask 1047558
  %v203 = vsel %vm202, %v201, %v198
  %204 = vrot.lane.b32.xlu0 %v203, 64
  %v205 = vpop.permute.xlu0 %204
  %vm206 = vcmask 654848
  %s207 = scalar_lea.vmem %s1, 8
  %208 = vst.msk [vmem:[%s207] sm:$0xff] %vm206, %v205
  %s209 = scalar_lea.vmem %s0, 3
  %s210 = smov 3
  %v211 = vld [vmem:[%s209] ss:$16 sm:%s210]
  %s212 = scalar_lea.vmem %s0, 3
  %s213 = smov 12
  %v214 = vld [vmem:[%s212] ss:$16 sm:%s213]
  %vm215 = vcmask 1043458
  %v216 = vsel %vm215, %v214, %v211
  %s217 = scalar_lea.vmem %s0, 3
  %s218 = smov 48
  %v219 = vld [vmem:[%s217] ss:$16 sm:%s218]
  %vm220 = vcmask 1045508
  %v221 = vsel %vm220, %v219, %v216
  %s222 = scalar_lea.vmem %s0, 3
  %s223 = smov 192
  %v224 = vld [vmem:[%s222] ss:$16 sm:%s223]
  %vm225 = vcmask 1047558
  %v226 = vsel %vm225, %v224, %v221
  %227 = vrot.lane.b32.xlu0 %v226, 48
  %v228 = vpop.permute.xlu0 %227
  %vm229 = vcmask 523648
  %230 = vst.msk [vmem:[%s1] sm:$0xff] %vm229, %v228
  %s231 = scalar_lea.vmem %s0, 11
  %s232 = smov 3
  %v233 = vld [vmem:[%s231] ss:$16 sm:%s232]
  %s234 = scalar_lea.vmem %s0, 11
  %s235 = smov 12
  %v236 = vld [vmem:[%s234] ss:$16 sm:%s235]
  %vm237 = vcmask 1043458
  %v238 = vsel %vm237, %v236, %v233
  %s239 = scalar_lea.vmem %s0, 11
  %s240 = smov 48
  %v241 = vld [vmem:[%s239] ss:$16 sm:%s240]
  %vm242 = vcmask 1045508
  %v243 = vsel %vm242, %v241, %v238
  %s244 = scalar_lea.vmem %s0, 11
  %s245 = smov 192
  %v246 = vld [vmem:[%s244] ss:$16 sm:%s245]
  %vm247 = vcmask 1047558
  %v248 = vsel %vm247, %v246, %v243
  %249 = vrot.lane.b32.xlu0 %v248, 48
  %v250 = vpop.permute.xlu0 %249
  %vm251 = vcmask 523648
  %s252 = scalar_lea.vmem %s1, 8
  %253 = vst.msk [vmem:[%s252] sm:$0xff] %vm251, %v250
  %s254 = scalar_lea.vmem %s0, 2
  %s255 = smov 3
  %v256 = vld [vmem:[%s254] ss:$16 sm:%s255]
  %s257 = scalar_lea.vmem %s0, 2
  %s258 = smov 12
  %v259 = vld [vmem:[%s257] ss:$16 sm:%s258]
  %vm260 = vcmask 1043458
  %v261 = vsel %vm260, %v259, %v256
  %s262 = scalar_lea.vmem %s0, 2
  %s263 = smov 48
  %v264 = vld [vmem:[%s262] ss:$16 sm:%s263]
  %vm265 = vcmask 1045508
  %v266 = vsel %vm265, %v264, %v261
  %s267 = scalar_lea.vmem %s0, 2
  %s268 = smov 192
  %v269 = vld [vmem:[%s267] ss:$16 sm:%s268]
  %vm270 = vcmask 1047558
  %v271 = vsel %vm270, %v269, %v266
  %272 = vrot.lane.b32.xlu0 %v271, 32
  %v273 = vpop.permute.xlu0 %272
  %vm274 = vcmask 392448
  %275 = vst.msk [vmem:[%s1] sm:$0xff] %vm274, %v273
  %s276 = scalar_lea.vmem %s0, 10
  %s277 = smov 3
  %v278 = vld [vmem:[%s276] ss:$16 sm:%s277]
  %s279 = scalar_lea.vmem %s0, 10
  %s280 = smov 12
  %v281 = vld [vmem:[%s279] ss:$16 sm:%s280]
  %vm282 = vcmask 1043458
  %v283 = vsel %vm282, %v281, %v278
  %s284 = scalar_lea.vmem %s0, 10
  %s285 = smov 48
  %v286 = vld [vmem:[%s284] ss:$16 sm:%s285]
  %vm287 = vcmask 1045508
  %v288 = vsel %vm287, %v286, %v283
  %s289 = scalar_lea.vmem %s0, 10
  %s290 = smov 192
  %v291 = vld [vmem:[%s289] ss:$16 sm:%s290]
  %vm292 = vcmask 1047558
  %v293 = vsel %vm292, %v291, %v288
  %294 = vrot.lane.b32.xlu0 %v293, 32
  %v295 = vpop.permute.xlu0 %294
  %vm296 = vcmask 392448
  %s297 = scalar_lea.vmem %s1, 8
  %298 = vst.msk [vmem:[%s297] sm:$0xff] %vm296, %v295
  %s299 = scalar_lea.vmem %s0, 1
  %s300 = smov 3
  %v301 = vld [vmem:[%s299] ss:$16 sm:%s300]
  %s302 = scalar_lea.vmem %s0, 1
  %s303 = smov 12
  %v304 = vld [vmem:[%s302] ss:$16 sm:%s303]
  %vm305 = vcmask 1043458
  %v306 = vsel %vm305, %v304, %v301
  %s307 = scalar_lea.vmem %s0, 1
  %s308 = smov 48
  %v309 = vld [vmem:[%s307] ss:$16 sm:%s308]
  %vm310 = vcmask 1045508
  %v311 = vsel %vm310, %v309, %v306
  %s312 = scalar_lea.vmem %s0, 1
  %s313 = smov 192
  %v314 = vld [vmem:[%s312] ss:$16 sm:%s313]
  %vm315 = vcmask 1047558
  %v316 = vsel %vm315, %v314, %v311
  %317 = vrot.lane.b32.xlu0 %v316, 16
  %v318 = vpop.permute.xlu0 %317
  %vm319 = vcmask 261248
  %320 = vst.msk [vmem:[%s1] sm:$0xff] %vm319, %v318
  %s321 = scalar_lea.vmem %s0, 9
  %s322 = smov 3
  %v323 = vld [vmem:[%s321] ss:$16 sm:%s322]
  %s324 = scalar_lea.vmem %s0, 9
  %s325 = smov 12
  %v326 = vld [vmem:[%s324] ss:$16 sm:%s325]
  %vm327 = vcmask 1043458
  %v328 = vsel %vm327, %v326, %v323
  %s329 = scalar_lea.vmem %s0, 9
  %s330 = smov 48
  %v331 = vld [vmem:[%s329] ss:$16 sm:%s330]
  %vm332 = vcmask 1045508
  %v333 = vsel %vm332, %v331, %v328
  %s334 = scalar_lea.vmem %s0, 9
  %s335 = smov 192
  %v336 = vld [vmem:[%s334] ss:$16 sm:%s335]
  %vm337 = vcmask 1047558
  %v338 = vsel %vm337, %v336, %v333
  %339 = vrot.lane.b32.xlu0 %v338, 16
  %v340 = vpop.permute.xlu0 %339
  %vm341 = vcmask 261248
  %s342 = scalar_lea.vmem %s1, 8
  %343 = vst.msk [vmem:[%s342] sm:$0xff] %vm341, %v340

</llo_original>
